<compile_context>
chip_gen: v6e
topology: v6e:2x2x1
jax: 0.10.0
libtpu: 0.0.40
codegen_flags: <defaults>
</compile_context>

<pallas_src>
import functools

import jax
import jax.numpy as jnp
from jax.experimental import pallas as pl
from jax.experimental.pallas import tpu as pltpu

# ----------------------------- model config (small, TinyBERT-shaped) --------------------
VOCAB = 128
HIDDEN = 32
NUM_LAYERS = 2
NUM_HEADS = 4
HEAD_DIM = HIDDEN // NUM_HEADS
INTERMEDIATE = 64
MAX_POS = 16
TYPE_VOCAB = 2
NUM_LABELS = 6
CLS_PAD = 128            # lane-dense classifier width; real labels are the first NUM_LABELS cols
LN_EPS = 1e-12


def _layernorm(x, g, b):
    mean = jnp.mean(x, axis=-1, keepdims=True)
    xc = x - mean
    var = jnp.mean(xc * xc, axis=-1, keepdims=True)
    return xc * jax.lax.rsqrt(var + LN_EPS) * g + b


def _gelu(y):
    # TODO(synk): HF BERT uses exact erf-GELU; tanh approximation kept for guaranteed
    # Mosaic lowering (EUP tanh).  Max deviation ~1e-3.
    return 0.5 * y * (1.0 + jnp.tanh(0.7978845608028654 * (y + 0.044715 * y * y * y)))


# ----------------------------- fused forward kernel -------------------------------------
def _bert_forward_kernel(
    ids_ref, pos_ref, tt_ref, mask_ref,
    word_emb_ref, pos_emb_ref, type_emb_ref,
    emb_ln_g_ref, emb_ln_b_ref,
    wqkv_ref, bqkv_ref, wo_ref, bo_ref, ln1_g_ref, ln1_b_ref,
    wi_ref, bi_ref, wo2_ref, bo2_ref, ln2_g_ref, ln2_b_ref,
    pool_w_ref, pool_b_ref, cls_w_ref, cls_b_ref,
    out_ref,
    *, B, S):

    BS = B * S

    # ---- embeddings in-kernel: one-hot MXU matmuls replace the XLA gather ----
    vcol = jax.lax.broadcasted_iota(jnp.int32, (BS, VOCAB), 1)
    emb = jnp.dot((ids_ref[...] == vcol).astype(jnp.float32), word_emb_ref[...],
                  preferred_element_type=jnp.float32)                        # (BS, H)
    pcol = jax.lax.broadcasted_iota(jnp.int32, (BS, MAX_POS), 1)
    emb = emb + jnp.dot((pos_ref[...] == pcol).astype(jnp.float32), pos_emb_ref[...],
                        preferred_element_type=jnp.float32)
    # token_type in {0,1}: linear interpolation between the two type rows (VPU only).
    t0 = type_emb_ref[0:1, :]
    t1 = type_emb_ref[1:2, :]
    emb = emb + t0 + tt_ref[...] * (t1 - t0)

    h = _layernorm(emb, emb_ln_g_ref[...], emb_ln_b_ref[...])                # (BS, H)

    # Key-side additive mask bias, shared by all layers/heads.  (Padded *query* rows
    # are never consumed -- only the CLS row feeds the pooler -- so key-side-only
    # masking matches BERT semantics; do not "fix" this later.)
    mask_bias = (1.0 - mask_ref[...]) * -1e9                                 # (B, 1, S)

    # ---- encoder layers (static unroll; all weights resident in VMEM) ----
    for l in range(NUM_LAYERS):
        wqkv = wqkv_ref[l]                                                   # (H, 3H)
        bqkv = bqkv_ref[l]                                                   # (1, 3H)
        wo = wo_ref[l]                                                       # (H, H)
        bo = bo_ref[l]                                                       # (1, H)
        wi = wi_ref[l]                                                       # (H, I)
        bi = bi_ref[l]                                                       # (1, I)
        wo2 = wo2_ref[l]                                                     # (I, H)
        bo2 = bo2_ref[l]                                                     # (1, H)

        # Fused Q|K|V projection; the 1/sqrt(head_dim) softmax scale is pre-folded
        # into the q columns of wqkv at init, so no in-kernel scaling.
        qkv = jnp.dot(h, wqkv, preferred_element_type=jnp.float32) + bqkv    # (BS, 3H)
        qkv3 = qkv.reshape(B, S, 3 * HIDDEN)                                 # cheap leading-dim split

        # Per-head attention, batched over B (NUM_HEADS=4 blocks/layer vs B*NH=16 before).
        # Head-merge is folded into the output projection as a block matmul.
        attn = None
        for hh in range(NUM_HEADS):
            c0 = hh * HEAD_DIM
            q_h = qkv3[:, :, c0:c0 + HEAD_DIM]                               # (B, S, Dh), pre-scaled
            k_h = qkv3[:, :, HIDDEN + c0:HIDDEN + c0 + HEAD_DIM]
            v_h = qkv3[:, :, 2 * HIDDEN + c0:2 * HIDDEN + c0 + HEAD_DIM]
            s = jnp.einsum('bqd,bkd->bqk', q_h, k_h,
                           preferred_element_type=jnp.float32) + mask_bias   # (B, S, S)
            m = jnp.max(s, axis=-1, keepdims=True)
            p = jnp.exp(s - m)
            p = p * pl.reciprocal(jnp.sum(p, axis=-1, keepdims=True), approx=True)
            ctx = jnp.einsum('bqk,bkd->bqd', p, v_h,
                             preferred_element_type=jnp.float32)             # (B, S, Dh)
            contrib = jnp.dot(ctx.reshape(BS, HEAD_DIM), wo[c0:c0 + HEAD_DIM, :],
                              preferred_element_type=jnp.float32)            # (BS, H)
            attn = contrib if attn is None else attn + contrib

        # Residual + bias + LayerNorm fused.
        h = _layernorm(attn + bo + h, ln1_g_ref[l], ln1_b_ref[l])

        # FFN: bias + GELU fused into the first matmul, residual + LN fused at the end.
        inter = _gelu(jnp.dot(h, wi, preferred_element_type=jnp.float32) + bi)
        ffn = jnp.dot(inter, wo2, preferred_element_type=jnp.float32) + bo2
        h = _layernorm(ffn + h, ln2_g_ref[l], ln2_b_ref[l])

    # ---- pooler (dense + tanh on [CLS]) + classifier, lane-dense padded output ----
    cls = h.reshape(B, S, HIDDEN)[:, 0, :]                                   # (B, H)
    pooled = jnp.tanh(jnp.dot(cls, pool_w_ref[...],
                              preferred_element_type=jnp.float32) + pool_b_ref[...])
    logits = jnp.dot(pooled, cls_w_ref[...],
                     preferred_element_type=jnp.float32) + cls_b_ref[...]    # (B, CLS_PAD)
    out_ref[...] = logits.astype(out_ref.dtype)


# ----------------------------- model glue ------------------------------------------------
def bert_multilabel_forward(params, input_ids, attention_mask, token_type_ids=None):
    B, S = input_ids.shape
    if token_type_ids is None:
        token_type_ids = jnp.zeros_like(input_ids)

    # Tiny wrapper-side reshapes only; the embedding gather itself lives in the kernel.
    ids = input_ids.reshape(B * S, 1).astype(jnp.int32)
    pos = jnp.tile(jnp.arange(S, dtype=jnp.int32), B).reshape(B * S, 1)      # trace-time constant
    tt = token_type_ids.reshape(B * S, 1).astype(jnp.float32)
    mask = attention_mask.astype(jnp.float32).reshape(B, 1, S)

    kernel = functools.partial(_bert_forward_kernel, B=B, S=S)
    vmem = pl.BlockSpec(memory_space=pltpu.MemorySpace.VMEM)
    # Total VMEM footprint (weights ~60 KB + activations ~20 KB) is <0.2% of even
    # v7x's 64 MiB, so the grid-less, everything-resident design is safe on all gens.
    # TODO(synk): for large batches on v7x, add grid=(B//Bt,) with
    # dimension_semantics=("parallel",) to use both TensorCores; not worth it at B=2.
    logits_pad = pl.pallas_call(
        kernel,
        out_shape=jax.ShapeDtypeStruct((B, CLS_PAD), jnp.float32),
        in_specs=[vmem] * 25,
        out_specs=vmem,
    )(ids, pos, tt, mask,
      params["word_emb"], params["pos_emb"], params["type_emb"],
      params["emb_ln_g"], params["emb_ln_b"],
      params["wqkv"], params["bqkv"], params["wo"], params["bo"],
      params["ln1_g"], params["ln1_b"],
      params["wi"], params["bi"], params["wo2"], params["bo2"],
      params["ln2_g"], params["ln2_b"],
      params["pooler_w"], params["pooler_b"],
      params["cls_w"], params["cls_b"])
    return logits_pad[:, :NUM_LABELS]


# ----------------------------- deterministic param init ----------------------------------
def init_params(key):
    keys = iter(jax.random.split(key, 64))

    def nrm(shape):
        return jax.random.normal(next(keys), shape, jnp.float32) * 0.02

    L = NUM_LAYERS
    scale = 1.0 / (HEAD_DIM ** 0.5)

    # Q|K|V pre-concatenated along the last axis; the 1/sqrt(head_dim) softmax scale is
    # folded into the q columns (and q bias) so the kernel never scales q.
    wqkv = nrm((L, HIDDEN, 3 * HIDDEN))
    wqkv = wqkv.at[:, :, :HIDDEN].multiply(scale)
    bqkv = jnp.zeros((L, 1, 3 * HIDDEN), jnp.float32)
    bqkv = bqkv.at[:, :, :HIDDEN].multiply(scale)        # no-op for zeros; kept for generality

    # Classifier padded to a lane-dense 128-wide output; real labels = first NUM_LABELS cols.
    cls_w = jnp.zeros((HIDDEN, CLS_PAD), jnp.float32).at[:, :NUM_LABELS].set(
        nrm((HIDDEN, NUM_LABELS)))
    cls_b = jnp.zeros((1, CLS_PAD), jnp.float32)

    return {
        "word_emb": nrm((VOCAB, HIDDEN)),
        "pos_emb": nrm((MAX_POS, HIDDEN)),
        "type_emb": nrm((TYPE_VOCAB, HIDDEN)),
        "emb_ln_g": jnp.ones((1, HIDDEN), jnp.float32),
        "emb_ln_b": jnp.zeros((1, HIDDEN), jnp.float32),
        "wqkv": wqkv,
        "bqkv": bqkv,
        "wo": nrm((L, HIDDEN, HIDDEN)),
        "bo": jnp.zeros((L, 1, HIDDEN), jnp.float32),
        "ln1_g": jnp.ones((L, 1, HIDDEN), jnp.float32),
        "ln1_b": jnp.zeros((L, 1, HIDDEN), jnp.float32),
        "wi": nrm((L, HIDDEN, INTERMEDIATE)),
        "bi": jnp.zeros((L, 1, INTERMEDIATE), jnp.float32),
        "wo2": nrm((L, INTERMEDIATE, HIDDEN)),
        "bo2": jnp.zeros((L, 1, HIDDEN), jnp.float32),
        "ln2_g": jnp.ones((L, 1, HIDDEN), jnp.float32),
        "ln2_b": jnp.zeros((L, 1, HIDDEN), jnp.float32),
        "pooler_w": nrm((HIDDEN, HIDDEN)),
        "pooler_b": jnp.zeros((1, HIDDEN), jnp.float32),
        "cls_w": cls_w,
        "cls_b": cls_b,
    }


# ----------------------------- pure-JAX reference (verifies the B>1 batched path) --------
def bert_reference(params, input_ids, attention_mask, token_type_ids):
    B, S = input_ids.shape
    emb = (params["word_emb"][input_ids]
           + params["pos_emb"][jnp.arange(S)][None, :, :]
           + params["type_emb"][token_type_ids])                             # (B, S, H)

    def ln(x, g, b):
        mu = jnp.mean(x, -1, keepdims=True)
        xc = x - mu
        var = jnp.mean(xc * xc, -1, keepdims=True)
        return xc * jax.lax.rsqrt(var + LN_EPS) * g + b

    h = ln(emb, params["emb_ln_g"], params["emb_ln_b"])
    bias = (1.0 - attention_mask.astype(jnp.float32))[:, None, None, :] * -1e9
    for l in range(NUM_LAYERS):
        qkv = h @ params["wqkv"][l] + params["bqkv"][l]
        q, k, v = jnp.split(qkv, 3, axis=-1)
        q = q.reshape(B, S, NUM_HEADS, HEAD_DIM).transpose(0, 2, 1, 3)
        k = k.reshape(B, S, NUM_HEADS, HEAD_DIM).transpose(0, 2, 1, 3)
        v = v.reshape(B, S, NUM_HEADS, HEAD_DIM).transpose(0, 2, 1, 3)
        s = jnp.einsum('bhqd,bhkd->bhqk', q, k) + bias
        p = jax.nn.softmax(s, axis=-1)
        ctx = jnp.einsum('bhqk,bhkd->bhqd', p, v).transpose(0, 2, 1, 3).reshape(B, S, HIDDEN)
        attn = ctx @ params["wo"][l] + params["bo"][l]
        h = ln(attn + h, params["ln1_g"][l], params["ln1_b"][l])
        ffn = _gelu(h @ params["wi"][l] + params["bi"][l]) @ params["wo2"][l] + params["bo2"][l]
        h = ln(ffn + h, params["ln2_g"][l], params["ln2_b"][l])
    pooled = jnp.tanh(h[:, 0, :] @ params["pooler_w"] + params["pooler_b"])
    logits = pooled @ params["cls_w"] + params["cls_b"]
    return logits[:, :NUM_LABELS]


# ----------------------------- main -------------------------------------------------------
if __name__ == "__main__":
    B, S = 2, 8
    root = jax.random.PRNGKey(0)
    k_param, k_ids = jax.random.split(root)

    params = init_params(k_param)
    input_ids = jax.random.randint(k_ids, (B, S), 0, VOCAB, dtype=jnp.int32)
    # Second sequence has two padding positions at the end.
    attention_mask = jnp.array([[1, 1, 1, 1, 1, 1, 1, 1],
                                [1, 1, 1, 1, 1, 1, 0, 0]], dtype=jnp.int32)
    token_type_ids = jnp.zeros((B, S), dtype=jnp.int32)

    fwd = jax.jit(bert_multilabel_forward)
    logits = fwd(params, input_ids, attention_mask, token_type_ids)
    jax.block_until_ready(logits)
    assert logits.shape == (B, NUM_LABELS)
    assert bool(jnp.all(jnp.isfinite(logits)))

    # One-time numeric check of the batched (B>1) attention / CLS path against pure JAX.
    ref = bert_reference(params, input_ids, attention_mask, token_type_ids)
    assert bool(jnp.allclose(logits, ref, atol=2e-2, rtol=2e-2))

    print("KERNEL_OK")
</pallas_src>

<mosaic_0001>
module attributes {stable_mosaic.version = 11 : i64} {
  func.func @_bert_forward_kernel(%arg0: memref<16x1xi32, #tpu.memory_space<vmem>>, %arg1: memref<16x1xi32, #tpu.memory_space<vmem>>, %arg2: memref<16x1xf32, #tpu.memory_space<vmem>>, %arg3: memref<2x1x8xf32, #tpu.memory_space<vmem>>, %arg4: memref<128x32xf32, #tpu.memory_space<vmem>>, %arg5: memref<16x32xf32, #tpu.memory_space<vmem>>, %arg6: memref<2x32xf32, #tpu.memory_space<vmem>>, %arg7: memref<1x32xf32, #tpu.memory_space<vmem>>, %arg8: memref<1x32xf32, #tpu.memory_space<vmem>>, %arg9: memref<2x32x96xf32, #tpu.memory_space<vmem>>, %arg10: memref<2x1x96xf32, #tpu.memory_space<vmem>>, %arg11: memref<2x32x32xf32, #tpu.memory_space<vmem>>, %arg12: memref<2x1x32xf32, #tpu.memory_space<vmem>>, %arg13: memref<2x1x32xf32, #tpu.memory_space<vmem>>, %arg14: memref<2x1x32xf32, #tpu.memory_space<vmem>>, %arg15: memref<2x32x64xf32, #tpu.memory_space<vmem>>, %arg16: memref<2x1x64xf32, #tpu.memory_space<vmem>>, %arg17: memref<2x64x32xf32, #tpu.memory_space<vmem>>, %arg18: memref<2x1x32xf32, #tpu.memory_space<vmem>>, %arg19: memref<2x1x32xf32, #tpu.memory_space<vmem>>, %arg20: memref<2x1x32xf32, #tpu.memory_space<vmem>>, %arg21: memref<32x32xf32, #tpu.memory_space<vmem>>, %arg22: memref<1x32xf32, #tpu.memory_space<vmem>>, %arg23: memref<32x128xf32, #tpu.memory_space<vmem>>, %arg24: memref<1x128xf32, #tpu.memory_space<vmem>>, %arg25: memref<2x128xf32, #tpu.memory_space<vmem>>) attributes {dimension_semantics = [], scalar_prefetch = 0 : i64, scratch_operands = 0 : i64, tpu.core_type = #tpu.core_type<tc>} {
    %0 = tpu.iota {dimensions = array<i32: 1>} : vector<16x128xi32>
    %c0 = arith.constant 0 : index
    %c0_0 = arith.constant 0 : index
    %1 = vector.load %arg0[%c0, %c0_0] : memref<16x1xi32, #tpu.memory_space<vmem>>, vector<16x1xi32>
    %2 = vector.broadcast %1 : vector<16x1xi32> to vector<16x128xi32>
    %3 = arith.cmpi eq, %2, %0 : vector<16x128xi32>
    %4 = arith.extui %3 : vector<16x128xi1> to vector<16x128xi32>
    %5 = arith.sitofp %4 : vector<16x128xi32> to vector<16x128xf32>
    %c0_1 = arith.constant 0 : index
    %c0_2 = arith.constant 0 : index
    %6 = vector.load %arg4[%c0_1, %c0_2] : memref<128x32xf32, #tpu.memory_space<vmem>>, vector<128x32xf32>
    %cst = arith.constant dense<0.000000e+00> : vector<16x32xf32>
    %7 = tpu.matmul %5, %6, %cst {dimension_numbers = #tpu.dot_dimension_numbers<[1], [0], [0], [1], [0, 0, 1, 1], [], []>} : vector<16x128xf32>, vector<128x32xf32>, vector<16x32xf32> -> vector<16x32xf32>
    %8 = tpu.iota {dimensions = array<i32: 1>} : vector<16x16xi32>
    %c0_3 = arith.constant 0 : index
    %c0_4 = arith.constant 0 : index
    %9 = vector.load %arg1[%c0_3, %c0_4] : memref<16x1xi32, #tpu.memory_space<vmem>>, vector<16x1xi32>
    %10 = vector.broadcast %9 : vector<16x1xi32> to vector<16x16xi32>
    %11 = arith.cmpi eq, %10, %8 : vector<16x16xi32>
    %12 = arith.extui %11 : vector<16x16xi1> to vector<16x16xi32>
    %13 = arith.sitofp %12 : vector<16x16xi32> to vector<16x16xf32>
    %c0_5 = arith.constant 0 : index
    %c0_6 = arith.constant 0 : index
    %14 = vector.load %arg5[%c0_5, %c0_6] : memref<16x32xf32, #tpu.memory_space<vmem>>, vector<16x32xf32>
    %cst_7 = arith.constant dense<0.000000e+00> : vector<16x32xf32>
    %15 = tpu.matmul %13, %14, %cst_7 {dimension_numbers = #tpu.dot_dimension_numbers<[1], [0], [0], [1], [0, 0, 1, 1], [], []>} : vector<16x16xf32>, vector<16x32xf32>, vector<16x32xf32> -> vector<16x32xf32>
    %16 = arith.addf %7, %15 : vector<16x32xf32>
    %c0_8 = arith.constant 0 : index
    %c0_9 = arith.constant 0 : index
    %17 = vector.load %arg6[%c0_8, %c0_9] : memref<2x32xf32, #tpu.memory_space<vmem>>, vector<1x32xf32>
    %c1 = arith.constant 1 : index
    %c0_10 = arith.constant 0 : index
    %18 = vector.load %arg6[%c1, %c0_10] : memref<2x32xf32, #tpu.memory_space<vmem>>, vector<1x32xf32>
    %19 = vector.broadcast %17 : vector<1x32xf32> to vector<16x32xf32>
    %20 = arith.addf %16, %19 : vector<16x32xf32>
    %c0_11 = arith.constant 0 : index
    %c0_12 = arith.constant 0 : index
    %21 = vector.load %arg2[%c0_11, %c0_12] : memref<16x1xf32, #tpu.memory_space<vmem>>, vector<16x1xf32>
    %22 = arith.subf %18, %17 : vector<1x32xf32>
    %23 = vector.broadcast %21 : vector<16x1xf32> to vector<16x32xf32>
    %24 = vector.broadcast %22 : vector<1x32xf32> to vector<16x32xf32>
    %25 = arith.mulf %23, %24 : vector<16x32xf32>
    %26 = arith.addf %20, %25 : vector<16x32xf32>
    %c0_13 = arith.constant 0 : index
    %c0_14 = arith.constant 0 : index
    %27 = vector.load %arg7[%c0_13, %c0_14] : memref<1x32xf32, #tpu.memory_space<vmem>>, vector<1x32xf32>
    %c0_15 = arith.constant 0 : index
    %c0_16 = arith.constant 0 : index
    %28 = vector.load %arg8[%c0_15, %c0_16] : memref<1x32xf32, #tpu.memory_space<vmem>>, vector<1x32xf32>
    %cst_17 = arith.constant dense<0.000000e+00> : vector<16xf32>
    %29 = vector.multi_reduction <add>, %26, %cst_17 [1] : vector<16x32xf32> to vector<16xf32>
    %30 = vector.shape_cast %29 : vector<16xf32> to vector<16x1xf32>
    %cst_18 = arith.constant 3.200000e+01 : f32
    %31 = vector.broadcast %cst_18 : f32 to vector<16x1xf32>
    %32 = arith.divf %30, %31 : vector<16x1xf32>
    %33 = vector.broadcast %32 : vector<16x1xf32> to vector<16x32xf32>
    %34 = arith.subf %26, %33 : vector<16x32xf32>
    %35 = arith.mulf %34, %34 : vector<16x32xf32>
    %cst_19 = arith.constant dense<0.000000e+00> : vector<16xf32>
    %36 = vector.multi_reduction <add>, %35, %cst_19 [1] : vector<16x32xf32> to vector<16xf32>
    %37 = vector.shape_cast %36 : vector<16xf32> to vector<16x1xf32>
    %cst_20 = arith.constant 3.200000e+01 : f32
    %38 = vector.broadcast %cst_20 : f32 to vector<16x1xf32>
    %39 = arith.divf %37, %38 : vector<16x1xf32>
    %cst_21 = arith.constant 9.99999996E-13 : f32
    %40 = vector.broadcast %cst_21 : f32 to vector<16x1xf32>
    %41 = arith.addf %39, %40 : vector<16x1xf32>
    %42 = math.rsqrt %41 : vector<16x1xf32>
    %43 = vector.broadcast %42 : vector<16x1xf32> to vector<16x32xf32>
    %44 = arith.mulf %34, %43 : vector<16x32xf32>
    %45 = vector.broadcast %27 : vector<1x32xf32> to vector<16x32xf32>
    %46 = arith.mulf %44, %45 : vector<16x32xf32>
    %47 = vector.broadcast %28 : vector<1x32xf32> to vector<16x32xf32>
    %48 = arith.addf %46, %47 : vector<16x32xf32>
    %c0_22 = arith.constant 0 : index
    %c0_23 = arith.constant 0 : index
    %c0_24 = arith.constant 0 : index
    %49 = vector.load %arg3[%c0_22, %c0_23, %c0_24] : memref<2x1x8xf32, #tpu.memory_space<vmem>>, vector<2x1x8xf32>
    %cst_25 = arith.constant 1.000000e+00 : f32
    %50 = vector.broadcast %cst_25 : f32 to vector<2x1x8xf32>
    %51 = arith.subf %50, %49 : vector<2x1x8xf32>
    %cst_26 = arith.constant -1.000000e+09 : f32
    %52 = vector.broadcast %cst_26 : f32 to vector<2x1x8xf32>
    %53 = arith.mulf %51, %52 : vector<2x1x8xf32>
    %c0_27 = arith.constant 0 : index
    %c0_28 = arith.constant 0 : index
    %c0_29 = arith.constant 0 : index
    %54 = vector.load %arg9[%c0_27, %c0_28, %c0_29] : memref<2x32x96xf32, #tpu.memory_space<vmem>>, vector<1x32x96xf32>
    %55 = vector.shape_cast %54 : vector<1x32x96xf32> to vector<32x96xf32>
    %c0_30 = arith.constant 0 : index
    %c0_31 = arith.constant 0 : index
    %c0_32 = arith.constant 0 : index
    %56 = vector.load %arg10[%c0_30, %c0_31, %c0_32] : memref<2x1x96xf32, #tpu.memory_space<vmem>>, vector<1x1x96xf32>
    %57 = vector.shape_cast %56 : vector<1x1x96xf32> to vector<1x96xf32>
    %c0_33 = arith.constant 0 : index
    %c0_34 = arith.constant 0 : index
    %c0_35 = arith.constant 0 : index
    %58 = vector.load %arg11[%c0_33, %c0_34, %c0_35] : memref<2x32x32xf32, #tpu.memory_space<vmem>>, vector<1x32x32xf32>
    %59 = vector.shape_cast %58 : vector<1x32x32xf32> to vector<32x32xf32>
    %c0_36 = arith.constant 0 : index
    %c0_37 = arith.constant 0 : index
    %c0_38 = arith.constant 0 : index
    %60 = vector.load %arg12[%c0_36, %c0_37, %c0_38] : memref<2x1x32xf32, #tpu.memory_space<vmem>>, vector<1x1x32xf32>
    %61 = vector.shape_cast %60 : vector<1x1x32xf32> to vector<1x32xf32>
    %c0_39 = arith.constant 0 : index
    %c0_40 = arith.constant 0 : index
    %c0_41 = arith.constant 0 : index
    %62 = vector.load %arg15[%c0_39, %c0_40, %c0_41] : memref<2x32x64xf32, #tpu.memory_space<vmem>>, vector<1x32x64xf32>
    %63 = vector.shape_cast %62 : vector<1x32x64xf32> to vector<32x64xf32>
    %c0_42 = arith.constant 0 : index
    %c0_43 = arith.constant 0 : index
    %c0_44 = arith.constant 0 : index
    %64 = vector.load %arg16[%c0_42, %c0_43, %c0_44] : memref<2x1x64xf32, #tpu.memory_space<vmem>>, vector<1x1x64xf32>
    %65 = vector.shape_cast %64 : vector<1x1x64xf32> to vector<1x64xf32>
    %c0_45 = arith.constant 0 : index
    %c0_46 = arith.constant 0 : index
    %c0_47 = arith.constant 0 : index
    %66 = vector.load %arg17[%c0_45, %c0_46, %c0_47] : memref<2x64x32xf32, #tpu.memory_space<vmem>>, vector<1x64x32xf32>
    %67 = vector.shape_cast %66 : vector<1x64x32xf32> to vector<64x32xf32>
    %c0_48 = arith.constant 0 : index
    %c0_49 = arith.constant 0 : index
    %c0_50 = arith.constant 0 : index
    %68 = vector.load %arg18[%c0_48, %c0_49, %c0_50] : memref<2x1x32xf32, #tpu.memory_space<vmem>>, vector<1x1x32xf32>
    %69 = vector.shape_cast %68 : vector<1x1x32xf32> to vector<1x32xf32>
    %cst_51 = arith.constant dense<0.000000e+00> : vector<16x96xf32>
    %70 = tpu.matmul %48, %55, %cst_51 {dimension_numbers = #tpu.dot_dimension_numbers<[1], [0], [0], [1], [0, 0, 1, 1], [], []>} : vector<16x32xf32>, vector<32x96xf32>, vector<16x96xf32> -> vector<16x96xf32>
    %71 = vector.broadcast %57 : vector<1x96xf32> to vector<16x96xf32>
    %72 = arith.addf %70, %71 : vector<16x96xf32>
    %73 = vector.shape_cast %72 : vector<16x96xf32> to vector<2x8x96xf32>
    %74 = vector.extract_strided_slice %73 {offsets = [0, 0, 0], sizes = [2, 8, 8], strides = [1, 1, 1]} : vector<2x8x96xf32> to vector<2x8x8xf32>
    %75 = vector.extract_strided_slice %73 {offsets = [0, 0, 32], sizes = [2, 8, 8], strides = [1, 1, 1]} : vector<2x8x96xf32> to vector<2x8x8xf32>
    %76 = vector.extract_strided_slice %73 {offsets = [0, 0, 64], sizes = [2, 8, 8], strides = [1, 1, 1]} : vector<2x8x96xf32> to vector<2x8x8xf32>
    "tpu.trace_start"() <{level = 10 : i32, message = "bqd,bkd->bqk"}> : () -> ()
    %cst_52 = arith.constant dense<0.000000e+00> : vector<2x8x8xf32>
    %77 = tpu.matmul %74, %75, %cst_52 {dimension_numbers = #tpu.dot_dimension_numbers<[2], [2], [1], [1], [0, 0, 0, 1, 1, 1], [0], [0]>} : vector<2x8x8xf32>, vector<2x8x8xf32>, vector<2x8x8xf32> -> vector<2x8x8xf32>
    "tpu.trace_stop"() : () -> ()
    %78 = vector.broadcast %53 : vector<2x1x8xf32> to vector<2x8x8xf32>
    %79 = arith.addf %77, %78 : vector<2x8x8xf32>
    %cst_53 = arith.constant dense<0xFF800000> : vector<2x8xf32>
    %80 = vector.multi_reduction <maximumf>, %79, %cst_53 [2] : vector<2x8x8xf32> to vector<2x8xf32>
    %81 = vector.shape_cast %80 : vector<2x8xf32> to vector<2x8x1xf32>
    %82 = vector.broadcast %81 : vector<2x8x1xf32> to vector<2x8x8xf32>
    %83 = arith.subf %79, %82 : vector<2x8x8xf32>
    %84 = math.exp %83 : vector<2x8x8xf32>
    %cst_54 = arith.constant dense<0.000000e+00> : vector<2x8xf32>
    %85 = vector.multi_reduction <add>, %84, %cst_54 [2] : vector<2x8x8xf32> to vector<2x8xf32>
    %86 = vector.shape_cast %85 : vector<2x8xf32> to vector<2x8x1xf32>
    %87 = tpu.reciprocal %86 {approx = true} : vector<2x8x1xf32> -> vector<2x8x1xf32>
    %88 = vector.broadcast %87 : vector<2x8x1xf32> to vector<2x8x8xf32>
    %89 = arith.mulf %84, %88 : vector<2x8x8xf32>
    "tpu.trace_start"() <{level = 10 : i32, message = "bqk,bkd->bqd"}> : () -> ()
    %cst_55 = arith.constant dense<0.000000e+00> : vector<2x8x8xf32>
    %90 = tpu.matmul %89, %76, %cst_55 {dimension_numbers = #tpu.dot_dimension_numbers<[2], [1], [1], [2], [0, 0, 0, 1, 1, 2], [0], [0]>} : vector<2x8x8xf32>, vector<2x8x8xf32>, vector<2x8x8xf32> -> vector<2x8x8xf32>
    "tpu.trace_stop"() : () -> ()
    %91 = vector.shape_cast %90 : vector<2x8x8xf32> to vector<16x8xf32>
    %92 = vector.extract_strided_slice %59 {offsets = [0, 0], sizes = [8, 32], strides = [1, 1]} : vector<32x32xf32> to vector<8x32xf32>
    %cst_56 = arith.constant dense<0.000000e+00> : vector<16x32xf32>
    %93 = tpu.matmul %91, %92, %cst_56 {dimension_numbers = #tpu.dot_dimension_numbers<[1], [0], [0], [1], [0, 0, 1, 1], [], []>} : vector<16x8xf32>, vector<8x32xf32>, vector<16x32xf32> -> vector<16x32xf32>
    %94 = vector.extract_strided_slice %73 {offsets = [0, 0, 8], sizes = [2, 8, 8], strides = [1, 1, 1]} : vector<2x8x96xf32> to vector<2x8x8xf32>
    %95 = vector.extract_strided_slice %73 {offsets = [0, 0, 40], sizes = [2, 8, 8], strides = [1, 1, 1]} : vector<2x8x96xf32> to vector<2x8x8xf32>
    %96 = vector.extract_strided_slice %73 {offsets = [0, 0, 72], sizes = [2, 8, 8], strides = [1, 1, 1]} : vector<2x8x96xf32> to vector<2x8x8xf32>
    "tpu.trace_start"() <{level = 10 : i32, message = "bqd,bkd->bqk"}> : () -> ()
    %cst_57 = arith.constant dense<0.000000e+00> : vector<2x8x8xf32>
    %97 = tpu.matmul %94, %95, %cst_57 {dimension_numbers = #tpu.dot_dimension_numbers<[2], [2], [1], [1], [0, 0, 0, 1, 1, 1], [0], [0]>} : vector<2x8x8xf32>, vector<2x8x8xf32>, vector<2x8x8xf32> -> vector<2x8x8xf32>
    "tpu.trace_stop"() : () -> ()
    %98 = vector.broadcast %53 : vector<2x1x8xf32> to vector<2x8x8xf32>
    %99 = arith.addf %97, %98 : vector<2x8x8xf32>
    %cst_58 = arith.constant dense<0xFF800000> : vector<2x8xf32>
    %100 = vector.multi_reduction <maximumf>, %99, %cst_58 [2] : vector<2x8x8xf32> to vector<2x8xf32>
    %101 = vector.shape_cast %100 : vector<2x8xf32> to vector<2x8x1xf32>
    %102 = vector.broadcast %101 : vector<2x8x1xf32> to vector<2x8x8xf32>
    %103 = arith.subf %99, %102 : vector<2x8x8xf32>
    %104 = math.exp %103 : vector<2x8x8xf32>
    %cst_59 = arith.constant dense<0.000000e+00> : vector<2x8xf32>
    %105 = vector.multi_reduction <add>, %104, %cst_59 [2] : vector<2x8x8xf32> to vector<2x8xf32>
    %106 = vector.shape_cast %105 : vector<2x8xf32> to vector<2x8x1xf32>
    %107 = tpu.reciprocal %106 {approx = true} : vector<2x8x1xf32> -> vector<2x8x1xf32>
    %108 = vector.broadcast %107 : vector<2x8x1xf32> to vector<2x8x8xf32>
    %109 = arith.mulf %104, %108 : vector<2x8x8xf32>
    "tpu.trace_start"() <{level = 10 : i32, message = "bqk,bkd->bqd"}> : () -> ()
    %cst_60 = arith.constant dense<0.000000e+00> : vector<2x8x8xf32>
    %110 = tpu.matmul %109, %96, %cst_60 {dimension_numbers = #tpu.dot_dimension_numbers<[2], [1], [1], [2], [0, 0, 0, 1, 1, 2], [0], [0]>} : vector<2x8x8xf32>, vector<2x8x8xf32>, vector<2x8x8xf32> -> vector<2x8x8xf32>
    "tpu.trace_stop"() : () -> ()
    %111 = vector.shape_cast %110 : vector<2x8x8xf32> to vector<16x8xf32>
    %112 = vector.extract_strided_slice %59 {offsets = [8, 0], sizes = [8, 32], strides = [1, 1]} : vector<32x32xf32> to vector<8x32xf32>
    %cst_61 = arith.constant dense<0.000000e+00> : vector<16x32xf32>
    %113 = tpu.matmul %111, %112, %cst_61 {dimension_numbers = #tpu.dot_dimension_numbers<[1], [0], [0], [1], [0, 0, 1, 1], [], []>} : vector<16x8xf32>, vector<8x32xf32>, vector<16x32xf32> -> vector<16x32xf32>
    %114 = arith.addf %93, %113 : vector<16x32xf32>
    %115 = vector.extract_strided_slice %73 {offsets = [0, 0, 16], sizes = [2, 8, 8], strides = [1, 1, 1]} : vector<2x8x96xf32> to vector<2x8x8xf32>
    %116 = vector.extract_strided_slice %73 {offsets = [0, 0, 48], sizes = [2, 8, 8], strides = [1, 1, 1]} : vector<2x8x96xf32> to vector<2x8x8xf32>
    %117 = vector.extract_strided_slice %73 {offsets = [0, 0, 80], sizes = [2, 8, 8], strides = [1, 1, 1]} : vector<2x8x96xf32> to vector<2x8x8xf32>
    "tpu.trace_start"() <{level = 10 : i32, message = "bqd,bkd->bqk"}> : () -> ()
    %cst_62 = arith.constant dense<0.000000e+00> : vector<2x8x8xf32>
    %118 = tpu.matmul %115, %116, %cst_62 {dimension_numbers = #tpu.dot_dimension_numbers<[2], [2], [1], [1], [0, 0, 0, 1, 1, 1], [0], [0]>} : vector<2x8x8xf32>, vector<2x8x8xf32>, vector<2x8x8xf32> -> vector<2x8x8xf32>
    "tpu.trace_stop"() : () -> ()
    %119 = vector.broadcast %53 : vector<2x1x8xf32> to vector<2x8x8xf32>
    %120 = arith.addf %118, %119 : vector<2x8x8xf32>
    %cst_63 = arith.constant dense<0xFF800000> : vector<2x8xf32>
    %121 = vector.multi_reduction <maximumf>, %120, %cst_63 [2] : vector<2x8x8xf32> to vector<2x8xf32>
    %122 = vector.shape_cast %121 : vector<2x8xf32> to vector<2x8x1xf32>
    %123 = vector.broadcast %122 : vector<2x8x1xf32> to vector<2x8x8xf32>
    %124 = arith.subf %120, %123 : vector<2x8x8xf32>
    %125 = math.exp %124 : vector<2x8x8xf32>
    %cst_64 = arith.constant dense<0.000000e+00> : vector<2x8xf32>
    %126 = vector.multi_reduction <add>, %125, %cst_64 [2] : vector<2x8x8xf32> to vector<2x8xf32>
    %127 = vector.shape_cast %126 : vector<2x8xf32> to vector<2x8x1xf32>
    %128 = tpu.reciprocal %127 {approx = true} : vector<2x8x1xf32> -> vector<2x8x1xf32>
    %129 = vector.broadcast %128 : vector<2x8x1xf32> to vector<2x8x8xf32>
    %130 = arith.mulf %125, %129 : vector<2x8x8xf32>
    "tpu.trace_start"() <{level = 10 : i32, message = "bqk,bkd->bqd"}> : () -> ()
    %cst_65 = arith.constant dense<0.000000e+00> : vector<2x8x8xf32>
    %131 = tpu.matmul %130, %117, %cst_65 {dimension_numbers = #tpu.dot_dimension_numbers<[2], [1], [1], [2], [0, 0, 0, 1, 1, 2], [0], [0]>} : vector<2x8x8xf32>, vector<2x8x8xf32>, vector<2x8x8xf32> -> vector<2x8x8xf32>
    "tpu.trace_stop"() : () -> ()
    %132 = vector.shape_cast %131 : vector<2x8x8xf32> to vector<16x8xf32>
    %133 = vector.extract_strided_slice %59 {offsets = [16, 0], sizes = [8, 32], strides = [1, 1]} : vector<32x32xf32> to vector<8x32xf32>
    %cst_66 = arith.constant dense<0.000000e+00> : vector<16x32xf32>
    %134 = tpu.matmul %132, %133, %cst_66 {dimension_numbers = #tpu.dot_dimension_numbers<[1], [0], [0], [1], [0, 0, 1, 1], [], []>} : vector<16x8xf32>, vector<8x32xf32>, vector<16x32xf32> -> vector<16x32xf32>
    %135 = arith.addf %114, %134 : vector<16x32xf32>
    %136 = vector.extract_strided_slice %73 {offsets = [0, 0, 24], sizes = [2, 8, 8], strides = [1, 1, 1]} : vector<2x8x96xf32> to vector<2x8x8xf32>
    %137 = vector.extract_strided_slice %73 {offsets = [0, 0, 56], sizes = [2, 8, 8], strides = [1, 1, 1]} : vector<2x8x96xf32> to vector<2x8x8xf32>
    %138 = vector.extract_strided_slice %73 {offsets = [0, 0, 88], sizes = [2, 8, 8], strides = [1, 1, 1]} : vector<2x8x96xf32> to vector<2x8x8xf32>
    "tpu.trace_start"() <{level = 10 : i32, message = "bqd,bkd->bqk"}> : () -> ()
    %cst_67 = arith.constant dense<0.000000e+00> : vector<2x8x8xf32>
    %139 = tpu.matmul %136, %137, %cst_67 {dimension_numbers = #tpu.dot_dimension_numbers<[2], [2], [1], [1], [0, 0, 0, 1, 1, 1], [0], [0]>} : vector<2x8x8xf32>, vector<2x8x8xf32>, vector<2x8x8xf32> -> vector<2x8x8xf32>
    "tpu.trace_stop"() : () -> ()
    %140 = vector.broadcast %53 : vector<2x1x8xf32> to vector<2x8x8xf32>
    %141 = arith.addf %139, %140 : vector<2x8x8xf32>
    %cst_68 = arith.constant dense<0xFF800000> : vector<2x8xf32>
    %142 = vector.multi_reduction <maximumf>, %141, %cst_68 [2] : vector<2x8x8xf32> to vector<2x8xf32>
    %143 = vector.shape_cast %142 : vector<2x8xf32> to vector<2x8x1xf32>
    %144 = vector.broadcast %143 : vector<2x8x1xf32> to vector<2x8x8xf32>
    %145 = arith.subf %141, %144 : vector<2x8x8xf32>
    %146 = math.exp %145 : vector<2x8x8xf32>
    %cst_69 = arith.constant dense<0.000000e+00> : vector<2x8xf32>
    %147 = vector.multi_reduction <add>, %146, %cst_69 [2] : vector<2x8x8xf32> to vector<2x8xf32>
    %148 = vector.shape_cast %147 : vector<2x8xf32> to vector<2x8x1xf32>
    %149 = tpu.reciprocal %148 {approx = true} : vector<2x8x1xf32> -> vector<2x8x1xf32>
    %150 = vector.broadcast %149 : vector<2x8x1xf32> to vector<2x8x8xf32>
    %151 = arith.mulf %146, %150 : vector<2x8x8xf32>
    "tpu.trace_start"() <{level = 10 : i32, message = "bqk,bkd->bqd"}> : () -> ()
    %cst_70 = arith.constant dense<0.000000e+00> : vector<2x8x8xf32>
    %152 = tpu.matmul %151, %138, %cst_70 {dimension_numbers = #tpu.dot_dimension_numbers<[2], [1], [1], [2], [0, 0, 0, 1, 1, 2], [0], [0]>} : vector<2x8x8xf32>, vector<2x8x8xf32>, vector<2x8x8xf32> -> vector<2x8x8xf32>
    "tpu.trace_stop"() : () -> ()
    %153 = vector.shape_cast %152 : vector<2x8x8xf32> to vector<16x8xf32>
    %154 = vector.extract_strided_slice %59 {offsets = [24, 0], sizes = [8, 32], strides = [1, 1]} : vector<32x32xf32> to vector<8x32xf32>
    %cst_71 = arith.constant dense<0.000000e+00> : vector<16x32xf32>
    %155 = tpu.matmul %153, %154, %cst_71 {dimension_numbers = #tpu.dot_dimension_numbers<[1], [0], [0], [1], [0, 0, 1, 1], [], []>} : vector<16x8xf32>, vector<8x32xf32>, vector<16x32xf32> -> vector<16x32xf32>
    %156 = arith.addf %135, %155 : vector<16x32xf32>
    %157 = vector.broadcast %61 : vector<1x32xf32> to vector<16x32xf32>
    %158 = arith.addf %156, %157 : vector<16x32xf32>
    %159 = arith.addf %158, %48 : vector<16x32xf32>
    %c0_72 = arith.constant 0 : index
    %c0_73 = arith.constant 0 : index
    %c0_74 = arith.constant 0 : index
    %160 = vector.load %arg13[%c0_72, %c0_73, %c0_74] : memref<2x1x32xf32, #tpu.memory_space<vmem>>, vector<1x1x32xf32>
    %161 = vector.shape_cast %160 : vector<1x1x32xf32> to vector<1x32xf32>
    %c0_75 = arith.constant 0 : index
    %c0_76 = arith.constant 0 : index
    %c0_77 = arith.constant 0 : index
    %162 = vector.load %arg14[%c0_75, %c0_76, %c0_77] : memref<2x1x32xf32, #tpu.memory_space<vmem>>, vector<1x1x32xf32>
    %163 = vector.shape_cast %162 : vector<1x1x32xf32> to vector<1x32xf32>
    %cst_78 = arith.constant dense<0.000000e+00> : vector<16xf32>
    %164 = vector.multi_reduction <add>, %159, %cst_78 [1] : vector<16x32xf32> to vector<16xf32>
    %165 = vector.shape_cast %164 : vector<16xf32> to vector<16x1xf32>
    %cst_79 = arith.constant 3.200000e+01 : f32
    %166 = vector.broadcast %cst_79 : f32 to vector<16x1xf32>
    %167 = arith.divf %165, %166 : vector<16x1xf32>
    %168 = vector.broadcast %167 : vector<16x1xf32> to vector<16x32xf32>
    %169 = arith.subf %159, %168 : vector<16x32xf32>
    %170 = arith.mulf %169, %169 : vector<16x32xf32>
    %cst_80 = arith.constant dense<0.000000e+00> : vector<16xf32>
    %171 = vector.multi_reduction <add>, %170, %cst_80 [1] : vector<16x32xf32> to vector<16xf32>
    %172 = vector.shape_cast %171 : vector<16xf32> to vector<16x1xf32>
    %cst_81 = arith.constant 3.200000e+01 : f32
    %173 = vector.broadcast %cst_81 : f32 to vector<16x1xf32>
    %174 = arith.divf %172, %173 : vector<16x1xf32>
    %cst_82 = arith.constant 9.99999996E-13 : f32
    %175 = vector.broadcast %cst_82 : f32 to vector<16x1xf32>
    %176 = arith.addf %174, %175 : vector<16x1xf32>
    %177 = math.rsqrt %176 : vector<16x1xf32>
    %178 = vector.broadcast %177 : vector<16x1xf32> to vector<16x32xf32>
    %179 = arith.mulf %169, %178 : vector<16x32xf32>
    %180 = vector.broadcast %161 : vector<1x32xf32> to vector<16x32xf32>
    %181 = arith.mulf %179, %180 : vector<16x32xf32>
    %182 = vector.broadcast %163 : vector<1x32xf32> to vector<16x32xf32>
    %183 = arith.addf %181, %182 : vector<16x32xf32>
    %cst_83 = arith.constant dense<0.000000e+00> : vector<16x64xf32>
    %184 = tpu.matmul %183, %63, %cst_83 {dimension_numbers = #tpu.dot_dimension_numbers<[1], [0], [0], [1], [0, 0, 1, 1], [], []>} : vector<16x32xf32>, vector<32x64xf32>, vector<16x64xf32> -> vector<16x64xf32>
    %185 = vector.broadcast %65 : vector<1x64xf32> to vector<16x64xf32>
    %186 = arith.addf %184, %185 : vector<16x64xf32>
    %cst_84 = arith.constant 5.000000e-01 : f32
    %187 = vector.broadcast %cst_84 : f32 to vector<16x64xf32>
    %188 = arith.mulf %187, %186 : vector<16x64xf32>
    %cst_85 = arith.constant 4.471500e-02 : f32
    %189 = vector.broadcast %cst_85 : f32 to vector<16x64xf32>
    %190 = arith.mulf %189, %186 : vector<16x64xf32>
    %191 = arith.mulf %190, %186 : vector<16x64xf32>
    %192 = arith.mulf %191, %186 : vector<16x64xf32>
    %193 = arith.addf %186, %192 : vector<16x64xf32>
    %cst_86 = arith.constant 0.797884583 : f32
    %194 = vector.broadcast %cst_86 : f32 to vector<16x64xf32>
    %195 = arith.mulf %194, %193 : vector<16x64xf32>
    %196 = math.tanh %195 : vector<16x64xf32>
    %cst_87 = arith.constant 1.000000e+00 : f32
    %197 = vector.broadcast %cst_87 : f32 to vector<16x64xf32>
    %198 = arith.addf %197, %196 : vector<16x64xf32>
    %199 = arith.mulf %188, %198 : vector<16x64xf32>
    %cst_88 = arith.constant dense<0.000000e+00> : vector<16x32xf32>
    %200 = tpu.matmul %199, %67, %cst_88 {dimension_numbers = #tpu.dot_dimension_numbers<[1], [0], [0], [1], [0, 0, 1, 1], [], []>} : vector<16x64xf32>, vector<64x32xf32>, vector<16x32xf32> -> vector<16x32xf32>
    %201 = vector.broadcast %69 : vector<1x32xf32> to vector<16x32xf32>
    %202 = arith.addf %200, %201 : vector<16x32xf32>
    %203 = arith.addf %202, %183 : vector<16x32xf32>
    %c0_89 = arith.constant 0 : index
    %c0_90 = arith.constant 0 : index
    %c0_91 = arith.constant 0 : index
    %204 = vector.load %arg19[%c0_89, %c0_90, %c0_91] : memref<2x1x32xf32, #tpu.memory_space<vmem>>, vector<1x1x32xf32>
    %205 = vector.shape_cast %204 : vector<1x1x32xf32> to vector<1x32xf32>
    %c0_92 = arith.constant 0 : index
    %c0_93 = arith.constant 0 : index
    %c0_94 = arith.constant 0 : index
    %206 = vector.load %arg20[%c0_92, %c0_93, %c0_94] : memref<2x1x32xf32, #tpu.memory_space<vmem>>, vector<1x1x32xf32>
    %207 = vector.shape_cast %206 : vector<1x1x32xf32> to vector<1x32xf32>
    %cst_95 = arith.constant dense<0.000000e+00> : vector<16xf32>
    %208 = vector.multi_reduction <add>, %203, %cst_95 [1] : vector<16x32xf32> to vector<16xf32>
    %209 = vector.shape_cast %208 : vector<16xf32> to vector<16x1xf32>
    %cst_96 = arith.constant 3.200000e+01 : f32
    %210 = vector.broadcast %cst_96 : f32 to vector<16x1xf32>
    %211 = arith.divf %209, %210 : vector<16x1xf32>
    %212 = vector.broadcast %211 : vector<16x1xf32> to vector<16x32xf32>
    %213 = arith.subf %203, %212 : vector<16x32xf32>
    %214 = arith.mulf %213, %213 : vector<16x32xf32>
    %cst_97 = arith.constant dense<0.000000e+00> : vector<16xf32>
    %215 = vector.multi_reduction <add>, %214, %cst_97 [1] : vector<16x32xf32> to vector<16xf32>
    %216 = vector.shape_cast %215 : vector<16xf32> to vector<16x1xf32>
    %cst_98 = arith.constant 3.200000e+01 : f32
    %217 = vector.broadcast %cst_98 : f32 to vector<16x1xf32>
    %218 = arith.divf %216, %217 : vector<16x1xf32>
    %cst_99 = arith.constant 9.99999996E-13 : f32
    %219 = vector.broadcast %cst_99 : f32 to vector<16x1xf32>
    %220 = arith.addf %218, %219 : vector<16x1xf32>
    %221 = math.rsqrt %220 : vector<16x1xf32>
    %222 = vector.broadcast %221 : vector<16x1xf32> to vector<16x32xf32>
    %223 = arith.mulf %213, %222 : vector<16x32xf32>
    %224 = vector.broadcast %205 : vector<1x32xf32> to vector<16x32xf32>
    %225 = arith.mulf %223, %224 : vector<16x32xf32>
    %226 = vector.broadcast %207 : vector<1x32xf32> to vector<16x32xf32>
    %227 = arith.addf %225, %226 : vector<16x32xf32>
    %c1_100 = arith.constant 1 : index
    %c0_101 = arith.constant 0 : index
    %c0_102 = arith.constant 0 : index
    %228 = vector.load %arg9[%c1_100, %c0_101, %c0_102] : memref<2x32x96xf32, #tpu.memory_space<vmem>>, vector<1x32x96xf32>
    %229 = vector.shape_cast %228 : vector<1x32x96xf32> to vector<32x96xf32>
    %c1_103 = arith.constant 1 : index
    %c0_104 = arith.constant 0 : index
    %c0_105 = arith.constant 0 : index
    %230 = vector.load %arg10[%c1_103, %c0_104, %c0_105] : memref<2x1x96xf32, #tpu.memory_space<vmem>>, vector<1x1x96xf32>
    %231 = vector.shape_cast %230 : vector<1x1x96xf32> to vector<1x96xf32>
    %c1_106 = arith.constant 1 : index
    %c0_107 = arith.constant 0 : index
    %c0_108 = arith.constant 0 : index
    %232 = vector.load %arg11[%c1_106, %c0_107, %c0_108] : memref<2x32x32xf32, #tpu.memory_space<vmem>>, vector<1x32x32xf32>
    %233 = vector.shape_cast %232 : vector<1x32x32xf32> to vector<32x32xf32>
    %c1_109 = arith.constant 1 : index
    %c0_110 = arith.constant 0 : index
    %c0_111 = arith.constant 0 : index
    %234 = vector.load %arg12[%c1_109, %c0_110, %c0_111] : memref<2x1x32xf32, #tpu.memory_space<vmem>>, vector<1x1x32xf32>
    %235 = vector.shape_cast %234 : vector<1x1x32xf32> to vector<1x32xf32>
    %c1_112 = arith.constant 1 : index
    %c0_113 = arith.constant 0 : index
    %c0_114 = arith.constant 0 : index
    %236 = vector.load %arg15[%c1_112, %c0_113, %c0_114] : memref<2x32x64xf32, #tpu.memory_space<vmem>>, vector<1x32x64xf32>
    %237 = vector.shape_cast %236 : vector<1x32x64xf32> to vector<32x64xf32>
    %c1_115 = arith.constant 1 : index
    %c0_116 = arith.constant 0 : index
    %c0_117 = arith.constant 0 : index
    %238 = vector.load %arg16[%c1_115, %c0_116, %c0_117] : memref<2x1x64xf32, #tpu.memory_space<vmem>>, vector<1x1x64xf32>
    %239 = vector.shape_cast %238 : vector<1x1x64xf32> to vector<1x64xf32>
    %c1_118 = arith.constant 1 : index
    %c0_119 = arith.constant 0 : index
    %c0_120 = arith.constant 0 : index
    %240 = vector.load %arg17[%c1_118, %c0_119, %c0_120] : memref<2x64x32xf32, #tpu.memory_space<vmem>>, vector<1x64x32xf32>
    %241 = vector.shape_cast %240 : vector<1x64x32xf32> to vector<64x32xf32>
    %c1_121 = arith.constant 1 : index
    %c0_122 = arith.constant 0 : index
    %c0_123 = arith.constant 0 : index
    %242 = vector.load %arg18[%c1_121, %c0_122, %c0_123] : memref<2x1x32xf32, #tpu.memory_space<vmem>>, vector<1x1x32xf32>
    %243 = vector.shape_cast %242 : vector<1x1x32xf32> to vector<1x32xf32>
    %cst_124 = arith.constant dense<0.000000e+00> : vector<16x96xf32>
    %244 = tpu.matmul %227, %229, %cst_124 {dimension_numbers = #tpu.dot_dimension_numbers<[1], [0], [0], [1], [0, 0, 1, 1], [], []>} : vector<16x32xf32>, vector<32x96xf32>, vector<16x96xf32> -> vector<16x96xf32>
    %245 = vector.broadcast %231 : vector<1x96xf32> to vector<16x96xf32>
    %246 = arith.addf %244, %245 : vector<16x96xf32>
    %247 = vector.shape_cast %246 : vector<16x96xf32> to vector<2x8x96xf32>
    %248 = vector.extract_strided_slice %247 {offsets = [0, 0, 0], sizes = [2, 8, 8], strides = [1, 1, 1]} : vector<2x8x96xf32> to vector<2x8x8xf32>
    %249 = vector.extract_strided_slice %247 {offsets = [0, 0, 32], sizes = [2, 8, 8], strides = [1, 1, 1]} : vector<2x8x96xf32> to vector<2x8x8xf32>
    %250 = vector.extract_strided_slice %247 {offsets = [0, 0, 64], sizes = [2, 8, 8], strides = [1, 1, 1]} : vector<2x8x96xf32> to vector<2x8x8xf32>
    "tpu.trace_start"() <{level = 10 : i32, message = "bqd,bkd->bqk"}> : () -> ()
    %cst_125 = arith.constant dense<0.000000e+00> : vector<2x8x8xf32>
    %251 = tpu.matmul %248, %249, %cst_125 {dimension_numbers = #tpu.dot_dimension_numbers<[2], [2], [1], [1], [0, 0, 0, 1, 1, 1], [0], [0]>} : vector<2x8x8xf32>, vector<2x8x8xf32>, vector<2x8x8xf32> -> vector<2x8x8xf32>
    "tpu.trace_stop"() : () -> ()
    %252 = vector.broadcast %53 : vector<2x1x8xf32> to vector<2x8x8xf32>
    %253 = arith.addf %251, %252 : vector<2x8x8xf32>
    %cst_126 = arith.constant dense<0xFF800000> : vector<2x8xf32>
    %254 = vector.multi_reduction <maximumf>, %253, %cst_126 [2] : vector<2x8x8xf32> to vector<2x8xf32>
    %255 = vector.shape_cast %254 : vector<2x8xf32> to vector<2x8x1xf32>
    %256 = vector.broadcast %255 : vector<2x8x1xf32> to vector<2x8x8xf32>
    %257 = arith.subf %253, %256 : vector<2x8x8xf32>
    %258 = math.exp %257 : vector<2x8x8xf32>
    %cst_127 = arith.constant dense<0.000000e+00> : vector<2x8xf32>
    %259 = vector.multi_reduction <add>, %258, %cst_127 [2] : vector<2x8x8xf32> to vector<2x8xf32>
    %260 = vector.shape_cast %259 : vector<2x8xf32> to vector<2x8x1xf32>
    %261 = tpu.reciprocal %260 {approx = true} : vector<2x8x1xf32> -> vector<2x8x1xf32>
    %262 = vector.broadcast %261 : vector<2x8x1xf32> to vector<2x8x8xf32>
    %263 = arith.mulf %258, %262 : vector<2x8x8xf32>
    "tpu.trace_start"() <{level = 10 : i32, message = "bqk,bkd->bqd"}> : () -> ()
    %cst_128 = arith.constant dense<0.000000e+00> : vector<2x8x8xf32>
    %264 = tpu.matmul %263, %250, %cst_128 {dimension_numbers = #tpu.dot_dimension_numbers<[2], [1], [1], [2], [0, 0, 0, 1, 1, 2], [0], [0]>} : vector<2x8x8xf32>, vector<2x8x8xf32>, vector<2x8x8xf32> -> vector<2x8x8xf32>
    "tpu.trace_stop"() : () -> ()
    %265 = vector.shape_cast %264 : vector<2x8x8xf32> to vector<16x8xf32>
    %266 = vector.extract_strided_slice %233 {offsets = [0, 0], sizes = [8, 32], strides = [1, 1]} : vector<32x32xf32> to vector<8x32xf32>
    %cst_129 = arith.constant dense<0.000000e+00> : vector<16x32xf32>
    %267 = tpu.matmul %265, %266, %cst_129 {dimension_numbers = #tpu.dot_dimension_numbers<[1], [0], [0], [1], [0, 0, 1, 1], [], []>} : vector<16x8xf32>, vector<8x32xf32>, vector<16x32xf32> -> vector<16x32xf32>
    %268 = vector.extract_strided_slice %247 {offsets = [0, 0, 8], sizes = [2, 8, 8], strides = [1, 1, 1]} : vector<2x8x96xf32> to vector<2x8x8xf32>
    %269 = vector.extract_strided_slice %247 {offsets = [0, 0, 40], sizes = [2, 8, 8], strides = [1, 1, 1]} : vector<2x8x96xf32> to vector<2x8x8xf32>
    %270 = vector.extract_strided_slice %247 {offsets = [0, 0, 72], sizes = [2, 8, 8], strides = [1, 1, 1]} : vector<2x8x96xf32> to vector<2x8x8xf32>
    "tpu.trace_start"() <{level = 10 : i32, message = "bqd,bkd->bqk"}> : () -> ()
    %cst_130 = arith.constant dense<0.000000e+00> : vector<2x8x8xf32>
    %271 = tpu.matmul %268, %269, %cst_130 {dimension_numbers = #tpu.dot_dimension_numbers<[2], [2], [1], [1], [0, 0, 0, 1, 1, 1], [0], [0]>} : vector<2x8x8xf32>, vector<2x8x8xf32>, vector<2x8x8xf32> -> vector<2x8x8xf32>
    "tpu.trace_stop"() : () -> ()
    %272 = vector.broadcast %53 : vector<2x1x8xf32> to vector<2x8x8xf32>
    %273 = arith.addf %271, %272 : vector<2x8x8xf32>
    %cst_131 = arith.constant dense<0xFF800000> : vector<2x8xf32>
    %274 = vector.multi_reduction <maximumf>, %273, %cst_131 [2] : vector<2x8x8xf32> to vector<2x8xf32>
    %275 = vector.shape_cast %274 : vector<2x8xf32> to vector<2x8x1xf32>
    %276 = vector.broadcast %275 : vector<2x8x1xf32> to vector<2x8x8xf32>
    %277 = arith.subf %273, %276 : vector<2x8x8xf32>
    %278 = math.exp %277 : vector<2x8x8xf32>
    %cst_132 = arith.constant dense<0.000000e+00> : vector<2x8xf32>
    %279 = vector.multi_reduction <add>, %278, %cst_132 [2] : vector<2x8x8xf32> to vector<2x8xf32>
    %280 = vector.shape_cast %279 : vector<2x8xf32> to vector<2x8x1xf32>
    %281 = tpu.reciprocal %280 {approx = true} : vector<2x8x1xf32> -> vector<2x8x1xf32>
    %282 = vector.broadcast %281 : vector<2x8x1xf32> to vector<2x8x8xf32>
    %283 = arith.mulf %278, %282 : vector<2x8x8xf32>
    "tpu.trace_start"() <{level = 10 : i32, message = "bqk,bkd->bqd"}> : () -> ()
    %cst_133 = arith.constant dense<0.000000e+00> : vector<2x8x8xf32>
    %284 = tpu.matmul %283, %270, %cst_133 {dimension_numbers = #tpu.dot_dimension_numbers<[2], [1], [1], [2], [0, 0, 0, 1, 1, 2], [0], [0]>} : vector<2x8x8xf32>, vector<2x8x8xf32>, vector<2x8x8xf32> -> vector<2x8x8xf32>
    "tpu.trace_stop"() : () -> ()
    %285 = vector.shape_cast %284 : vector<2x8x8xf32> to vector<16x8xf32>
    %286 = vector.extract_strided_slice %233 {offsets = [8, 0], sizes = [8, 32], strides = [1, 1]} : vector<32x32xf32> to vector<8x32xf32>
    %cst_134 = arith.constant dense<0.000000e+00> : vector<16x32xf32>
    %287 = tpu.matmul %285, %286, %cst_134 {dimension_numbers = #tpu.dot_dimension_numbers<[1], [0], [0], [1], [0, 0, 1, 1], [], []>} : vector<16x8xf32>, vector<8x32xf32>, vector<16x32xf32> -> vector<16x32xf32>
    %288 = arith.addf %267, %287 : vector<16x32xf32>
    %289 = vector.extract_strided_slice %247 {offsets = [0, 0, 16], sizes = [2, 8, 8], strides = [1, 1, 1]} : vector<2x8x96xf32> to vector<2x8x8xf32>
    %290 = vector.extract_strided_slice %247 {offsets = [0, 0, 48], sizes = [2, 8, 8], strides = [1, 1, 1]} : vector<2x8x96xf32> to vector<2x8x8xf32>
    %291 = vector.extract_strided_slice %247 {offsets = [0, 0, 80], sizes = [2, 8, 8], strides = [1, 1, 1]} : vector<2x8x96xf32> to vector<2x8x8xf32>
    "tpu.trace_start"() <{level = 10 : i32, message = "bqd,bkd->bqk"}> : () -> ()
    %cst_135 = arith.constant dense<0.000000e+00> : vector<2x8x8xf32>
    %292 = tpu.matmul %289, %290, %cst_135 {dimension_numbers = #tpu.dot_dimension_numbers<[2], [2], [1], [1], [0, 0, 0, 1, 1, 1], [0], [0]>} : vector<2x8x8xf32>, vector<2x8x8xf32>, vector<2x8x8xf32> -> vector<2x8x8xf32>
    "tpu.trace_stop"() : () -> ()
    %293 = vector.broadcast %53 : vector<2x1x8xf32> to vector<2x8x8xf32>
    %294 = arith.addf %292, %293 : vector<2x8x8xf32>
    %cst_136 = arith.constant dense<0xFF800000> : vector<2x8xf32>
    %295 = vector.multi_reduction <maximumf>, %294, %cst_136 [2] : vector<2x8x8xf32> to vector<2x8xf32>
    %296 = vector.shape_cast %295 : vector<2x8xf32> to vector<2x8x1xf32>
    %297 = vector.broadcast %296 : vector<2x8x1xf32> to vector<2x8x8xf32>
    %298 = arith.subf %294, %297 : vector<2x8x8xf32>
    %299 = math.exp %298 : vector<2x8x8xf32>
    %cst_137 = arith.constant dense<0.000000e+00> : vector<2x8xf32>
    %300 = vector.multi_reduction <add>, %299, %cst_137 [2] : vector<2x8x8xf32> to vector<2x8xf32>
    %301 = vector.shape_cast %300 : vector<2x8xf32> to vector<2x8x1xf32>
    %302 = tpu.reciprocal %301 {approx = true} : vector<2x8x1xf32> -> vector<2x8x1xf32>
    %303 = vector.broadcast %302 : vector<2x8x1xf32> to vector<2x8x8xf32>
    %304 = arith.mulf %299, %303 : vector<2x8x8xf32>
    "tpu.trace_start"() <{level = 10 : i32, message = "bqk,bkd->bqd"}> : () -> ()
    %cst_138 = arith.constant dense<0.000000e+00> : vector<2x8x8xf32>
    %305 = tpu.matmul %304, %291, %cst_138 {dimension_numbers = #tpu.dot_dimension_numbers<[2], [1], [1], [2], [0, 0, 0, 1, 1, 2], [0], [0]>} : vector<2x8x8xf32>, vector<2x8x8xf32>, vector<2x8x8xf32> -> vector<2x8x8xf32>
    "tpu.trace_stop"() : () -> ()
    %306 = vector.shape_cast %305 : vector<2x8x8xf32> to vector<16x8xf32>
    %307 = vector.extract_strided_slice %233 {offsets = [16, 0], sizes = [8, 32], strides = [1, 1]} : vector<32x32xf32> to vector<8x32xf32>
    %cst_139 = arith.constant dense<0.000000e+00> : vector<16x32xf32>
    %308 = tpu.matmul %306, %307, %cst_139 {dimension_numbers = #tpu.dot_dimension_numbers<[1], [0], [0], [1], [0, 0, 1, 1], [], []>} : vector<16x8xf32>, vector<8x32xf32>, vector<16x32xf32> -> vector<16x32xf32>
    %309 = arith.addf %288, %308 : vector<16x32xf32>
    %310 = vector.extract_strided_slice %247 {offsets = [0, 0, 24], sizes = [2, 8, 8], strides = [1, 1, 1]} : vector<2x8x96xf32> to vector<2x8x8xf32>
    %311 = vector.extract_strided_slice %247 {offsets = [0, 0, 56], sizes = [2, 8, 8], strides = [1, 1, 1]} : vector<2x8x96xf32> to vector<2x8x8xf32>
    %312 = vector.extract_strided_slice %247 {offsets = [0, 0, 88], sizes = [2, 8, 8], strides = [1, 1, 1]} : vector<2x8x96xf32> to vector<2x8x8xf32>
    "tpu.trace_start"() <{level = 10 : i32, message = "bqd,bkd->bqk"}> : () -> ()
    %cst_140 = arith.constant dense<0.000000e+00> : vector<2x8x8xf32>
    %313 = tpu.matmul %310, %311, %cst_140 {dimension_numbers = #tpu.dot_dimension_numbers<[2], [2], [1], [1], [0, 0, 0, 1, 1, 1], [0], [0]>} : vector<2x8x8xf32>, vector<2x8x8xf32>, vector<2x8x8xf32> -> vector<2x8x8xf32>
    "tpu.trace_stop"() : () -> ()
    %314 = vector.broadcast %53 : vector<2x1x8xf32> to vector<2x8x8xf32>
    %315 = arith.addf %313, %314 : vector<2x8x8xf32>
    %cst_141 = arith.constant dense<0xFF800000> : vector<2x8xf32>
    %316 = vector.multi_reduction <maximumf>, %315, %cst_141 [2] : vector<2x8x8xf32> to vector<2x8xf32>
    %317 = vector.shape_cast %316 : vector<2x8xf32> to vector<2x8x1xf32>
    %318 = vector.broadcast %317 : vector<2x8x1xf32> to vector<2x8x8xf32>
    %319 = arith.subf %315, %318 : vector<2x8x8xf32>
    %320 = math.exp %319 : vector<2x8x8xf32>
    %cst_142 = arith.constant dense<0.000000e+00> : vector<2x8xf32>
    %321 = vector.multi_reduction <add>, %320, %cst_142 [2] : vector<2x8x8xf32> to vector<2x8xf32>
    %322 = vector.shape_cast %321 : vector<2x8xf32> to vector<2x8x1xf32>
    %323 = tpu.reciprocal %322 {approx = true} : vector<2x8x1xf32> -> vector<2x8x1xf32>
    %324 = vector.broadcast %323 : vector<2x8x1xf32> to vector<2x8x8xf32>
    %325 = arith.mulf %320, %324 : vector<2x8x8xf32>
    "tpu.trace_start"() <{level = 10 : i32, message = "bqk,bkd->bqd"}> : () -> ()
    %cst_143 = arith.constant dense<0.000000e+00> : vector<2x8x8xf32>
    %326 = tpu.matmul %325, %312, %cst_143 {dimension_numbers = #tpu.dot_dimension_numbers<[2], [1], [1], [2], [0, 0, 0, 1, 1, 2], [0], [0]>} : vector<2x8x8xf32>, vector<2x8x8xf32>, vector<2x8x8xf32> -> vector<2x8x8xf32>
    "tpu.trace_stop"() : () -> ()
    %327 = vector.shape_cast %326 : vector<2x8x8xf32> to vector<16x8xf32>
    %328 = vector.extract_strided_slice %233 {offsets = [24, 0], sizes = [8, 32], strides = [1, 1]} : vector<32x32xf32> to vector<8x32xf32>
    %cst_144 = arith.constant dense<0.000000e+00> : vector<16x32xf32>
    %329 = tpu.matmul %327, %328, %cst_144 {dimension_numbers = #tpu.dot_dimension_numbers<[1], [0], [0], [1], [0, 0, 1, 1], [], []>} : vector<16x8xf32>, vector<8x32xf32>, vector<16x32xf32> -> vector<16x32xf32>
    %330 = arith.addf %309, %329 : vector<16x32xf32>
    %331 = vector.broadcast %235 : vector<1x32xf32> to vector<16x32xf32>
    %332 = arith.addf %330, %331 : vector<16x32xf32>
    %333 = arith.addf %332, %227 : vector<16x32xf32>
    %c1_145 = arith.constant 1 : index
    %c0_146 = arith.constant 0 : index
    %c0_147 = arith.constant 0 : index
    %334 = vector.load %arg13[%c1_145, %c0_146, %c0_147] : memref<2x1x32xf32, #tpu.memory_space<vmem>>, vector<1x1x32xf32>
    %335 = vector.shape_cast %334 : vector<1x1x32xf32> to vector<1x32xf32>
    %c1_148 = arith.constant 1 : index
    %c0_149 = arith.constant 0 : index
    %c0_150 = arith.constant 0 : index
    %336 = vector.load %arg14[%c1_148, %c0_149, %c0_150] : memref<2x1x32xf32, #tpu.memory_space<vmem>>, vector<1x1x32xf32>
    %337 = vector.shape_cast %336 : vector<1x1x32xf32> to vector<1x32xf32>
    %cst_151 = arith.constant dense<0.000000e+00> : vector<16xf32>
    %338 = vector.multi_reduction <add>, %333, %cst_151 [1] : vector<16x32xf32> to vector<16xf32>
    %339 = vector.shape_cast %338 : vector<16xf32> to vector<16x1xf32>
    %cst_152 = arith.constant 3.200000e+01 : f32
    %340 = vector.broadcast %cst_152 : f32 to vector<16x1xf32>
    %341 = arith.divf %339, %340 : vector<16x1xf32>
    %342 = vector.broadcast %341 : vector<16x1xf32> to vector<16x32xf32>
    %343 = arith.subf %333, %342 : vector<16x32xf32>
    %344 = arith.mulf %343, %343 : vector<16x32xf32>
    %cst_153 = arith.constant dense<0.000000e+00> : vector<16xf32>
    %345 = vector.multi_reduction <add>, %344, %cst_153 [1] : vector<16x32xf32> to vector<16xf32>
    %346 = vector.shape_cast %345 : vector<16xf32> to vector<16x1xf32>
    %cst_154 = arith.constant 3.200000e+01 : f32
    %347 = vector.broadcast %cst_154 : f32 to vector<16x1xf32>
    %348 = arith.divf %346, %347 : vector<16x1xf32>
    %cst_155 = arith.constant 9.99999996E-13 : f32
    %349 = vector.broadcast %cst_155 : f32 to vector<16x1xf32>
    %350 = arith.addf %348, %349 : vector<16x1xf32>
    %351 = math.rsqrt %350 : vector<16x1xf32>
    %352 = vector.broadcast %351 : vector<16x1xf32> to vector<16x32xf32>
    %353 = arith.mulf %343, %352 : vector<16x32xf32>
    %354 = vector.broadcast %335 : vector<1x32xf32> to vector<16x32xf32>
    %355 = arith.mulf %353, %354 : vector<16x32xf32>
    %356 = vector.broadcast %337 : vector<1x32xf32> to vector<16x32xf32>
    %357 = arith.addf %355, %356 : vector<16x32xf32>
    %cst_156 = arith.constant dense<0.000000e+00> : vector<16x64xf32>
    %358 = tpu.matmul %357, %237, %cst_156 {dimension_numbers = #tpu.dot_dimension_numbers<[1], [0], [0], [1], [0, 0, 1, 1], [], []>} : vector<16x32xf32>, vector<32x64xf32>, vector<16x64xf32> -> vector<16x64xf32>
    %359 = vector.broadcast %239 : vector<1x64xf32> to vector<16x64xf32>
    %360 = arith.addf %358, %359 : vector<16x64xf32>
    %cst_157 = arith.constant 5.000000e-01 : f32
    %361 = vector.broadcast %cst_157 : f32 to vector<16x64xf32>
    %362 = arith.mulf %361, %360 : vector<16x64xf32>
    %cst_158 = arith.constant 4.471500e-02 : f32
    %363 = vector.broadcast %cst_158 : f32 to vector<16x64xf32>
    %364 = arith.mulf %363, %360 : vector<16x64xf32>
    %365 = arith.mulf %364, %360 : vector<16x64xf32>
    %366 = arith.mulf %365, %360 : vector<16x64xf32>
    %367 = arith.addf %360, %366 : vector<16x64xf32>
    %cst_159 = arith.constant 0.797884583 : f32
    %368 = vector.broadcast %cst_159 : f32 to vector<16x64xf32>
    %369 = arith.mulf %368, %367 : vector<16x64xf32>
    %370 = math.tanh %369 : vector<16x64xf32>
    %cst_160 = arith.constant 1.000000e+00 : f32
    %371 = vector.broadcast %cst_160 : f32 to vector<16x64xf32>
    %372 = arith.addf %371, %370 : vector<16x64xf32>
    %373 = arith.mulf %362, %372 : vector<16x64xf32>
    %cst_161 = arith.constant dense<0.000000e+00> : vector<16x32xf32>
    %374 = tpu.matmul %373, %241, %cst_161 {dimension_numbers = #tpu.dot_dimension_numbers<[1], [0], [0], [1], [0, 0, 1, 1], [], []>} : vector<16x64xf32>, vector<64x32xf32>, vector<16x32xf32> -> vector<16x32xf32>
    %375 = vector.broadcast %243 : vector<1x32xf32> to vector<16x32xf32>
    %376 = arith.addf %374, %375 : vector<16x32xf32>
    %377 = arith.addf %376, %357 : vector<16x32xf32>
    %c1_162 = arith.constant 1 : index
    %c0_163 = arith.constant 0 : index
    %c0_164 = arith.constant 0 : index
    %378 = vector.load %arg19[%c1_162, %c0_163, %c0_164] : memref<2x1x32xf32, #tpu.memory_space<vmem>>, vector<1x1x32xf32>
    %379 = vector.shape_cast %378 : vector<1x1x32xf32> to vector<1x32xf32>
    %c1_165 = arith.constant 1 : index
    %c0_166 = arith.constant 0 : index
    %c0_167 = arith.constant 0 : index
    %380 = vector.load %arg20[%c1_165, %c0_166, %c0_167] : memref<2x1x32xf32, #tpu.memory_space<vmem>>, vector<1x1x32xf32>
    %381 = vector.shape_cast %380 : vector<1x1x32xf32> to vector<1x32xf32>
    %cst_168 = arith.constant dense<0.000000e+00> : vector<16xf32>
    %382 = vector.multi_reduction <add>, %377, %cst_168 [1] : vector<16x32xf32> to vector<16xf32>
    %383 = vector.shape_cast %382 : vector<16xf32> to vector<16x1xf32>
    %cst_169 = arith.constant 3.200000e+01 : f32
    %384 = vector.broadcast %cst_169 : f32 to vector<16x1xf32>
    %385 = arith.divf %383, %384 : vector<16x1xf32>
    %386 = vector.broadcast %385 : vector<16x1xf32> to vector<16x32xf32>
    %387 = arith.subf %377, %386 : vector<16x32xf32>
    %388 = arith.mulf %387, %387 : vector<16x32xf32>
    %cst_170 = arith.constant dense<0.000000e+00> : vector<16xf32>
    %389 = vector.multi_reduction <add>, %388, %cst_170 [1] : vector<16x32xf32> to vector<16xf32>
    %390 = vector.shape_cast %389 : vector<16xf32> to vector<16x1xf32>
    %cst_171 = arith.constant 3.200000e+01 : f32
    %391 = vector.broadcast %cst_171 : f32 to vector<16x1xf32>
    %392 = arith.divf %390, %391 : vector<16x1xf32>
    %cst_172 = arith.constant 9.99999996E-13 : f32
    %393 = vector.broadcast %cst_172 : f32 to vector<16x1xf32>
    %394 = arith.addf %392, %393 : vector<16x1xf32>
    %395 = math.rsqrt %394 : vector<16x1xf32>
    %396 = vector.broadcast %395 : vector<16x1xf32> to vector<16x32xf32>
    %397 = arith.mulf %387, %396 : vector<16x32xf32>
    %398 = vector.broadcast %379 : vector<1x32xf32> to vector<16x32xf32>
    %399 = arith.mulf %397, %398 : vector<16x32xf32>
    %400 = vector.broadcast %381 : vector<1x32xf32> to vector<16x32xf32>
    %401 = arith.addf %399, %400 : vector<16x32xf32>
    %402 = vector.shape_cast %401 : vector<16x32xf32> to vector<2x8x32xf32>
    %403 = vector.extract_strided_slice %402 {offsets = [0, 0, 0], sizes = [2, 1, 32], strides = [1, 1, 1]} : vector<2x8x32xf32> to vector<2x1x32xf32>
    %404 = vector.shape_cast %403 : vector<2x1x32xf32> to vector<2x32xf32>
    %c0_173 = arith.constant 0 : index
    %c0_174 = arith.constant 0 : index
    %405 = vector.load %arg21[%c0_173, %c0_174] : memref<32x32xf32, #tpu.memory_space<vmem>>, vector<32x32xf32>
    %cst_175 = arith.constant dense<0.000000e+00> : vector<2x32xf32>
    %406 = tpu.matmul %404, %405, %cst_175 {dimension_numbers = #tpu.dot_dimension_numbers<[1], [0], [0], [1], [0, 0, 1, 1], [], []>} : vector<2x32xf32>, vector<32x32xf32>, vector<2x32xf32> -> vector<2x32xf32>
    %c0_176 = arith.constant 0 : index
    %c0_177 = arith.constant 0 : index
    %407 = vector.load %arg22[%c0_176, %c0_177] : memref<1x32xf32, #tpu.memory_space<vmem>>, vector<1x32xf32>
    %408 = vector.broadcast %407 : vector<1x32xf32> to vector<2x32xf32>
    %409 = arith.addf %406, %408 : vector<2x32xf32>
    %410 = math.tanh %409 : vector<2x32xf32>
    %c0_178 = arith.constant 0 : index
    %c0_179 = arith.constant 0 : index
    %411 = vector.load %arg23[%c0_178, %c0_179] : memref<32x128xf32, #tpu.memory_space<vmem>>, vector<32x128xf32>
    %cst_180 = arith.constant dense<0.000000e+00> : vector<2x128xf32>
    %412 = tpu.matmul %410, %411, %cst_180 {dimension_numbers = #tpu.dot_dimension_numbers<[1], [0], [0], [1], [0, 0, 1, 1], [], []>} : vector<2x32xf32>, vector<32x128xf32>, vector<2x128xf32> -> vector<2x128xf32>
    %c0_181 = arith.constant 0 : index
    %c0_182 = arith.constant 0 : index
    %413 = vector.load %arg24[%c0_181, %c0_182] : memref<1x128xf32, #tpu.memory_space<vmem>>, vector<1x128xf32>
    %414 = vector.broadcast %413 : vector<1x128xf32> to vector<2x128xf32>
    %415 = arith.addf %412, %414 : vector<2x128xf32>
    %c0_183 = arith.constant 0 : index
    %c0_184 = arith.constant 0 : index
    %416 = vector.load %arg25[%c0_183, %c0_184] : memref<2x128xf32, #tpu.memory_space<vmem>>, vector<2x128xf32>
    tpu.vector_store %arg25[%c0_183, %c0_184], %415 {strides = array<i32>} : memref<2x128xf32, #tpu.memory_space<vmem>>, vector<2x128xf32>,
    return
  }
}

</mosaic_0001>

<llo_original>
// kernel: tile.0
$region0: #{tile.0}
  %s0 = inlined_call_operand.vmem [shape: s32[2,8], index: 0, kind: input, shape index: {}]
  %s1 = inlined_call_operand.vmem [shape: s32[16,1], index: 1, kind: output, shape index: {}]
  $region1: #{tile.0} parent=0
    #allocation0 [shape = 'u8[4096]{0}', space=vmem, size = 0x1000, scoped, tag = 'scoped mem for input reshape']
    %s3 = sshll.u32 1, 2
    %s4 = ssub.s32 %s3, 1
    %v5 = vld [vmem:[%s0] sm:%s4]
    %6 = vst [vmem:[#allocation0] sm:%s4] %v5
    %v7 = vld [vmem:[#allocation0] sm:$0x3]
    %vm8 = vcmask 7168
    %9 = vst.msk [vmem:[%s1] ss:$8 sm:$0x3] %vm8, %v7
    %v10 = vld [vmem:[#allocation0] sm:$0x3]
    %11 = vrot.lane.b32.xlu0 %v10, 127
    %v12 = vpop.permute.xlu0 %11
    %vm13 = vcmask 7168
    %s14 = scalar_lea.vmem %s1, 1
    %15 = vst.msk [vmem:[%s14] ss:$8 sm:$0x3] %vm13, %v12
    %v16 = vld [vmem:[#allocation0] sm:$0x3]
    %17 = vrot.lane.b32.xlu0 %v16, 126
    %v18 = vpop.permute.xlu0 %17
    %vm19 = vcmask 7168
    %s20 = scalar_lea.vmem %s1, 2
    %21 = vst.msk [vmem:[%s20] ss:$8 sm:$0x3] %vm19, %v18
    %v22 = vld [vmem:[#allocation0] sm:$0x3]
    %23 = vrot.lane.b32.xlu0 %v22, 125
    %v24 = vpop.permute.xlu0 %23
    %vm25 = vcmask 7168
    %s26 = scalar_lea.vmem %s1, 3
    %27 = vst.msk [vmem:[%s26] ss:$8 sm:$0x3] %vm25, %v24
    %v28 = vld [vmem:[#allocation0] sm:$0x3]
    %29 = vrot.lane.b32.xlu0 %v28, 124
    %v30 = vpop.permute.xlu0 %29
    %vm31 = vcmask 7168
    %s32 = scalar_lea.vmem %s1, 4
    %33 = vst.msk [vmem:[%s32] ss:$8 sm:$0x3] %vm31, %v30
    %v34 = vld [vmem:[#allocation0] sm:$0x3]
    %35 = vrot.lane.b32.xlu0 %v34, 123
    %v36 = vpop.permute.xlu0 %35
    %vm37 = vcmask 7168
    %s38 = scalar_lea.vmem %s1, 5
    %39 = vst.msk [vmem:[%s38] ss:$8 sm:$0x3] %vm37, %v36
    %v40 = vld [vmem:[#allocation0] sm:$0x3]
    %41 = vrot.lane.b32.xlu0 %v40, 122
    %v42 = vpop.permute.xlu0 %41
    %vm43 = vcmask 7168
    %s44 = scalar_lea.vmem %s1, 6
    %45 = vst.msk [vmem:[%s44] ss:$8 sm:$0x3] %vm43, %v42
    %v46 = vld [vmem:[#allocation0] sm:$0x3]
    %47 = vrot.lane.b32.xlu0 %v46, 121
    %v48 = vpop.permute.xlu0 %47
    %vm49 = vcmask 7168
    %s50 = scalar_lea.vmem %s1, 7
    %51 = vst.msk [vmem:[%s50] ss:$8 sm:$0x3] %vm49, %v48

// kernel: bert_multilabel_forward.1
$region0: #{bert_multilabel_forward.1}
  #allocation0 [shape = 'u32[]', space=smem, size = 0x4, offset = 0x4, fixed_abs, tag = 'smem constant byte address 0x4 - core index']
  #allocation1 [shape = 'u32[144,128]{1,0:T(1,128)}', space=vmem, size = 0x12000, scoped, tag = 'internal scratch']
  %s0 = inlined_call_operand.vmem [shape: s32[16,1], index: 0, kind: input, shape index: {}]
  %s1 = inlined_call_operand.vmem [shape: s32[16,1], index: 1, kind: input, shape index: {}]
  %s2 = inlined_call_operand.vmem [shape: f32[16,1], index: 2, kind: input, shape index: {}]
  %s3 = inlined_call_operand.vmem [shape: f32[2,1,8], index: 3, kind: input, shape index: {}]
  %s4 = inlined_call_operand.vmem [shape: f32[128,32], index: 4, kind: input, shape index: {}]
  %s5 = inlined_call_operand.vmem [shape: f32[16,32], index: 5, kind: input, shape index: {}]
  %s6 = inlined_call_operand.vmem [shape: f32[2,32], index: 6, kind: input, shape index: {}]
  %s7 = inlined_call_operand.vmem [shape: f32[1,32], index: 7, kind: input, shape index: {}]
  %s8 = inlined_call_operand.vmem [shape: f32[1,32], index: 8, kind: input, shape index: {}]
  %s9 = inlined_call_operand.vmem [shape: f32[2,32,96], index: 9, kind: input, shape index: {}]
  %s10 = inlined_call_operand.vmem [shape: f32[2,1,96], index: 10, kind: input, shape index: {}]
  %s11 = inlined_call_operand.vmem [shape: f32[2,32,32], index: 11, kind: input, shape index: {}]
  %s12 = inlined_call_operand.vmem [shape: f32[2,1,32], index: 12, kind: input, shape index: {}]
  %s13 = inlined_call_operand.vmem [shape: f32[2,1,32], index: 13, kind: input, shape index: {}]
  %s14 = inlined_call_operand.vmem [shape: f32[2,1,32], index: 14, kind: input, shape index: {}]
  %s15 = inlined_call_operand.vmem [shape: f32[2,32,64], index: 15, kind: input, shape index: {}]
  %s16 = inlined_call_operand.vmem [shape: f32[2,1,64], index: 16, kind: input, shape index: {}]
  %s17 = inlined_call_operand.vmem [shape: f32[2,64,32], index: 17, kind: input, shape index: {}]
  %s18 = inlined_call_operand.vmem [shape: f32[2,1,32], index: 18, kind: input, shape index: {}]
  %s19 = inlined_call_operand.vmem [shape: f32[2,1,32], index: 19, kind: input, shape index: {}]
  %s20 = inlined_call_operand.vmem [shape: f32[2,1,32], index: 20, kind: input, shape index: {}]
  %s21 = inlined_call_operand.vmem [shape: f32[32,32], index: 21, kind: input, shape index: {}]
  %s22 = inlined_call_operand.vmem [shape: f32[1,32], index: 22, kind: input, shape index: {}]
  %s23 = inlined_call_operand.vmem [shape: f32[32,128], index: 23, kind: input, shape index: {}]
  %s24 = inlined_call_operand.vmem [shape: f32[1,128], index: 24, kind: input, shape index: {}]
  %s25 = inlined_call_operand.hbm [shape: f32[2,128], index: 25, kind: output, shape index: {}]
  %s26 = sld [smem:[#allocation0]]
  $region110: #{bert_multilabel_forward.1} parent=0
    _
  %s28 = ssub.s32 1, %s26
  %s29 = scalar_select 0, %s28, %s26
  $region1: #{bert_multilabel_forward.1} parent=0
    #allocation2 [shape = 'u8[1024]{0}', space=vmem, size = 0x400, scoped, tag = 'output window, operand 0, single buffered']
    #allocation3 [shape = 's32[1]{0}', space=sflag, size = 0x4, scoped, tag = 'scoped memory for bert_multilabel_forward.1']
    %30 = vsyncpa [#allocation3], 0
    // Predicated region
    $region2: #{bert_multilabel_forward.1} parent=1 // pred_check
      _
    $region3: #{bert_multilabel_forward.1} parent=1 // pred_check_branch
      %32 = sbr.rel (0) target = $region5
    $region4: #{bert_multilabel_forward.1} parent=1 // pred_region
      _
    $region5: #{bert_multilabel_forward.1} parent=1 // pred_fallthru
      _
    // Predicated region
    $region6: #{bert_multilabel_forward.1} parent=1 // pred_check
      _
    $region7: #{bert_multilabel_forward.1} parent=1 // pred_check_branch
      %34 = sbr.rel (0) target = $region9
    $region8: #{bert_multilabel_forward.1} parent=1 // pred_region
      _
    $region9: #{bert_multilabel_forward.1} parent=1 // pred_fallthru
      _
    // Predicated region
    $region10: #{bert_multilabel_forward.1} parent=1 // pred_check
      _
    $region11: #{bert_multilabel_forward.1} parent=1 // pred_check_branch
      %36 = sbr.rel (0) target = $region13
    $region12: #{bert_multilabel_forward.1} parent=1 // pred_region
      _
    $region13: #{bert_multilabel_forward.1} parent=1 // pred_fallthru
      _
    // Predicated region
    $region14: #{bert_multilabel_forward.1} parent=1 // pred_check
      _
    $region15: #{bert_multilabel_forward.1} parent=1 // pred_check_branch
      %38 = sbr.rel (0) target = $region17
    $region16: #{bert_multilabel_forward.1} parent=1 // pred_region
      _
    $region17: #{bert_multilabel_forward.1} parent=1 // pred_fallthru
      _
    // Predicated region
    $region18: #{bert_multilabel_forward.1} parent=1 // pred_check
      _
    $region19: #{bert_multilabel_forward.1} parent=1 // pred_check_branch
      %40 = sbr.rel (0) target = $region21
    $region20: #{bert_multilabel_forward.1} parent=1 // pred_region
      _
    $region21: #{bert_multilabel_forward.1} parent=1 // pred_fallthru
      _
    // Predicated region
    $region22: #{bert_multilabel_forward.1} parent=1 // pred_check
      _
    $region23: #{bert_multilabel_forward.1} parent=1 // pred_check_branch
      %42 = sbr.rel (0) target = $region25
    $region24: #{bert_multilabel_forward.1} parent=1 // pred_region
      _
    $region25: #{bert_multilabel_forward.1} parent=1 // pred_fallthru
      _
    // Predicated region
    $region26: #{bert_multilabel_forward.1} parent=1 // pred_check
      _
    $region27: #{bert_multilabel_forward.1} parent=1 // pred_check_branch
      %44 = sbr.rel (0) target = $region29
    $region28: #{bert_multilabel_forward.1} parent=1 // pred_region
      _
    $region29: #{bert_multilabel_forward.1} parent=1 // pred_fallthru
      _
    // Predicated region
    $region30: #{bert_multilabel_forward.1} parent=1 // pred_check
      _
    $region31: #{bert_multilabel_forward.1} parent=1 // pred_check_branch
      %46 = sbr.rel (0) target = $region33
    $region32: #{bert_multilabel_forward.1} parent=1 // pred_region
      _
    $region33: #{bert_multilabel_forward.1} parent=1 // pred_fallthru
      _
    // Predicated region
    $region34: #{bert_multilabel_forward.1} parent=1 // pred_check
      _
    $region35: #{bert_multilabel_forward.1} parent=1 // pred_check_branch
      %48 = sbr.rel (0) target = $region37
    $region36: #{bert_multilabel_forward.1} parent=1 // pred_region
      _
    $region37: #{bert_multilabel_forward.1} parent=1 // pred_fallthru
      _
    // Predicated region
    $region38: #{bert_multilabel_forward.1} parent=1 // pred_check
      _
    $region39: #{bert_multilabel_forward.1} parent=1 // pred_check_branch
      %50 = sbr.rel (0) target = $region41
    $region40: #{bert_multilabel_forward.1} parent=1 // pred_region
      _
    $region41: #{bert_multilabel_forward.1} parent=1 // pred_fallthru
      _
    // Predicated region
    $region42: #{bert_multilabel_forward.1} parent=1 // pred_check
      _
    $region43: #{bert_multilabel_forward.1} parent=1 // pred_check_branch
      %52 = sbr.rel (0) target = $region45
    $region44: #{bert_multilabel_forward.1} parent=1 // pred_region
      _
    $region45: #{bert_multilabel_forward.1} parent=1 // pred_fallthru
      _
    // Predicated region
    $region46: #{bert_multilabel_forward.1} parent=1 // pred_check
      _
    $region47: #{bert_multilabel_forward.1} parent=1 // pred_check_branch
      %54 = sbr.rel (0) target = $region49
    $region48: #{bert_multilabel_forward.1} parent=1 // pred_region
      _
    $region49: #{bert_multilabel_forward.1} parent=1 // pred_fallthru
      _
    // Predicated region
    $region50: #{bert_multilabel_forward.1} parent=1 // pred_check
      _
    $region51: #{bert_multilabel_forward.1} parent=1 // pred_check_branch
      %56 = sbr.rel (0) target = $region53
    $region52: #{bert_multilabel_forward.1} parent=1 // pred_region
      _
    $region53: #{bert_multilabel_forward.1} parent=1 // pred_fallthru
      _
    // Predicated region
    $region54: #{bert_multilabel_forward.1} parent=1 // pred_check
      _
    $region55: #{bert_multilabel_forward.1} parent=1 // pred_check_branch
      %58 = sbr.rel (0) target = $region57
    $region56: #{bert_multilabel_forward.1} parent=1 // pred_region
      _
    $region57: #{bert_multilabel_forward.1} parent=1 // pred_fallthru
      _
    // Predicated region
    $region58: #{bert_multilabel_forward.1} parent=1 // pred_check
      _
    $region59: #{bert_multilabel_forward.1} parent=1 // pred_check_branch
      %60 = sbr.rel (0) target = $region61
    $region60: #{bert_multilabel_forward.1} parent=1 // pred_region
      _
    $region61: #{bert_multilabel_forward.1} parent=1 // pred_fallthru
      _
    // Predicated region
    $region62: #{bert_multilabel_forward.1} parent=1 // pred_check
      _
    $region63: #{bert_multilabel_forward.1} parent=1 // pred_check_branch
      %62 = sbr.rel (0) target = $region65
    $region64: #{bert_multilabel_forward.1} parent=1 // pred_region
      _
    $region65: #{bert_multilabel_forward.1} parent=1 // pred_fallthru
      _
    // Predicated region
    $region66: #{bert_multilabel_forward.1} parent=1 // pred_check
      _
    $region67: #{bert_multilabel_forward.1} parent=1 // pred_check_branch
      %64 = sbr.rel (0) target = $region69
    $region68: #{bert_multilabel_forward.1} parent=1 // pred_region
      _
    $region69: #{bert_multilabel_forward.1} parent=1 // pred_fallthru
      _
    // Predicated region
    $region70: #{bert_multilabel_forward.1} parent=1 // pred_check
      _
    $region71: #{bert_multilabel_forward.1} parent=1 // pred_check_branch
      %66 = sbr.rel (0) target = $region73
    $region72: #{bert_multilabel_forward.1} parent=1 // pred_region
      _
    $region73: #{bert_multilabel_forward.1} parent=1 // pred_fallthru
      _
    // Predicated region
    $region74: #{bert_multilabel_forward.1} parent=1 // pred_check
      _
    $region75: #{bert_multilabel_forward.1} parent=1 // pred_check_branch
      %68 = sbr.rel (0) target = $region77
    $region76: #{bert_multilabel_forward.1} parent=1 // pred_region
      _
    $region77: #{bert_multilabel_forward.1} parent=1 // pred_fallthru
      _
    // Predicated region
    $region78: #{bert_multilabel_forward.1} parent=1 // pred_check
      _
    $region79: #{bert_multilabel_forward.1} parent=1 // pred_check_branch
      %70 = sbr.rel (0) target = $region81
    $region80: #{bert_multilabel_forward.1} parent=1 // pred_region
      _
    $region81: #{bert_multilabel_forward.1} parent=1 // pred_fallthru
      _
    // Predicated region
    $region82: #{bert_multilabel_forward.1} parent=1 // pred_check
      _
    $region83: #{bert_multilabel_forward.1} parent=1 // pred_check_branch
      %72 = sbr.rel (0) target = $region85
    $region84: #{bert_multilabel_forward.1} parent=1 // pred_region
      _
    $region85: #{bert_multilabel_forward.1} parent=1 // pred_fallthru
      _
    // Predicated region
    $region86: #{bert_multilabel_forward.1} parent=1 // pred_check
      _
    $region87: #{bert_multilabel_forward.1} parent=1 // pred_check_branch
      %74 = sbr.rel (0) target = $region89
    $region88: #{bert_multilabel_forward.1} parent=1 // pred_region
      _
    $region89: #{bert_multilabel_forward.1} parent=1 // pred_fallthru
      _
    // Predicated region
    $region90: #{bert_multilabel_forward.1} parent=1 // pred_check
      _
    $region91: #{bert_multilabel_forward.1} parent=1 // pred_check_branch
      %76 = sbr.rel (0) target = $region93
    $region92: #{bert_multilabel_forward.1} parent=1 // pred_region
      _
    $region93: #{bert_multilabel_forward.1} parent=1 // pred_fallthru
      _
    // Predicated region
    $region94: #{bert_multilabel_forward.1} parent=1 // pred_check
      _
    $region95: #{bert_multilabel_forward.1} parent=1 // pred_check_branch
      %78 = sbr.rel (0) target = $region97
    $region96: #{bert_multilabel_forward.1} parent=1 // pred_region
      _
    $region97: #{bert_multilabel_forward.1} parent=1 // pred_fallthru
      _
    // Predicated region
    $region98: #{bert_multilabel_forward.1} parent=1 // pred_check
      _
    $region99: #{bert_multilabel_forward.1} parent=1 // pred_check_branch
      %80 = sbr.rel (0) target = $region101
    $region100: #{bert_multilabel_forward.1} parent=1 // pred_region
      _
    $region101: #{bert_multilabel_forward.1} parent=1 // pred_fallthru
      _
    %v81 = vlaneseq
    %v82 = vand.u32 %v81, 127
    %v83 = vld [vmem:[%s0] sm:$0xff]
    %v84 = vld [vmem:[%s0 + $0x8] sm:$0xff]
    %85 = vset.pattern.permute.xlu0 0
    %86 = vperm.xlu0 %85, %v83
    %v87 = vpop.permute.xlu0 %86
    %88 = vset.pattern.permute.xlu0 0
    %89 = vperm.xlu0 %88, %v84
    %v90 = vpop.permute.xlu0 %89
    %vm91 = vcmp.eq.s32.totalorder %v87, %v82
    %vm92 = vcmp.eq.s32.totalorder %v90, %v82
    %v93 = vsel %vm91, 1, 0
    %v94 = vsel %vm92, 1, 0
    %v95 = vcvt.s32.f32 %v93
    %v96 = vcvt.s32.f32 %v94
    %v97 = vld [vmem:[%s4] sm:$0xff]
    %v98 = vld [vmem:[%s4 + $0x8] sm:$0xff]
    %v99 = vld [vmem:[%s4 + $0x10] sm:$0xff]
    %v100 = vld [vmem:[%s4 + $0x18] sm:$0xff]
    %v101 = vld [vmem:[%s4 + $0x20] sm:$0xff]
    %v102 = vld [vmem:[%s4 + $0x28] sm:$0xff]
    %v103 = vld [vmem:[%s4 + $0x30] sm:$0xff]
    %v104 = vld [vmem:[%s4 + $0x38] sm:$0xff]
    %v105 = vld [vmem:[%s4 + $0x40] sm:$0xff]
    %v106 = vld [vmem:[%s4 + $0x48] sm:$0xff]
    %v107 = vld [vmem:[%s4 + $0x50] sm:$0xff]
    %v108 = vld [vmem:[%s4 + $0x58] sm:$0xff]
    %v109 = vld [vmem:[%s4 + $0x60] sm:$0xff]
    %v110 = vld [vmem:[%s4 + $0x68] sm:$0xff]
    %v111 = vld [vmem:[%s4 + $0x70] sm:$0xff]
    %v112 = vld [vmem:[%s4 + $0x78] sm:$0xff]
    %v113 = vld [vmem:[%s1] sm:$0xff]
    %v114 = vld [vmem:[%s1 + $0x8] sm:$0xff]
    %115 = vset.pattern.permute.xlu0 0
    %116 = vperm.xlu0 %115, %v113
    %v117 = vpop.permute.xlu0 %116
    %118 = vset.pattern.permute.xlu0 0
    %119 = vperm.xlu0 %118, %v114
    %v120 = vpop.permute.xlu0 %119
    %vm121 = vcmp.eq.s32.totalorder %v117, %v82
    %vm122 = vcmp.eq.s32.totalorder %v120, %v82
    %v123 = vsel %vm121, 1, 0
    %v124 = vsel %vm122, 1, 0
    %v125 = vcvt.s32.f32 %v123
    %v126 = vcvt.s32.f32 %v124
    %v127 = vld [vmem:[%s5] sm:$0xff]
    %v128 = vld [vmem:[%s5 + $0x8] sm:$0xff]
    %vm129 = vcmask 130048
    %v131 = vsel %vm129, %v125, 0
    %v134 = vsel %vm129, %v126, 0
    %136 = vmatprep.subr.mxu0 0.0
    %137 = vmatpush1.msra.mxu0 0.0
    %138 = vmatprep.subr.mxu0 0.0
    %139 = vmatpush1.msra.mxu0 0.0
    %140 = vmatprep.subr.mxu0 0.0
    %141 = vmatpush1.msra.mxu0 0.0
    %142 = vmatprep.subr.mxu0 0.0
    %143 = vmatpush1.msra.mxu0 0.0
    %144 = vmatprep.subr.mxu0 0.0
    %145 = vmatpush1.msra.mxu0 0.0
    %146 = vmatprep.subr.mxu0 0.0
    %147 = vmatpush1.msra.mxu0 0.0
    %148 = vmatprep.subr.mxu0 0.0
    %149 = vmatpush1.msra.mxu0 0.0
    %150 = vmatprep.subr.mxu0 0.0
    %151 = vmatpush1.msra.mxu0 0.0
    %152 = vmatprep.subr.mxu0 0.0
    %153 = vmatpush1.msra.mxu0 0.0
    %154 = vmatprep.subr.mxu0 0.0
    %155 = vmatpush1.msra.mxu0 0.0
    %156 = vmatprep.subr.mxu0 0.0
    %157 = vmatpush1.msra.mxu0 0.0
    %158 = vmatprep.subr.mxu0 0.0
    %159 = vmatpush1.msra.mxu0 0.0
    %160 = vmatprep.subr.mxu0 0.0
    %161 = vmatpush1.msra.mxu0 0.0
    %162 = vmatprep.subr.mxu0 0.0
    %163 = vmatpush1.msra.mxu0 0.0
    %164 = vmatprep.subr.mxu0 0.0
    %165 = vmatpush1.msra.mxu0 %v128
    %166 = vmatprep.subr.mxu0 0.0
    %167 = vmatpush1.msra.mxu0 %v127
    %168 = vmatprep.subr.mxu0 0.0
    %169 = vmatpush2.msra.mxu0 0.0
    %170 = vmatprep.subr.mxu0 0.0
    %171 = vmatpush2.msra.mxu0 0.0
    %172 = vmatprep.subr.mxu0 0.0
    %173 = vmatpush2.msra.mxu0 0.0
    %174 = vmatprep.subr.mxu0 0.0
    %175 = vmatpush2.msra.mxu0 0.0
    %176 = vmatprep.subr.mxu0 0.0
    %177 = vmatpush2.msra.mxu0 0.0
    %178 = vmatprep.subr.mxu0 0.0
    %179 = vmatpush2.msra.mxu0 0.0
    %180 = vmatprep.subr.mxu0 0.0
    %181 = vmatpush2.msra.mxu0 0.0
    %182 = vmatprep.subr.mxu0 0.0
    %183 = vmatpush2.msra.mxu0 0.0
    %184 = vmatprep.subr.mxu0 0.0
    %185 = vmatpush2.msra.mxu0 0.0
    %186 = vmatprep.subr.mxu0 0.0
    %187 = vmatpush2.msra.mxu0 0.0
    %188 = vmatprep.subr.mxu0 0.0
    %189 = vmatpush2.msra.mxu0 0.0
    %190 = vmatprep.subr.mxu0 0.0
    %191 = vmatpush2.msra.mxu0 0.0
    %192 = vmatprep.subr.mxu0 0.0
    %193 = vmatpush2.msra.mxu0 0.0
    %194 = vmatprep.subr.mxu0 0.0
    %195 = vmatpush2.msra.mxu0 0.0
    %196 = vmatprep.subr.mxu0 0.0
    %197 = vmatpush2.msra.mxu0 0.0
    %198 = vmatprep.subr.mxu0 0.0
    %199 = vmatpush2.msra.mxu0 0.0
    %200 = vmatprep.mubr.f32.mxu0 0.0
    %201 = vmatmul.mubr.f32.gmra.mxu0 %v131
    %v202 = vpop.f32.mrf.mxu0
    %v203 = vadd.f32 0.0, %v202
    %v204 = vpop.f32.mrf.mxu0
    %205 = vmatprep.mubr.f32.mxu0 0.0
    %206 = vmatmul.mubr.f32.gmra.mxu0 %v134
    %v207 = vpop.f32.mrf.mxu0
    %v208 = vadd.f32 0.0, %v207
    %v209 = vpop.f32.mrf.mxu0
    %210 = vdwg.mxu0
    %211 = vmatprep.subr.mxu0 0.0
    %212 = vmatpush1.msra.mxu0 %v112
    %213 = vmatprep.subr.mxu0 0.0
    %214 = vmatpush1.msra.mxu0 %v111
    %215 = vmatprep.subr.mxu0 0.0
    %216 = vmatpush1.msra.mxu0 %v110
    %217 = vmatprep.subr.mxu0 0.0
    %218 = vmatpush1.msra.mxu0 %v109
    %219 = vmatprep.subr.mxu0 0.0
    %220 = vmatpush1.msra.mxu0 %v108
    %221 = vmatprep.subr.mxu0 0.0
    %222 = vmatpush1.msra.mxu0 %v107
    %223 = vmatprep.subr.mxu0 0.0
    %224 = vmatpush1.msra.mxu0 %v106
    %225 = vmatprep.subr.mxu0 0.0
    %226 = vmatpush1.msra.mxu0 %v105
    %227 = vmatprep.subr.mxu0 0.0
    %228 = vmatpush1.msra.mxu0 %v104
    %229 = vmatprep.subr.mxu0 0.0
    %230 = vmatpush1.msra.mxu0 %v103
    %231 = vmatprep.subr.mxu0 0.0
    %232 = vmatpush1.msra.mxu0 %v102
    %233 = vmatprep.subr.mxu0 0.0
    %234 = vmatpush1.msra.mxu0 %v101
    %235 = vmatprep.subr.mxu0 0.0
    %236 = vmatpush1.msra.mxu0 %v100
    %237 = vmatprep.subr.mxu0 0.0
    %238 = vmatpush1.msra.mxu0 %v99
    %239 = vmatprep.subr.mxu0 0.0
    %240 = vmatpush1.msra.mxu0 %v98
    %241 = vmatprep.subr.mxu0 0.0
    %242 = vmatpush1.msra.mxu0 %v97
    %243 = vmatprep.subr.mxu0 0.0
    %244 = vmatpush2.msra.mxu0 0.0
    %245 = vmatprep.subr.mxu0 0.0
    %246 = vmatpush2.msra.mxu0 0.0
    %247 = vmatprep.subr.mxu0 0.0
    %248 = vmatpush2.msra.mxu0 0.0
    %249 = vmatprep.subr.mxu0 0.0
    %250 = vmatpush2.msra.mxu0 0.0
    %251 = vmatprep.subr.mxu0 0.0
    %252 = vmatpush2.msra.mxu0 0.0
    %253 = vmatprep.subr.mxu0 0.0
    %254 = vmatpush2.msra.mxu0 0.0
    %255 = vmatprep.subr.mxu0 0.0
    %256 = vmatpush2.msra.mxu0 0.0
    %257 = vmatprep.subr.mxu0 0.0
    %258 = vmatpush2.msra.mxu0 0.0
    %259 = vmatprep.subr.mxu0 0.0
    %260 = vmatpush2.msra.mxu0 0.0
    %261 = vmatprep.subr.mxu0 0.0
    %262 = vmatpush2.msra.mxu0 0.0
    %263 = vmatprep.subr.mxu0 0.0
    %264 = vmatpush2.msra.mxu0 0.0
    %265 = vmatprep.subr.mxu0 0.0
    %266 = vmatpush2.msra.mxu0 0.0
    %267 = vmatprep.subr.mxu0 0.0
    %268 = vmatpush2.msra.mxu0 0.0
    %269 = vmatprep.subr.mxu0 0.0
    %270 = vmatpush2.msra.mxu0 0.0
    %271 = vmatprep.subr.mxu0 0.0
    %272 = vmatpush2.msra.mxu0 0.0
    %273 = vmatprep.subr.mxu0 0.0
    %274 = vmatpush2.msra.mxu0 0.0
    %275 = vmatprep.mubr.f32.mxu0 0.0
    %276 = vmatmul.mubr.f32.gmra.mxu0 %v95
    %v277 = vpop.f32.mrf.mxu0
    %v278 = vadd.f32 %v203, %v277
    %v279 = vpop.f32.mrf.mxu0
    %280 = vmatprep.mubr.f32.mxu0 0.0
    %281 = vmatmul.mubr.f32.gmra.mxu0 %v96
    %v282 = vpop.f32.mrf.mxu0
    %v283 = vadd.f32 %v208, %v282
    %v284 = vpop.f32.mrf.mxu0
    %285 = vdwg.mxu0
    %v286 = vld [vmem:[%s6] sm:$0x1]
    %v287 = vld [vmem:[%s6 + $0x1] sm:$0x1]
    %v288 = vlaneseq
    %v289 = vshrl.u32 %v288, 7
    %v290 = vsub.s32 0, %v289
    %v291 = vrot.slane %v286, %v290
    %v292 = vadd.f32 %v278, %v291
    %v293 = vadd.f32 %v283, %v291
    %v294 = vld [vmem:[%s2] sm:$0xff]
    %v295 = vld [vmem:[%s2 + $0x8] sm:$0xff]
    %v296 = vsub.f32 %v287, %v286
    %298 = vset.pattern.permute.xlu0 0
    %299 = vperm.xlu0 %298, %v294
    %v300 = vpop.permute.xlu0 %299
    %303 = vset.pattern.permute.xlu0 0
    %304 = vperm.xlu0 %303, %v295
    %v305 = vpop.permute.xlu0 %304
    %v307 = vlaneseq
    %v308 = vshrl.u32 %v307, 7
    %v309 = vsub.s32 0, %v308
    %v310 = vrot.slane %v296, %v309
    %v311 = vmul.f32 %v300, %v310
    %v312 = vmul.f32 %v305, %v310
    %v313 = vadd.f32 %v292, %v311
    %v314 = vadd.f32 %v293, %v312
    %v315 = vld [vmem:[%s7] sm:$0x1]
    %v316 = vld [vmem:[%s8] sm:$0x1]
    %vm317 = vcmask 261120
    %v318 = vsel %vm317, %v313, 0.0
    %319 = vadd.xlane.f32.xlu0 %v318
    %v320 = vpop.xlane.xlu0 %319
    %v321 = vsel %vm317, %v314, 0.0
    %322 = vadd.xlane.f32.xlu0 %v321
    %v323 = vpop.xlane.xlu0 %322
    %v324 = vrcp.pop 32.0
    %v325 = vmul.f32 %v320, %v324
    %v326 = vmul.f32 %v323, %v324
    %v327 = vsub.f32 %v313, %v325
    %v328 = vsub.f32 %v314, %v326
    %v329 = vmul.f32 %v327, %v327
    %v330 = vmul.f32 %v328, %v328
    %v331 = vsel %vm317, %v329, 0.0
    %332 = vadd.xlane.f32.xlu0 %v331
    %v333 = vpop.xlane.xlu0 %332
    %v334 = vsel %vm317, %v330, 0.0
    %335 = vadd.xlane.f32.xlu0 %v334
    %v336 = vpop.xlane.xlu0 %335
    %v337 = vmul.f32 %v333, %v324
    %v338 = vmul.f32 %v336, %v324
    %v339 = vadd.f32 %v337, 1e-12
    %v340 = vadd.f32 %v338, 1e-12
    %v341 = vrsqrt.pop %v339
    %v342 = vrsqrt.pop %v340
    %v343 = vmul.f32 %v327, %v341
    %v344 = vmul.f32 %v328, %v342
    %v346 = vlaneseq
    %v347 = vshrl.u32 %v346, 7
    %v348 = vsub.s32 0, %v347
    %v349 = vrot.slane %v315, %v348
    %v351 = vmul.f32 %v343, %v349
    %v352 = vmul.f32 %v344, %v349
    %v354 = vlaneseq
    %v355 = vshrl.u32 %v354, 7
    %v356 = vsub.s32 0, %v355
    %v357 = vrot.slane %v316, %v356
    %v359 = vadd.f32 %v351, %v357
    %v360 = vadd.f32 %v352, %v357
    %v361 = vld [vmem:[%s3] sm:$0x1]
    %v362 = vld [vmem:[%s3 + $0x1] sm:$0x1]
    %v363 = vsub.f32 1.0, %v361
    %v364 = vsub.f32 1.0, %v362
    %v365 = vmul.f32 %v363, -1e+09
    %v366 = vmul.f32 %v364, -1e+09
    %v367 = vld [vmem:[%s9] sm:$0xff]
    %v368 = vld [vmem:[%s9 + $0x8] sm:$0xff]
    %v369 = vld [vmem:[%s9 + $0x10] sm:$0xff]
    %v370 = vld [vmem:[%s9 + $0x18] sm:$0xff]
    %v371 = vld [vmem:[%s10] sm:$0x1]
    %v372 = vld [vmem:[%s11] sm:$0xff]
    %v373 = vld [vmem:[%s11 + $0x8] sm:$0xff]
    %v374 = vld [vmem:[%s11 + $0x10] sm:$0xff]
    %v375 = vld [vmem:[%s11 + $0x18] sm:$0xff]
    %v376 = vld [vmem:[%s12] sm:$0x1]
    %v377 = vld [vmem:[%s15] sm:$0xff]
    %v378 = vld [vmem:[%s15 + $0x8] sm:$0xff]
    %v379 = vld [vmem:[%s15 + $0x10] sm:$0xff]
    %v380 = vld [vmem:[%s15 + $0x18] sm:$0xff]
    %v381 = vld [vmem:[%s16] sm:$0x1]
    %v382 = vld [vmem:[%s17] sm:$0xff]
    %v383 = vld [vmem:[%s17 + $0x8] sm:$0xff]
    %v384 = vld [vmem:[%s17 + $0x10] sm:$0xff]
    %v385 = vld [vmem:[%s17 + $0x18] sm:$0xff]
    %v386 = vld [vmem:[%s17 + $0x20] sm:$0xff]
    %v387 = vld [vmem:[%s17 + $0x28] sm:$0xff]
    %v388 = vld [vmem:[%s17 + $0x30] sm:$0xff]
    %v389 = vld [vmem:[%s17 + $0x38] sm:$0xff]
    %v390 = vld [vmem:[%s18] sm:$0x1]
    %v392 = vlaneseq
    %v393 = vshrl.u32 %v392, 7
    %v394 = vsub.s32 0, %v393
    %v395 = vrot.slane %v371, %v394
    %v398 = vsel %vm317, %v359, 0
    %v401 = vsel %vm317, %v360, 0
    %403 = vmatprep.subr.mxu0 0.0
    %404 = vmatpush1.msra.mxu0 0.0
    %405 = vmatprep.subr.mxu0 0.0
    %406 = vmatpush1.msra.mxu0 0.0
    %407 = vmatprep.subr.mxu0 0.0
    %408 = vmatpush1.msra.mxu0 0.0
    %409 = vmatprep.subr.mxu0 0.0
    %410 = vmatpush1.msra.mxu0 0.0
    %411 = vmatprep.subr.mxu0 0.0
    %412 = vmatpush1.msra.mxu0 0.0
    %413 = vmatprep.subr.mxu0 0.0
    %414 = vmatpush1.msra.mxu0 0.0
    %415 = vmatprep.subr.mxu0 0.0
    %416 = vmatpush1.msra.mxu0 0.0
    %417 = vmatprep.subr.mxu0 0.0
    %418 = vmatpush1.msra.mxu0 0.0
    %419 = vmatprep.subr.mxu0 0.0
    %420 = vmatpush1.msra.mxu0 0.0
    %421 = vmatprep.subr.mxu0 0.0
    %422 = vmatpush1.msra.mxu0 0.0
    %423 = vmatprep.subr.mxu0 0.0
    %424 = vmatpush1.msra.mxu0 0.0
    %425 = vmatprep.subr.mxu0 0.0
    %426 = vmatpush1.msra.mxu0 0.0
    %427 = vmatprep.subr.mxu0 0.0
    %428 = vmatpush1.msra.mxu0 %v370
    %429 = vmatprep.subr.mxu0 0.0
    %430 = vmatpush1.msra.mxu0 %v369
    %431 = vmatprep.subr.mxu0 0.0
    %432 = vmatpush1.msra.mxu0 %v368
    %433 = vmatprep.subr.mxu0 0.0
    %434 = vmatpush1.msra.mxu0 %v367
    %435 = vmatprep.subr.mxu0 0.0
    %436 = vmatpush2.msra.mxu0 0.0
    %437 = vmatprep.subr.mxu0 0.0
    %438 = vmatpush2.msra.mxu0 0.0
    %439 = vmatprep.subr.mxu0 0.0
    %440 = vmatpush2.msra.mxu0 0.0
    %441 = vmatprep.subr.mxu0 0.0
    %442 = vmatpush2.msra.mxu0 0.0
    %443 = vmatprep.subr.mxu0 0.0
    %444 = vmatpush2.msra.mxu0 0.0
    %445 = vmatprep.subr.mxu0 0.0
    %446 = vmatpush2.msra.mxu0 0.0
    %447 = vmatprep.subr.mxu0 0.0
    %448 = vmatpush2.msra.mxu0 0.0
    %449 = vmatprep.subr.mxu0 0.0
    %450 = vmatpush2.msra.mxu0 0.0
    %451 = vmatprep.subr.mxu0 0.0
    %452 = vmatpush2.msra.mxu0 0.0
    %453 = vmatprep.subr.mxu0 0.0
    %454 = vmatpush2.msra.mxu0 0.0
    %455 = vmatprep.subr.mxu0 0.0
    %456 = vmatpush2.msra.mxu0 0.0
    %457 = vmatprep.subr.mxu0 0.0
    %458 = vmatpush2.msra.mxu0 0.0
    %459 = vmatprep.subr.mxu0 0.0
    %460 = vmatpush2.msra.mxu0 0.0
    %461 = vmatprep.subr.mxu0 0.0
    %462 = vmatpush2.msra.mxu0 0.0
    %463 = vmatprep.subr.mxu0 0.0
    %464 = vmatpush2.msra.mxu0 0.0
    %465 = vmatprep.subr.mxu0 0.0
    %466 = vmatpush2.msra.mxu0 0.0
    %467 = vmatprep.mubr.f32.mxu0 0.0
    %468 = vmatmul.mubr.f32.gmra.mxu0 %v398
    %v469 = vpop.f32.mrf.mxu0
    %v470 = vadd.f32 %v395, %v469
    %v471 = vpop.f32.mrf.mxu0
    %472 = vmatprep.mubr.f32.mxu0 0.0
    %473 = vmatmul.mubr.f32.gmra.mxu0 %v401
    %v474 = vpop.f32.mrf.mxu0
    %v475 = vadd.f32 %v395, %v474
    %v476 = vpop.f32.mrf.mxu0
    %477 = vdwg.mxu0
    %v480 = vlaneseq
    %v481 = vshrl.u32 %v480, 7
    %v482 = vsub.s32 0, %v481
    %v483 = vrot.slane %v365, %v482
    %v484 = vlaneseq
    %v485 = vshrl.u32 %v484, 7
    %v486 = vsub.s32 0, %v485
    %v487 = vrot.slane %v366, %v486
    %491 = vrot.lane.b32.xlu0 %v470, 96
    %v492 = vpop.permute.xlu0 %491
    %vm493 = vcmask 64512
    %v494 = vsel %vm493, %v470, 0
    %v496 = vsel %vm493, %v492, 0
    %498 = vmatprep.subr.mxu0 0.0
    %499 = vmatpush1.xpose.msra.mxu0 0.0
    %500 = vmatprep.subr.mxu0 0.0
    %501 = vmatpush1.xpose.msra.mxu0 0.0
    %502 = vmatprep.subr.mxu0 0.0
    %503 = vmatpush1.xpose.msra.mxu0 0.0
    %504 = vmatprep.subr.mxu0 0.0
    %505 = vmatpush1.xpose.msra.mxu0 0.0
    %506 = vmatprep.subr.mxu0 0.0
    %507 = vmatpush1.xpose.msra.mxu0 0.0
    %508 = vmatprep.subr.mxu0 0.0
    %509 = vmatpush1.xpose.msra.mxu0 0.0
    %510 = vmatprep.subr.mxu0 0.0
    %511 = vmatpush1.xpose.msra.mxu0 0.0
    %512 = vmatprep.subr.mxu0 0.0
    %513 = vmatpush1.xpose.msra.mxu0 0.0
    %514 = vmatprep.subr.mxu0 0.0
    %515 = vmatpush1.xpose.msra.mxu0 0.0
    %516 = vmatprep.subr.mxu0 0.0
    %517 = vmatpush1.xpose.msra.mxu0 0.0
    %518 = vmatprep.subr.mxu0 0.0
    %519 = vmatpush1.xpose.msra.mxu0 0.0
    %520 = vmatprep.subr.mxu0 0.0
    %521 = vmatpush1.xpose.msra.mxu0 0.0
    %522 = vmatprep.subr.mxu0 0.0
    %523 = vmatpush1.xpose.msra.mxu0 0.0
    %524 = vmatprep.subr.mxu0 0.0
    %525 = vmatpush1.xpose.msra.mxu0 0.0
    %526 = vmatprep.subr.mxu0 0.0
    %527 = vmatpush1.xpose.msra.mxu0 0.0
    %528 = vmatprep.subr.mxu0 0.0
    %529 = vmatpush1.xpose.msra.mxu0 %v496
    %530 = vmatprep.subr.mxu0 0.0
    %531 = vmatpush2.xpose.msra.mxu0 0.0
    %532 = vmatprep.subr.mxu0 0.0
    %533 = vmatpush2.xpose.msra.mxu0 0.0
    %534 = vmatprep.subr.mxu0 0.0
    %535 = vmatpush2.xpose.msra.mxu0 0.0
    %536 = vmatprep.subr.mxu0 0.0
    %537 = vmatpush2.xpose.msra.mxu0 0.0
    %538 = vmatprep.subr.mxu0 0.0
    %539 = vmatpush2.xpose.msra.mxu0 0.0
    %540 = vmatprep.subr.mxu0 0.0
    %541 = vmatpush2.xpose.msra.mxu0 0.0
    %542 = vmatprep.subr.mxu0 0.0
    %543 = vmatpush2.xpose.msra.mxu0 0.0
    %544 = vmatprep.subr.mxu0 0.0
    %545 = vmatpush2.xpose.msra.mxu0 0.0
    %546 = vmatprep.subr.mxu0 0.0
    %547 = vmatpush2.xpose.msra.mxu0 0.0
    %548 = vmatprep.subr.mxu0 0.0
    %549 = vmatpush2.xpose.msra.mxu0 0.0
    %550 = vmatprep.subr.mxu0 0.0
    %551 = vmatpush2.xpose.msra.mxu0 0.0
    %552 = vmatprep.subr.mxu0 0.0
    %553 = vmatpush2.xpose.msra.mxu0 0.0
    %554 = vmatprep.subr.mxu0 0.0
    %555 = vmatpush2.xpose.msra.mxu0 0.0
    %556 = vmatprep.subr.mxu0 0.0
    %557 = vmatpush2.xpose.msra.mxu0 0.0
    %558 = vmatprep.subr.mxu0 0.0
    %559 = vmatpush2.xpose.msra.mxu0 0.0
    %560 = vmatprep.subr.mxu0 0.0
    %561 = vmatpush2.xpose.msra.mxu0 0.0
    %562 = vmatprep.mubr.f32.mxu0 0.0
    %563 = vmatmul.mubr.f32.gmra.mxu0 %v494
    %v564 = vpop.f32.mrf.mxu0
    %v565 = vadd.f32 %v483, %v564
    %v566 = vpop.f32.mrf.mxu0
    %567 = vdwg.mxu0
    %569 = vrot.lane.b32.xlu0 %v475, 96
    %v570 = vpop.permute.xlu0 %569
    %v571 = vsel %vm493, %v475, 0
    %v573 = vsel %vm493, %v570, 0
    %575 = vmatprep.subr.mxu0 0.0
    %576 = vmatpush1.xpose.msra.mxu0 0.0
    %577 = vmatprep.subr.mxu0 0.0
    %578 = vmatpush1.xpose.msra.mxu0 0.0
    %579 = vmatprep.subr.mxu0 0.0
    %580 = vmatpush1.xpose.msra.mxu0 0.0
    %581 = vmatprep.subr.mxu0 0.0
    %582 = vmatpush1.xpose.msra.mxu0 0.0
    %583 = vmatprep.subr.mxu0 0.0
    %584 = vmatpush1.xpose.msra.mxu0 0.0
    %585 = vmatprep.subr.mxu0 0.0
    %586 = vmatpush1.xpose.msra.mxu0 0.0
    %587 = vmatprep.subr.mxu0 0.0
    %588 = vmatpush1.xpose.msra.mxu0 0.0
    %589 = vmatprep.subr.mxu0 0.0
    %590 = vmatpush1.xpose.msra.mxu0 0.0
    %591 = vmatprep.subr.mxu0 0.0
    %592 = vmatpush1.xpose.msra.mxu0 0.0
    %593 = vmatprep.subr.mxu0 0.0
    %594 = vmatpush1.xpose.msra.mxu0 0.0
    %595 = vmatprep.subr.mxu0 0.0
    %596 = vmatpush1.xpose.msra.mxu0 0.0
    %597 = vmatprep.subr.mxu0 0.0
    %598 = vmatpush1.xpose.msra.mxu0 0.0
    %599 = vmatprep.subr.mxu0 0.0
    %600 = vmatpush1.xpose.msra.mxu0 0.0
    %601 = vmatprep.subr.mxu0 0.0
    %602 = vmatpush1.xpose.msra.mxu0 0.0
    %603 = vmatprep.subr.mxu0 0.0
    %604 = vmatpush1.xpose.msra.mxu0 0.0
    %605 = vmatprep.subr.mxu0 0.0
    %606 = vmatpush1.xpose.msra.mxu0 %v573
    %607 = vmatprep.subr.mxu0 0.0
    %608 = vmatpush2.xpose.msra.mxu0 0.0
    %609 = vmatprep.subr.mxu0 0.0
    %610 = vmatpush2.xpose.msra.mxu0 0.0
    %611 = vmatprep.subr.mxu0 0.0
    %612 = vmatpush2.xpose.msra.mxu0 0.0
    %613 = vmatprep.subr.mxu0 0.0
    %614 = vmatpush2.xpose.msra.mxu0 0.0
    %615 = vmatprep.subr.mxu0 0.0
    %616 = vmatpush2.xpose.msra.mxu0 0.0
    %617 = vmatprep.subr.mxu0 0.0
    %618 = vmatpush2.xpose.msra.mxu0 0.0
    %619 = vmatprep.subr.mxu0 0.0
    %620 = vmatpush2.xpose.msra.mxu0 0.0
    %621 = vmatprep.subr.mxu0 0.0
    %622 = vmatpush2.xpose.msra.mxu0 0.0
    %623 = vmatprep.subr.mxu0 0.0
    %624 = vmatpush2.xpose.msra.mxu0 0.0
    %625 = vmatprep.subr.mxu0 0.0
    %626 = vmatpush2.xpose.msra.mxu0 0.0
    %627 = vmatprep.subr.mxu0 0.0
    %628 = vmatpush2.xpose.msra.mxu0 0.0
    %629 = vmatprep.subr.mxu0 0.0
    %630 = vmatpush2.xpose.msra.mxu0 0.0
    %631 = vmatprep.subr.mxu0 0.0
    %632 = vmatpush2.xpose.msra.mxu0 0.0
    %633 = vmatprep.subr.mxu0 0.0
    %634 = vmatpush2.xpose.msra.mxu0 0.0
    %635 = vmatprep.subr.mxu0 0.0
    %636 = vmatpush2.xpose.msra.mxu0 0.0
    %637 = vmatprep.subr.mxu0 0.0
    %638 = vmatpush2.xpose.msra.mxu0 0.0
    %639 = vmatprep.mubr.f32.mxu0 0.0
    %640 = vmatmul.mubr.f32.gmra.mxu0 %v571
    %v641 = vpop.f32.mrf.mxu0
    %v642 = vadd.f32 %v487, %v641
    %v643 = vpop.f32.mrf.mxu0
    %644 = vdwg.mxu0
    %v645 = vsel %vm493, %v565, -inf
    %646 = vmax.xlane.f32.xlu0 %v645
    %v647 = vpop.xlane.xlu0 %646
    %v648 = vsel %vm493, %v642, -inf
    %649 = vmax.xlane.f32.xlu0 %v648
    %v650 = vpop.xlane.xlu0 %649
    %v651 = vsub.f32 %v565, %v647
    %v652 = vsub.f32 %v642, %v650
    %v653 = vmul.f32 %v651, 1.442695
    %v654 = vpow.pop %v653
    %v655 = vmul.f32 %v652, 1.442695
    %v656 = vpow.pop %v655
    %v657 = vsel %vm493, %v654, 0.0
    %658 = vadd.xlane.f32.xlu0 %v657
    %v659 = vpop.xlane.xlu0 %658
    %v660 = vsel %vm493, %v656, 0.0
    %661 = vadd.xlane.f32.xlu0 %v660
    %v662 = vpop.xlane.xlu0 %661
    %v663 = vrcp.pop %v659
    %v664 = vrcp.pop %v662
    %v665 = vmul.f32 %v654, %v663
    %v666 = vmul.f32 %v656, %v664
    %667 = vrot.lane.b32.xlu0 %v470, 64
    %v668 = vpop.permute.xlu0 %667
    %v671 = vsel %vm493, %v665, 0
    %673 = vmatprep.subr.mxu0 0.0
    %674 = vmatpush1.msra.mxu0 0.0
    %675 = vmatprep.subr.mxu0 0.0
    %676 = vmatpush1.msra.mxu0 0.0
    %677 = vmatprep.subr.mxu0 0.0
    %678 = vmatpush1.msra.mxu0 0.0
    %679 = vmatprep.subr.mxu0 0.0
    %680 = vmatpush1.msra.mxu0 0.0
    %681 = vmatprep.subr.mxu0 0.0
    %682 = vmatpush1.msra.mxu0 0.0
    %683 = vmatprep.subr.mxu0 0.0
    %684 = vmatpush1.msra.mxu0 0.0
    %685 = vmatprep.subr.mxu0 0.0
    %686 = vmatpush1.msra.mxu0 0.0
    %687 = vmatprep.subr.mxu0 0.0
    %688 = vmatpush1.msra.mxu0 0.0
    %689 = vmatprep.subr.mxu0 0.0
    %690 = vmatpush1.msra.mxu0 0.0
    %691 = vmatprep.subr.mxu0 0.0
    %692 = vmatpush1.msra.mxu0 0.0
    %693 = vmatprep.subr.mxu0 0.0
    %694 = vmatpush1.msra.mxu0 0.0
    %695 = vmatprep.subr.mxu0 0.0
    %696 = vmatpush1.msra.mxu0 0.0
    %697 = vmatprep.subr.mxu0 0.0
    %698 = vmatpush1.msra.mxu0 0.0
    %699 = vmatprep.subr.mxu0 0.0
    %700 = vmatpush1.msra.mxu0 0.0
    %701 = vmatprep.subr.mxu0 0.0
    %702 = vmatpush1.msra.mxu0 0.0
    %703 = vmatprep.subr.mxu0 0.0
    %704 = vmatpush1.msra.mxu0 %v668
    %705 = vmatprep.subr.mxu0 0.0
    %706 = vmatpush2.msra.mxu0 0.0
    %707 = vmatprep.subr.mxu0 0.0
    %708 = vmatpush2.msra.mxu0 0.0
    %709 = vmatprep.subr.mxu0 0.0
    %710 = vmatpush2.msra.mxu0 0.0
    %711 = vmatprep.subr.mxu0 0.0
    %712 = vmatpush2.msra.mxu0 0.0
    %713 = vmatprep.subr.mxu0 0.0
    %714 = vmatpush2.msra.mxu0 0.0
    %715 = vmatprep.subr.mxu0 0.0
    %716 = vmatpush2.msra.mxu0 0.0
    %717 = vmatprep.subr.mxu0 0.0
    %718 = vmatpush2.msra.mxu0 0.0
    %719 = vmatprep.subr.mxu0 0.0
    %720 = vmatpush2.msra.mxu0 0.0
    %721 = vmatprep.subr.mxu0 0.0
    %722 = vmatpush2.msra.mxu0 0.0
    %723 = vmatprep.subr.mxu0 0.0
    %724 = vmatpush2.msra.mxu0 0.0
    %725 = vmatprep.subr.mxu0 0.0
    %726 = vmatpush2.msra.mxu0 0.0
    %727 = vmatprep.subr.mxu0 0.0
    %728 = vmatpush2.msra.mxu0 0.0
    %729 = vmatprep.subr.mxu0 0.0
    %730 = vmatpush2.msra.mxu0 0.0
    %731 = vmatprep.subr.mxu0 0.0
    %732 = vmatpush2.msra.mxu0 0.0
    %733 = vmatprep.subr.mxu0 0.0
    %734 = vmatpush2.msra.mxu0 0.0
    %735 = vmatprep.subr.mxu0 0.0
    %736 = vmatpush2.msra.mxu0 0.0
    %737 = vmatprep.mubr.f32.mxu0 0.0
    %738 = vmatmul.mubr.f32.gmra.mxu0 %v671
    %v739 = vpop.f32.mrf.mxu0
    %v740 = vadd.f32 0.0, %v739
    %v741 = vpop.f32.mrf.mxu0
    %742 = vdwg.mxu0
    %743 = vrot.lane.b32.xlu0 %v475, 64
    %v744 = vpop.permute.xlu0 %743
    %v747 = vsel %vm493, %v666, 0
    %749 = vmatprep.subr.mxu0 0.0
    %750 = vmatpush1.msra.mxu0 0.0
    %751 = vmatprep.subr.mxu0 0.0
    %752 = vmatpush1.msra.mxu0 0.0
    %753 = vmatprep.subr.mxu0 0.0
    %754 = vmatpush1.msra.mxu0 0.0
    %755 = vmatprep.subr.mxu0 0.0
    %756 = vmatpush1.msra.mxu0 0.0
    %757 = vmatprep.subr.mxu0 0.0
    %758 = vmatpush1.msra.mxu0 0.0
    %759 = vmatprep.subr.mxu0 0.0
    %760 = vmatpush1.msra.mxu0 0.0
    %761 = vmatprep.subr.mxu0 0.0
    %762 = vmatpush1.msra.mxu0 0.0
    %763 = vmatprep.subr.mxu0 0.0
    %764 = vmatpush1.msra.mxu0 0.0
    %765 = vmatprep.subr.mxu0 0.0
    %766 = vmatpush1.msra.mxu0 0.0
    %767 = vmatprep.subr.mxu0 0.0
    %768 = vmatpush1.msra.mxu0 0.0
    %769 = vmatprep.subr.mxu0 0.0
    %770 = vmatpush1.msra.mxu0 0.0
    %771 = vmatprep.subr.mxu0 0.0
    %772 = vmatpush1.msra.mxu0 0.0
    %773 = vmatprep.subr.mxu0 0.0
    %774 = vmatpush1.msra.mxu0 0.0
    %775 = vmatprep.subr.mxu0 0.0
    %776 = vmatpush1.msra.mxu0 0.0
    %777 = vmatprep.subr.mxu0 0.0
    %778 = vmatpush1.msra.mxu0 0.0
    %779 = vmatprep.subr.mxu0 0.0
    %780 = vmatpush1.msra.mxu0 %v744
    %781 = vmatprep.subr.mxu0 0.0
    %782 = vmatpush2.msra.mxu0 0.0
    %783 = vmatprep.subr.mxu0 0.0
    %784 = vmatpush2.msra.mxu0 0.0
    %785 = vmatprep.subr.mxu0 0.0
    %786 = vmatpush2.msra.mxu0 0.0
    %787 = vmatprep.subr.mxu0 0.0
    %788 = vmatpush2.msra.mxu0 0.0
    %789 = vmatprep.subr.mxu0 0.0
    %790 = vmatpush2.msra.mxu0 0.0
    %791 = vmatprep.subr.mxu0 0.0
    %792 = vmatpush2.msra.mxu0 0.0
    %793 = vmatprep.subr.mxu0 0.0
    %794 = vmatpush2.msra.mxu0 0.0
    %795 = vmatprep.subr.mxu0 0.0
    %796 = vmatpush2.msra.mxu0 0.0
    %797 = vmatprep.subr.mxu0 0.0
    %798 = vmatpush2.msra.mxu0 0.0
    %799 = vmatprep.subr.mxu0 0.0
    %800 = vmatpush2.msra.mxu0 0.0
    %801 = vmatprep.subr.mxu0 0.0
    %802 = vmatpush2.msra.mxu0 0.0
    %803 = vmatprep.subr.mxu0 0.0
    %804 = vmatpush2.msra.mxu0 0.0
    %805 = vmatprep.subr.mxu0 0.0
    %806 = vmatpush2.msra.mxu0 0.0
    %807 = vmatprep.subr.mxu0 0.0
    %808 = vmatpush2.msra.mxu0 0.0
    %809 = vmatprep.subr.mxu0 0.0
    %810 = vmatpush2.msra.mxu0 0.0
    %811 = vmatprep.subr.mxu0 0.0
    %812 = vmatpush2.msra.mxu0 0.0
    %813 = vmatprep.mubr.f32.mxu0 0.0
    %814 = vmatmul.mubr.f32.gmra.mxu0 %v747
    %v815 = vpop.f32.mrf.mxu0
    %v816 = vadd.f32 0.0, %v815
    %v817 = vpop.f32.mrf.mxu0
    %818 = vdwg.mxu0
    %819 = vrot.lane.b32.xlu0 %v470, 120
    %v820 = vpop.permute.xlu0 %819
    %821 = vrot.lane.b32.xlu0 %v470, 88
    %v822 = vpop.permute.xlu0 %821
    %v823 = vsel %vm493, %v820, 0
    %v825 = vsel %vm493, %v822, 0
    %827 = vmatprep.subr.mxu0 0.0
    %828 = vmatpush1.xpose.msra.mxu0 0.0
    %829 = vmatprep.subr.mxu0 0.0
    %830 = vmatpush1.xpose.msra.mxu0 0.0
    %831 = vmatprep.subr.mxu0 0.0
    %832 = vmatpush1.xpose.msra.mxu0 0.0
    %833 = vmatprep.subr.mxu0 0.0
    %834 = vmatpush1.xpose.msra.mxu0 0.0
    %835 = vmatprep.subr.mxu0 0.0
    %836 = vmatpush1.xpose.msra.mxu0 0.0
    %837 = vmatprep.subr.mxu0 0.0
    %838 = vmatpush1.xpose.msra.mxu0 0.0
    %839 = vmatprep.subr.mxu0 0.0
    %840 = vmatpush1.xpose.msra.mxu0 0.0
    %841 = vmatprep.subr.mxu0 0.0
    %842 = vmatpush1.xpose.msra.mxu0 0.0
    %843 = vmatprep.subr.mxu0 0.0
    %844 = vmatpush1.xpose.msra.mxu0 0.0
    %845 = vmatprep.subr.mxu0 0.0
    %846 = vmatpush1.xpose.msra.mxu0 0.0
    %847 = vmatprep.subr.mxu0 0.0
    %848 = vmatpush1.xpose.msra.mxu0 0.0
    %849 = vmatprep.subr.mxu0 0.0
    %850 = vmatpush1.xpose.msra.mxu0 0.0
    %851 = vmatprep.subr.mxu0 0.0
    %852 = vmatpush1.xpose.msra.mxu0 0.0
    %853 = vmatprep.subr.mxu0 0.0
    %854 = vmatpush1.xpose.msra.mxu0 0.0
    %855 = vmatprep.subr.mxu0 0.0
    %856 = vmatpush1.xpose.msra.mxu0 0.0
    %857 = vmatprep.subr.mxu0 0.0
    %858 = vmatpush1.xpose.msra.mxu0 %v825
    %859 = vmatprep.subr.mxu0 0.0
    %860 = vmatpush2.xpose.msra.mxu0 0.0
    %861 = vmatprep.subr.mxu0 0.0
    %862 = vmatpush2.xpose.msra.mxu0 0.0
    %863 = vmatprep.subr.mxu0 0.0
    %864 = vmatpush2.xpose.msra.mxu0 0.0
    %865 = vmatprep.subr.mxu0 0.0
    %866 = vmatpush2.xpose.msra.mxu0 0.0
    %867 = vmatprep.subr.mxu0 0.0
    %868 = vmatpush2.xpose.msra.mxu0 0.0
    %869 = vmatprep.subr.mxu0 0.0
    %870 = vmatpush2.xpose.msra.mxu0 0.0
    %871 = vmatprep.subr.mxu0 0.0
    %872 = vmatpush2.xpose.msra.mxu0 0.0
    %873 = vmatprep.subr.mxu0 0.0
    %874 = vmatpush2.xpose.msra.mxu0 0.0
    %875 = vmatprep.subr.mxu0 0.0
    %876 = vmatpush2.xpose.msra.mxu0 0.0
    %877 = vmatprep.subr.mxu0 0.0
    %878 = vmatpush2.xpose.msra.mxu0 0.0
    %879 = vmatprep.subr.mxu0 0.0
    %880 = vmatpush2.xpose.msra.mxu0 0.0
    %881 = vmatprep.subr.mxu0 0.0
    %882 = vmatpush2.xpose.msra.mxu0 0.0
    %883 = vmatprep.subr.mxu0 0.0
    %884 = vmatpush2.xpose.msra.mxu0 0.0
    %885 = vmatprep.subr.mxu0 0.0
    %886 = vmatpush2.xpose.msra.mxu0 0.0
    %887 = vmatprep.subr.mxu0 0.0
    %888 = vmatpush2.xpose.msra.mxu0 0.0
    %889 = vmatprep.subr.mxu0 0.0
    %890 = vmatpush2.xpose.msra.mxu0 0.0
    %891 = vmatprep.mubr.f32.mxu0 0.0
    %892 = vmatmul.mubr.f32.gmra.mxu0 %v823
    %v893 = vpop.f32.mrf.mxu0
    %v894 = vadd.f32 %v483, %v893
    %v895 = vpop.f32.mrf.mxu0
    %896 = vdwg.mxu0
    %897 = vrot.lane.b32.xlu0 %v475, 120
    %v898 = vpop.permute.xlu0 %897
    %899 = vrot.lane.b32.xlu0 %v475, 88
    %v900 = vpop.permute.xlu0 %899
    %v901 = vsel %vm493, %v898, 0
    %v903 = vsel %vm493, %v900, 0
    %905 = vmatprep.subr.mxu0 0.0
    %906 = vmatpush1.xpose.msra.mxu0 0.0
    %907 = vmatprep.subr.mxu0 0.0
    %908 = vmatpush1.xpose.msra.mxu0 0.0
    %909 = vmatprep.subr.mxu0 0.0
    %910 = vmatpush1.xpose.msra.mxu0 0.0
    %911 = vmatprep.subr.mxu0 0.0
    %912 = vmatpush1.xpose.msra.mxu0 0.0
    %913 = vmatprep.subr.mxu0 0.0
    %914 = vmatpush1.xpose.msra.mxu0 0.0
    %915 = vmatprep.subr.mxu0 0.0
    %916 = vmatpush1.xpose.msra.mxu0 0.0
    %917 = vmatprep.subr.mxu0 0.0
    %918 = vmatpush1.xpose.msra.mxu0 0.0
    %919 = vmatprep.subr.mxu0 0.0
    %920 = vmatpush1.xpose.msra.mxu0 0.0
    %921 = vmatprep.subr.mxu0 0.0
    %922 = vmatpush1.xpose.msra.mxu0 0.0
    %923 = vmatprep.subr.mxu0 0.0
    %924 = vmatpush1.xpose.msra.mxu0 0.0
    %925 = vmatprep.subr.mxu0 0.0
    %926 = vmatpush1.xpose.msra.mxu0 0.0
    %927 = vmatprep.subr.mxu0 0.0
    %928 = vmatpush1.xpose.msra.mxu0 0.0
    %929 = vmatprep.subr.mxu0 0.0
    %930 = vmatpush1.xpose.msra.mxu0 0.0
    %931 = vmatprep.subr.mxu0 0.0
    %932 = vmatpush1.xpose.msra.mxu0 0.0
    %933 = vmatprep.subr.mxu0 0.0
    %934 = vmatpush1.xpose.msra.mxu0 0.0
    %935 = vmatprep.subr.mxu0 0.0
    %936 = vmatpush1.xpose.msra.mxu0 %v903
    %937 = vmatprep.subr.mxu0 0.0
    %938 = vmatpush2.xpose.msra.mxu0 0.0
    %939 = vmatprep.subr.mxu0 0.0
    %940 = vmatpush2.xpose.msra.mxu0 0.0
    %941 = vmatprep.subr.mxu0 0.0
    %942 = vmatpush2.xpose.msra.mxu0 0.0
    %943 = vmatprep.subr.mxu0 0.0
    %944 = vmatpush2.xpose.msra.mxu0 0.0
    %945 = vmatprep.subr.mxu0 0.0
    %946 = vmatpush2.xpose.msra.mxu0 0.0
    %947 = vmatprep.subr.mxu0 0.0
    %948 = vmatpush2.xpose.msra.mxu0 0.0
    %949 = vmatprep.subr.mxu0 0.0
    %950 = vmatpush2.xpose.msra.mxu0 0.0
    %951 = vmatprep.subr.mxu0 0.0
    %952 = vmatpush2.xpose.msra.mxu0 0.0
    %953 = vmatprep.subr.mxu0 0.0
    %954 = vmatpush2.xpose.msra.mxu0 0.0
    %955 = vmatprep.subr.mxu0 0.0
    %956 = vmatpush2.xpose.msra.mxu0 0.0
    %957 = vmatprep.subr.mxu0 0.0
    %958 = vmatpush2.xpose.msra.mxu0 0.0
    %959 = vmatprep.subr.mxu0 0.0
    %960 = vmatpush2.xpose.msra.mxu0 0.0
    %961 = vmatprep.subr.mxu0 0.0
    %962 = vmatpush2.xpose.msra.mxu0 0.0
    %963 = vmatprep.subr.mxu0 0.0
    %964 = vmatpush2.xpose.msra.mxu0 0.0
    %965 = vmatprep.subr.mxu0 0.0
    %966 = vmatpush2.xpose.msra.mxu0 0.0
    %967 = vmatprep.subr.mxu0 0.0
    %968 = vmatpush2.xpose.msra.mxu0 0.0
    %969 = vmatprep.mubr.f32.mxu0 0.0
    %970 = vmatmul.mubr.f32.gmra.mxu0 %v901
    %v971 = vpop.f32.mrf.mxu0
    %v972 = vadd.f32 %v487, %v971
    %v973 = vpop.f32.mrf.mxu0
    %974 = vdwg.mxu0
    %v975 = vsel %vm493, %v894, -inf
    %976 = vmax.xlane.f32.xlu0 %v975
    %v977 = vpop.xlane.xlu0 %976
    %v978 = vsel %vm493, %v972, -inf
    %979 = vmax.xlane.f32.xlu0 %v978
    %v980 = vpop.xlane.xlu0 %979
    %v981 = vsub.f32 %v894, %v977
    %v982 = vsub.f32 %v972, %v980
    %v983 = vmul.f32 %v981, 1.442695
    %v984 = vpow.pop %v983
    %v985 = vmul.f32 %v982, 1.442695
    %v986 = vpow.pop %v985
    %v987 = vsel %vm493, %v984, 0.0
    %988 = vadd.xlane.f32.xlu0 %v987
    %v989 = vpop.xlane.xlu0 %988
    %v990 = vsel %vm493, %v986, 0.0
    %991 = vadd.xlane.f32.xlu0 %v990
    %v992 = vpop.xlane.xlu0 %991
    %v993 = vrcp.pop %v989
    %v994 = vrcp.pop %v992
    %v995 = vmul.f32 %v984, %v993
    %v996 = vmul.f32 %v986, %v994
    %997 = vrot.lane.b32.xlu0 %v470, 56
    %v998 = vpop.permute.xlu0 %997
    %v1001 = vsel %vm493, %v995, 0
    %1003 = vmatprep.subr.mxu0 0.0
    %1004 = vmatpush1.msra.mxu0 0.0
    %1005 = vmatprep.subr.mxu0 0.0
    %1006 = vmatpush1.msra.mxu0 0.0
    %1007 = vmatprep.subr.mxu0 0.0
    %1008 = vmatpush1.msra.mxu0 0.0
    %1009 = vmatprep.subr.mxu0 0.0
    %1010 = vmatpush1.msra.mxu0 0.0
    %1011 = vmatprep.subr.mxu0 0.0
    %1012 = vmatpush1.msra.mxu0 0.0
    %1013 = vmatprep.subr.mxu0 0.0
    %1014 = vmatpush1.msra.mxu0 0.0
    %1015 = vmatprep.subr.mxu0 0.0
    %1016 = vmatpush1.msra.mxu0 0.0
    %1017 = vmatprep.subr.mxu0 0.0
    %1018 = vmatpush1.msra.mxu0 0.0
    %1019 = vmatprep.subr.mxu0 0.0
    %1020 = vmatpush1.msra.mxu0 0.0
    %1021 = vmatprep.subr.mxu0 0.0
    %1022 = vmatpush1.msra.mxu0 0.0
    %1023 = vmatprep.subr.mxu0 0.0
    %1024 = vmatpush1.msra.mxu0 0.0
    %1025 = vmatprep.subr.mxu0 0.0
    %1026 = vmatpush1.msra.mxu0 0.0
    %1027 = vmatprep.subr.mxu0 0.0
    %1028 = vmatpush1.msra.mxu0 0.0
    %1029 = vmatprep.subr.mxu0 0.0
    %1030 = vmatpush1.msra.mxu0 0.0
    %1031 = vmatprep.subr.mxu0 0.0
    %1032 = vmatpush1.msra.mxu0 0.0
    %1033 = vmatprep.subr.mxu0 0.0
    %1034 = vmatpush1.msra.mxu0 %v998
    %1035 = vmatprep.subr.mxu0 0.0
    %1036 = vmatpush2.msra.mxu0 0.0
    %1037 = vmatprep.subr.mxu0 0.0
    %1038 = vmatpush2.msra.mxu0 0.0
    %1039 = vmatprep.subr.mxu0 0.0
    %1040 = vmatpush2.msra.mxu0 0.0
    %1041 = vmatprep.subr.mxu0 0.0
    %1042 = vmatpush2.msra.mxu0 0.0
    %1043 = vmatprep.subr.mxu0 0.0
    %1044 = vmatpush2.msra.mxu0 0.0
    %1045 = vmatprep.subr.mxu0 0.0
    %1046 = vmatpush2.msra.mxu0 0.0
    %1047 = vmatprep.subr.mxu0 0.0
    %1048 = vmatpush2.msra.mxu0 0.0
    %1049 = vmatprep.subr.mxu0 0.0
    %1050 = vmatpush2.msra.mxu0 0.0
    %1051 = vmatprep.subr.mxu0 0.0
    %1052 = vmatpush2.msra.mxu0 0.0
    %1053 = vmatprep.subr.mxu0 0.0
    %1054 = vmatpush2.msra.mxu0 0.0
    %1055 = vmatprep.subr.mxu0 0.0
    %1056 = vmatpush2.msra.mxu0 0.0
    %1057 = vmatprep.subr.mxu0 0.0
    %1058 = vmatpush2.msra.mxu0 0.0
    %1059 = vmatprep.subr.mxu0 0.0
    %1060 = vmatpush2.msra.mxu0 0.0
    %1061 = vmatprep.subr.mxu0 0.0
    %1062 = vmatpush2.msra.mxu0 0.0
    %1063 = vmatprep.subr.mxu0 0.0
    %1064 = vmatpush2.msra.mxu0 0.0
    %1065 = vmatprep.subr.mxu0 0.0
    %1066 = vmatpush2.msra.mxu0 0.0
    %1067 = vmatprep.mubr.f32.mxu0 0.0
    %1068 = vmatmul.mubr.f32.gmra.mxu0 %v1001
    %v1069 = vpop.f32.mrf.mxu0
    %v1070 = vadd.f32 0.0, %v1069
    %v1071 = vpop.f32.mrf.mxu0
    %1072 = vdwg.mxu0
    %1073 = vrot.lane.b32.xlu0 %v475, 56
    %v1074 = vpop.permute.xlu0 %1073
    %v1077 = vsel %vm493, %v996, 0
    %1079 = vmatprep.subr.mxu0 0.0
    %1080 = vmatpush1.msra.mxu0 0.0
    %1081 = vmatprep.subr.mxu0 0.0
    %1082 = vmatpush1.msra.mxu0 0.0
    %1083 = vmatprep.subr.mxu0 0.0
    %1084 = vmatpush1.msra.mxu0 0.0
    %1085 = vmatprep.subr.mxu0 0.0
    %1086 = vmatpush1.msra.mxu0 0.0
    %1087 = vmatprep.subr.mxu0 0.0
    %1088 = vmatpush1.msra.mxu0 0.0
    %1089 = vmatprep.subr.mxu0 0.0
    %1090 = vmatpush1.msra.mxu0 0.0
    %1091 = vmatprep.subr.mxu0 0.0
    %1092 = vmatpush1.msra.mxu0 0.0
    %1093 = vmatprep.subr.mxu0 0.0
    %1094 = vmatpush1.msra.mxu0 0.0
    %1095 = vmatprep.subr.mxu0 0.0
    %1096 = vmatpush1.msra.mxu0 0.0
    %1097 = vmatprep.subr.mxu0 0.0
    %1098 = vmatpush1.msra.mxu0 0.0
    %1099 = vmatprep.subr.mxu0 0.0
    %1100 = vmatpush1.msra.mxu0 0.0
    %1101 = vmatprep.subr.mxu0 0.0
    %1102 = vmatpush1.msra.mxu0 0.0
    %1103 = vmatprep.subr.mxu0 0.0
    %1104 = vmatpush1.msra.mxu0 0.0
    %1105 = vmatprep.subr.mxu0 0.0
    %1106 = vmatpush1.msra.mxu0 0.0
    %1107 = vmatprep.subr.mxu0 0.0
    %1108 = vmatpush1.msra.mxu0 0.0
    %1109 = vmatprep.subr.mxu0 0.0
    %1110 = vmatpush1.msra.mxu0 %v1074
    %1111 = vmatprep.subr.mxu0 0.0
    %1112 = vmatpush2.msra.mxu0 0.0
    %1113 = vmatprep.subr.mxu0 0.0
    %1114 = vmatpush2.msra.mxu0 0.0
    %1115 = vmatprep.subr.mxu0 0.0
    %1116 = vmatpush2.msra.mxu0 0.0
    %1117 = vmatprep.subr.mxu0 0.0
    %1118 = vmatpush2.msra.mxu0 0.0
    %1119 = vmatprep.subr.mxu0 0.0
    %1120 = vmatpush2.msra.mxu0 0.0
    %1121 = vmatprep.subr.mxu0 0.0
    %1122 = vmatpush2.msra.mxu0 0.0
    %1123 = vmatprep.subr.mxu0 0.0
    %1124 = vmatpush2.msra.mxu0 0.0
    %1125 = vmatprep.subr.mxu0 0.0
    %1126 = vmatpush2.msra.mxu0 0.0
    %1127 = vmatprep.subr.mxu0 0.0
    %1128 = vmatpush2.msra.mxu0 0.0
    %1129 = vmatprep.subr.mxu0 0.0
    %1130 = vmatpush2.msra.mxu0 0.0
    %1131 = vmatprep.subr.mxu0 0.0
    %1132 = vmatpush2.msra.mxu0 0.0
    %1133 = vmatprep.subr.mxu0 0.0
    %1134 = vmatpush2.msra.mxu0 0.0
    %1135 = vmatprep.subr.mxu0 0.0
    %1136 = vmatpush2.msra.mxu0 0.0
    %1137 = vmatprep.subr.mxu0 0.0
    %1138 = vmatpush2.msra.mxu0 0.0
    %1139 = vmatprep.subr.mxu0 0.0
    %1140 = vmatpush2.msra.mxu0 0.0
    %1141 = vmatprep.subr.mxu0 0.0
    %1142 = vmatpush2.msra.mxu0 0.0
    %1143 = vmatprep.mubr.f32.mxu0 0.0
    %1144 = vmatmul.mubr.f32.gmra.mxu0 %v1077
    %v1145 = vpop.f32.mrf.mxu0
    %v1146 = vadd.f32 0.0, %v1145
    %v1147 = vpop.f32.mrf.mxu0
    %1148 = vdwg.mxu0
    %v1150 = vsel %vm493, %v1070, 0
    %v1153 = vsel %vm493, %v1146, 0
    %1155 = vmatprep.subr.mxu0 0.0
    %1156 = vmatpush1.msra.mxu0 0.0
    %1157 = vmatprep.subr.mxu0 0.0
    %1158 = vmatpush1.msra.mxu0 0.0
    %1159 = vmatprep.subr.mxu0 0.0
    %1160 = vmatpush1.msra.mxu0 0.0
    %1161 = vmatprep.subr.mxu0 0.0
    %1162 = vmatpush1.msra.mxu0 0.0
    %1163 = vmatprep.subr.mxu0 0.0
    %1164 = vmatpush1.msra.mxu0 0.0
    %1165 = vmatprep.subr.mxu0 0.0
    %1166 = vmatpush1.msra.mxu0 0.0
    %1167 = vmatprep.subr.mxu0 0.0
    %1168 = vmatpush1.msra.mxu0 0.0
    %1169 = vmatprep.subr.mxu0 0.0
    %1170 = vmatpush1.msra.mxu0 0.0
    %1171 = vmatprep.subr.mxu0 0.0
    %1172 = vmatpush1.msra.mxu0 0.0
    %1173 = vmatprep.subr.mxu0 0.0
    %1174 = vmatpush1.msra.mxu0 0.0
    %1175 = vmatprep.subr.mxu0 0.0
    %1176 = vmatpush1.msra.mxu0 0.0
    %1177 = vmatprep.subr.mxu0 0.0
    %1178 = vmatpush1.msra.mxu0 0.0
    %1179 = vmatprep.subr.mxu0 0.0
    %1180 = vmatpush1.msra.mxu0 0.0
    %1181 = vmatprep.subr.mxu0 0.0
    %1182 = vmatpush1.msra.mxu0 0.0
    %1183 = vmatprep.subr.mxu0 0.0
    %1184 = vmatpush1.msra.mxu0 0.0
    %1185 = vmatprep.subr.mxu0 0.0
    %1186 = vmatpush1.msra.mxu0 %v373
    %1187 = vmatprep.subr.mxu0 0.0
    %1188 = vmatpush2.msra.mxu0 0.0
    %1189 = vmatprep.subr.mxu0 0.0
    %1190 = vmatpush2.msra.mxu0 0.0
    %1191 = vmatprep.subr.mxu0 0.0
    %1192 = vmatpush2.msra.mxu0 0.0
    %1193 = vmatprep.subr.mxu0 0.0
    %1194 = vmatpush2.msra.mxu0 0.0
    %1195 = vmatprep.subr.mxu0 0.0
    %1196 = vmatpush2.msra.mxu0 0.0
    %1197 = vmatprep.subr.mxu0 0.0
    %1198 = vmatpush2.msra.mxu0 0.0
    %1199 = vmatprep.subr.mxu0 0.0
    %1200 = vmatpush2.msra.mxu0 0.0
    %1201 = vmatprep.subr.mxu0 0.0
    %1202 = vmatpush2.msra.mxu0 0.0
    %1203 = vmatprep.subr.mxu0 0.0
    %1204 = vmatpush2.msra.mxu0 0.0
    %1205 = vmatprep.subr.mxu0 0.0
    %1206 = vmatpush2.msra.mxu0 0.0
    %1207 = vmatprep.subr.mxu0 0.0
    %1208 = vmatpush2.msra.mxu0 0.0
    %1209 = vmatprep.subr.mxu0 0.0
    %1210 = vmatpush2.msra.mxu0 0.0
    %1211 = vmatprep.subr.mxu0 0.0
    %1212 = vmatpush2.msra.mxu0 0.0
    %1213 = vmatprep.subr.mxu0 0.0
    %1214 = vmatpush2.msra.mxu0 0.0
    %1215 = vmatprep.subr.mxu0 0.0
    %1216 = vmatpush2.msra.mxu0 0.0
    %1217 = vmatprep.subr.mxu0 0.0
    %1218 = vmatpush2.msra.mxu0 0.0
    %1219 = vmatprep.mubr.f32.mxu0 0.0
    %1220 = vmatmul.mubr.f32.gmra.mxu0 %v1150
    %v1221 = vpop.f32.mrf.mxu0
    %v1222 = vadd.f32 0.0, %v1221
    %v1223 = vpop.f32.mrf.mxu0
    %1224 = vmatprep.mubr.f32.mxu0 0.0
    %1225 = vmatmul.mubr.f32.gmra.mxu0 %v1153
    %v1226 = vpop.f32.mrf.mxu0
    %v1227 = vadd.f32 0.0, %v1226
    %v1228 = vpop.f32.mrf.mxu0
    %1229 = vdwg.mxu0
    %v1231 = vsel %vm493, %v740, 0
    %v1234 = vsel %vm493, %v816, 0
    %1236 = vmatprep.subr.mxu0 0.0
    %1237 = vmatpush1.msra.mxu0 0.0
    %1238 = vmatprep.subr.mxu0 0.0
    %1239 = vmatpush1.msra.mxu0 0.0
    %1240 = vmatprep.subr.mxu0 0.0
    %1241 = vmatpush1.msra.mxu0 0.0
    %1242 = vmatprep.subr.mxu0 0.0
    %1243 = vmatpush1.msra.mxu0 0.0
    %1244 = vmatprep.subr.mxu0 0.0
    %1245 = vmatpush1.msra.mxu0 0.0
    %1246 = vmatprep.subr.mxu0 0.0
    %1247 = vmatpush1.msra.mxu0 0.0
    %1248 = vmatprep.subr.mxu0 0.0
    %1249 = vmatpush1.msra.mxu0 0.0
    %1250 = vmatprep.subr.mxu0 0.0
    %1251 = vmatpush1.msra.mxu0 0.0
    %1252 = vmatprep.subr.mxu0 0.0
    %1253 = vmatpush1.msra.mxu0 0.0
    %1254 = vmatprep.subr.mxu0 0.0
    %1255 = vmatpush1.msra.mxu0 0.0
    %1256 = vmatprep.subr.mxu0 0.0
    %1257 = vmatpush1.msra.mxu0 0.0
    %1258 = vmatprep.subr.mxu0 0.0
    %1259 = vmatpush1.msra.mxu0 0.0
    %1260 = vmatprep.subr.mxu0 0.0
    %1261 = vmatpush1.msra.mxu0 0.0
    %1262 = vmatprep.subr.mxu0 0.0
    %1263 = vmatpush1.msra.mxu0 0.0
    %1264 = vmatprep.subr.mxu0 0.0
    %1265 = vmatpush1.msra.mxu0 0.0
    %1266 = vmatprep.subr.mxu0 0.0
    %1267 = vmatpush1.msra.mxu0 %v372
    %1268 = vmatprep.subr.mxu0 0.0
    %1269 = vmatpush2.msra.mxu0 0.0
    %1270 = vmatprep.subr.mxu0 0.0
    %1271 = vmatpush2.msra.mxu0 0.0
    %1272 = vmatprep.subr.mxu0 0.0
    %1273 = vmatpush2.msra.mxu0 0.0
    %1274 = vmatprep.subr.mxu0 0.0
    %1275 = vmatpush2.msra.mxu0 0.0
    %1276 = vmatprep.subr.mxu0 0.0
    %1277 = vmatpush2.msra.mxu0 0.0
    %1278 = vmatprep.subr.mxu0 0.0
    %1279 = vmatpush2.msra.mxu0 0.0
    %1280 = vmatprep.subr.mxu0 0.0
    %1281 = vmatpush2.msra.mxu0 0.0
    %1282 = vmatprep.subr.mxu0 0.0
    %1283 = vmatpush2.msra.mxu0 0.0
    %1284 = vmatprep.subr.mxu0 0.0
    %1285 = vmatpush2.msra.mxu0 0.0
    %1286 = vmatprep.subr.mxu0 0.0
    %1287 = vmatpush2.msra.mxu0 0.0
    %1288 = vmatprep.subr.mxu0 0.0
    %1289 = vmatpush2.msra.mxu0 0.0
    %1290 = vmatprep.subr.mxu0 0.0
    %1291 = vmatpush2.msra.mxu0 0.0
    %1292 = vmatprep.subr.mxu0 0.0
    %1293 = vmatpush2.msra.mxu0 0.0
    %1294 = vmatprep.subr.mxu0 0.0
    %1295 = vmatpush2.msra.mxu0 0.0
    %1296 = vmatprep.subr.mxu0 0.0
    %1297 = vmatpush2.msra.mxu0 0.0
    %1298 = vmatprep.subr.mxu0 0.0
    %1299 = vmatpush2.msra.mxu0 0.0
    %1300 = vmatprep.mubr.f32.mxu0 0.0
    %1301 = vmatmul.mubr.f32.gmra.mxu0 %v1231
    %v1302 = vpop.f32.mrf.mxu0
    %v1303 = vadd.f32 %v1222, %v1302
    %v1304 = vpop.f32.mrf.mxu0
    %1305 = vmatprep.mubr.f32.mxu0 0.0
    %1306 = vmatmul.mubr.f32.gmra.mxu0 %v1234
    %v1307 = vpop.f32.mrf.mxu0
    %v1308 = vadd.f32 %v1227, %v1307
    %v1309 = vpop.f32.mrf.mxu0
    %1310 = vdwg.mxu0
    %1311 = vrot.lane.b32.xlu0 %v470, 112
    %v1312 = vpop.permute.xlu0 %1311
    %1313 = vrot.lane.b32.xlu0 %v470, 80
    %v1314 = vpop.permute.xlu0 %1313
    %v1315 = vsel %vm493, %v1312, 0
    %v1317 = vsel %vm493, %v1314, 0
    %1319 = vmatprep.subr.mxu0 0.0
    %1320 = vmatpush1.xpose.msra.mxu0 0.0
    %1321 = vmatprep.subr.mxu0 0.0
    %1322 = vmatpush1.xpose.msra.mxu0 0.0
    %1323 = vmatprep.subr.mxu0 0.0
    %1324 = vmatpush1.xpose.msra.mxu0 0.0
    %1325 = vmatprep.subr.mxu0 0.0
    %1326 = vmatpush1.xpose.msra.mxu0 0.0
    %1327 = vmatprep.subr.mxu0 0.0
    %1328 = vmatpush1.xpose.msra.mxu0 0.0
    %1329 = vmatprep.subr.mxu0 0.0
    %1330 = vmatpush1.xpose.msra.mxu0 0.0
    %1331 = vmatprep.subr.mxu0 0.0
    %1332 = vmatpush1.xpose.msra.mxu0 0.0
    %1333 = vmatprep.subr.mxu0 0.0
    %1334 = vmatpush1.xpose.msra.mxu0 0.0
    %1335 = vmatprep.subr.mxu0 0.0
    %1336 = vmatpush1.xpose.msra.mxu0 0.0
    %1337 = vmatprep.subr.mxu0 0.0
    %1338 = vmatpush1.xpose.msra.mxu0 0.0
    %1339 = vmatprep.subr.mxu0 0.0
    %1340 = vmatpush1.xpose.msra.mxu0 0.0
    %1341 = vmatprep.subr.mxu0 0.0
    %1342 = vmatpush1.xpose.msra.mxu0 0.0
    %1343 = vmatprep.subr.mxu0 0.0
    %1344 = vmatpush1.xpose.msra.mxu0 0.0
    %1345 = vmatprep.subr.mxu0 0.0
    %1346 = vmatpush1.xpose.msra.mxu0 0.0
    %1347 = vmatprep.subr.mxu0 0.0
    %1348 = vmatpush1.xpose.msra.mxu0 0.0
    %1349 = vmatprep.subr.mxu0 0.0
    %1350 = vmatpush1.xpose.msra.mxu0 %v1317
    %1351 = vmatprep.subr.mxu0 0.0
    %1352 = vmatpush2.xpose.msra.mxu0 0.0
    %1353 = vmatprep.subr.mxu0 0.0
    %1354 = vmatpush2.xpose.msra.mxu0 0.0
    %1355 = vmatprep.subr.mxu0 0.0
    %1356 = vmatpush2.xpose.msra.mxu0 0.0
    %1357 = vmatprep.subr.mxu0 0.0
    %1358 = vmatpush2.xpose.msra.mxu0 0.0
    %1359 = vmatprep.subr.mxu0 0.0
    %1360 = vmatpush2.xpose.msra.mxu0 0.0
    %1361 = vmatprep.subr.mxu0 0.0
    %1362 = vmatpush2.xpose.msra.mxu0 0.0
    %1363 = vmatprep.subr.mxu0 0.0
    %1364 = vmatpush2.xpose.msra.mxu0 0.0
    %1365 = vmatprep.subr.mxu0 0.0
    %1366 = vmatpush2.xpose.msra.mxu0 0.0
    %1367 = vmatprep.subr.mxu0 0.0
    %1368 = vmatpush2.xpose.msra.mxu0 0.0
    %1369 = vmatprep.subr.mxu0 0.0
    %1370 = vmatpush2.xpose.msra.mxu0 0.0
    %1371 = vmatprep.subr.mxu0 0.0
    %1372 = vmatpush2.xpose.msra.mxu0 0.0
    %1373 = vmatprep.subr.mxu0 0.0
    %1374 = vmatpush2.xpose.msra.mxu0 0.0
    %1375 = vmatprep.subr.mxu0 0.0
    %1376 = vmatpush2.xpose.msra.mxu0 0.0
    %1377 = vmatprep.subr.mxu0 0.0
    %1378 = vmatpush2.xpose.msra.mxu0 0.0
    %1379 = vmatprep.subr.mxu0 0.0
    %1380 = vmatpush2.xpose.msra.mxu0 0.0
    %1381 = vmatprep.subr.mxu0 0.0
    %1382 = vmatpush2.xpose.msra.mxu0 0.0
    %1383 = vmatprep.mubr.f32.mxu0 0.0
    %1384 = vmatmul.mubr.f32.gmra.mxu0 %v1315
    %v1385 = vpop.f32.mrf.mxu0
    %v1386 = vadd.f32 %v483, %v1385
    %v1387 = vpop.f32.mrf.mxu0
    %1388 = vdwg.mxu0
    %1389 = vrot.lane.b32.xlu0 %v475, 112
    %v1390 = vpop.permute.xlu0 %1389
    %1391 = vrot.lane.b32.xlu0 %v475, 80
    %v1392 = vpop.permute.xlu0 %1391
    %v1393 = vsel %vm493, %v1390, 0
    %v1395 = vsel %vm493, %v1392, 0
    %1397 = vmatprep.subr.mxu0 0.0
    %1398 = vmatpush1.xpose.msra.mxu0 0.0
    %1399 = vmatprep.subr.mxu0 0.0
    %1400 = vmatpush1.xpose.msra.mxu0 0.0
    %1401 = vmatprep.subr.mxu0 0.0
    %1402 = vmatpush1.xpose.msra.mxu0 0.0
    %1403 = vmatprep.subr.mxu0 0.0
    %1404 = vmatpush1.xpose.msra.mxu0 0.0
    %1405 = vmatprep.subr.mxu0 0.0
    %1406 = vmatpush1.xpose.msra.mxu0 0.0
    %1407 = vmatprep.subr.mxu0 0.0
    %1408 = vmatpush1.xpose.msra.mxu0 0.0
    %1409 = vmatprep.subr.mxu0 0.0
    %1410 = vmatpush1.xpose.msra.mxu0 0.0
    %1411 = vmatprep.subr.mxu0 0.0
    %1412 = vmatpush1.xpose.msra.mxu0 0.0
    %1413 = vmatprep.subr.mxu0 0.0
    %1414 = vmatpush1.xpose.msra.mxu0 0.0
    %1415 = vmatprep.subr.mxu0 0.0
    %1416 = vmatpush1.xpose.msra.mxu0 0.0
    %1417 = vmatprep.subr.mxu0 0.0
    %1418 = vmatpush1.xpose.msra.mxu0 0.0
    %1419 = vmatprep.subr.mxu0 0.0
    %1420 = vmatpush1.xpose.msra.mxu0 0.0
    %1421 = vmatprep.subr.mxu0 0.0
    %1422 = vmatpush1.xpose.msra.mxu0 0.0
    %1423 = vmatprep.subr.mxu0 0.0
    %1424 = vmatpush1.xpose.msra.mxu0 0.0
    %1425 = vmatprep.subr.mxu0 0.0
    %1426 = vmatpush1.xpose.msra.mxu0 0.0
    %1427 = vmatprep.subr.mxu0 0.0
    %1428 = vmatpush1.xpose.msra.mxu0 %v1395
    %1429 = vmatprep.subr.mxu0 0.0
    %1430 = vmatpush2.xpose.msra.mxu0 0.0
    %1431 = vmatprep.subr.mxu0 0.0
    %1432 = vmatpush2.xpose.msra.mxu0 0.0
    %1433 = vmatprep.subr.mxu0 0.0
    %1434 = vmatpush2.xpose.msra.mxu0 0.0
    %1435 = vmatprep.subr.mxu0 0.0
    %1436 = vmatpush2.xpose.msra.mxu0 0.0
    %1437 = vmatprep.subr.mxu0 0.0
    %1438 = vmatpush2.xpose.msra.mxu0 0.0
    %1439 = vmatprep.subr.mxu0 0.0
    %1440 = vmatpush2.xpose.msra.mxu0 0.0
    %1441 = vmatprep.subr.mxu0 0.0
    %1442 = vmatpush2.xpose.msra.mxu0 0.0
    %1443 = vmatprep.subr.mxu0 0.0
    %1444 = vmatpush2.xpose.msra.mxu0 0.0
    %1445 = vmatprep.subr.mxu0 0.0
    %1446 = vmatpush2.xpose.msra.mxu0 0.0
    %1447 = vmatprep.subr.mxu0 0.0
    %1448 = vmatpush2.xpose.msra.mxu0 0.0
    %1449 = vmatprep.subr.mxu0 0.0
    %1450 = vmatpush2.xpose.msra.mxu0 0.0
    %1451 = vmatprep.subr.mxu0 0.0
    %1452 = vmatpush2.xpose.msra.mxu0 0.0
    %1453 = vmatprep.subr.mxu0 0.0
    %1454 = vmatpush2.xpose.msra.mxu0 0.0
    %1455 = vmatprep.subr.mxu0 0.0
    %1456 = vmatpush2.xpose.msra.mxu0 0.0
    %1457 = vmatprep.subr.mxu0 0.0
    %1458 = vmatpush2.xpose.msra.mxu0 0.0
    %1459 = vmatprep.subr.mxu0 0.0
    %1460 = vmatpush2.xpose.msra.mxu0 0.0
    %1461 = vmatprep.mubr.f32.mxu0 0.0
    %1462 = vmatmul.mubr.f32.gmra.mxu0 %v1393
    %v1463 = vpop.f32.mrf.mxu0
    %v1464 = vadd.f32 %v487, %v1463
    %v1465 = vpop.f32.mrf.mxu0
    %1466 = vdwg.mxu0
    %v1467 = vsel %vm493, %v1386, -inf
    %1468 = vmax.xlane.f32.xlu0 %v1467
    %v1469 = vpop.xlane.xlu0 %1468
    %v1470 = vsel %vm493, %v1464, -inf
    %1471 = vmax.xlane.f32.xlu0 %v1470
    %v1472 = vpop.xlane.xlu0 %1471
    %v1473 = vsub.f32 %v1386, %v1469
    %v1474 = vsub.f32 %v1464, %v1472
    %v1475 = vmul.f32 %v1473, 1.442695
    %v1476 = vpow.pop %v1475
    %v1477 = vmul.f32 %v1474, 1.442695
    %v1478 = vpow.pop %v1477
    %v1479 = vsel %vm493, %v1476, 0.0
    %1480 = vadd.xlane.f32.xlu0 %v1479
    %v1481 = vpop.xlane.xlu0 %1480
    %v1482 = vsel %vm493, %v1478, 0.0
    %1483 = vadd.xlane.f32.xlu0 %v1482
    %v1484 = vpop.xlane.xlu0 %1483
    %v1485 = vrcp.pop %v1481
    %v1486 = vrcp.pop %v1484
    %v1487 = vmul.f32 %v1476, %v1485
    %v1488 = vmul.f32 %v1478, %v1486
    %1489 = vrot.lane.b32.xlu0 %v470, 48
    %v1490 = vpop.permute.xlu0 %1489
    %v1493 = vsel %vm493, %v1487, 0
    %1495 = vmatprep.subr.mxu0 0.0
    %1496 = vmatpush1.msra.mxu0 0.0
    %1497 = vmatprep.subr.mxu0 0.0
    %1498 = vmatpush1.msra.mxu0 0.0
    %1499 = vmatprep.subr.mxu0 0.0
    %1500 = vmatpush1.msra.mxu0 0.0
    %1501 = vmatprep.subr.mxu0 0.0
    %1502 = vmatpush1.msra.mxu0 0.0
    %1503 = vmatprep.subr.mxu0 0.0
    %1504 = vmatpush1.msra.mxu0 0.0
    %1505 = vmatprep.subr.mxu0 0.0
    %1506 = vmatpush1.msra.mxu0 0.0
    %1507 = vmatprep.subr.mxu0 0.0
    %1508 = vmatpush1.msra.mxu0 0.0
    %1509 = vmatprep.subr.mxu0 0.0
    %1510 = vmatpush1.msra.mxu0 0.0
    %1511 = vmatprep.subr.mxu0 0.0
    %1512 = vmatpush1.msra.mxu0 0.0
    %1513 = vmatprep.subr.mxu0 0.0
    %1514 = vmatpush1.msra.mxu0 0.0
    %1515 = vmatprep.subr.mxu0 0.0
    %1516 = vmatpush1.msra.mxu0 0.0
    %1517 = vmatprep.subr.mxu0 0.0
    %1518 = vmatpush1.msra.mxu0 0.0
    %1519 = vmatprep.subr.mxu0 0.0
    %1520 = vmatpush1.msra.mxu0 0.0
    %1521 = vmatprep.subr.mxu0 0.0
    %1522 = vmatpush1.msra.mxu0 0.0
    %1523 = vmatprep.subr.mxu0 0.0
    %1524 = vmatpush1.msra.mxu0 0.0
    %1525 = vmatprep.subr.mxu0 0.0
    %1526 = vmatpush1.msra.mxu0 %v1490
    %1527 = vmatprep.subr.mxu0 0.0
    %1528 = vmatpush2.msra.mxu0 0.0
    %1529 = vmatprep.subr.mxu0 0.0
    %1530 = vmatpush2.msra.mxu0 0.0
    %1531 = vmatprep.subr.mxu0 0.0
    %1532 = vmatpush2.msra.mxu0 0.0
    %1533 = vmatprep.subr.mxu0 0.0
    %1534 = vmatpush2.msra.mxu0 0.0
    %1535 = vmatprep.subr.mxu0 0.0
    %1536 = vmatpush2.msra.mxu0 0.0
    %1537 = vmatprep.subr.mxu0 0.0
    %1538 = vmatpush2.msra.mxu0 0.0
    %1539 = vmatprep.subr.mxu0 0.0
    %1540 = vmatpush2.msra.mxu0 0.0
    %1541 = vmatprep.subr.mxu0 0.0
    %1542 = vmatpush2.msra.mxu0 0.0
    %1543 = vmatprep.subr.mxu0 0.0
    %1544 = vmatpush2.msra.mxu0 0.0
    %1545 = vmatprep.subr.mxu0 0.0
    %1546 = vmatpush2.msra.mxu0 0.0
    %1547 = vmatprep.subr.mxu0 0.0
    %1548 = vmatpush2.msra.mxu0 0.0
    %1549 = vmatprep.subr.mxu0 0.0
    %1550 = vmatpush2.msra.mxu0 0.0
    %1551 = vmatprep.subr.mxu0 0.0
    %1552 = vmatpush2.msra.mxu0 0.0
    %1553 = vmatprep.subr.mxu0 0.0
    %1554 = vmatpush2.msra.mxu0 0.0
    %1555 = vmatprep.subr.mxu0 0.0
    %1556 = vmatpush2.msra.mxu0 0.0
    %1557 = vmatprep.subr.mxu0 0.0
    %1558 = vmatpush2.msra.mxu0 0.0
    %1559 = vmatprep.mubr.f32.mxu0 0.0
    %1560 = vmatmul.mubr.f32.gmra.mxu0 %v1493
    %v1561 = vpop.f32.mrf.mxu0
    %v1562 = vadd.f32 0.0, %v1561
    %v1563 = vpop.f32.mrf.mxu0
    %1564 = vdwg.mxu0
    %1565 = vrot.lane.b32.xlu0 %v475, 48
    %v1566 = vpop.permute.xlu0 %1565
    %v1569 = vsel %vm493, %v1488, 0
    %1571 = vmatprep.subr.mxu0 0.0
    %1572 = vmatpush1.msra.mxu0 0.0
    %1573 = vmatprep.subr.mxu0 0.0
    %1574 = vmatpush1.msra.mxu0 0.0
    %1575 = vmatprep.subr.mxu0 0.0
    %1576 = vmatpush1.msra.mxu0 0.0
    %1577 = vmatprep.subr.mxu0 0.0
    %1578 = vmatpush1.msra.mxu0 0.0
    %1579 = vmatprep.subr.mxu0 0.0
    %1580 = vmatpush1.msra.mxu0 0.0
    %1581 = vmatprep.subr.mxu0 0.0
    %1582 = vmatpush1.msra.mxu0 0.0
    %1583 = vmatprep.subr.mxu0 0.0
    %1584 = vmatpush1.msra.mxu0 0.0
    %1585 = vmatprep.subr.mxu0 0.0
    %1586 = vmatpush1.msra.mxu0 0.0
    %1587 = vmatprep.subr.mxu0 0.0
    %1588 = vmatpush1.msra.mxu0 0.0
    %1589 = vmatprep.subr.mxu0 0.0
    %1590 = vmatpush1.msra.mxu0 0.0
    %1591 = vmatprep.subr.mxu0 0.0
    %1592 = vmatpush1.msra.mxu0 0.0
    %1593 = vmatprep.subr.mxu0 0.0
    %1594 = vmatpush1.msra.mxu0 0.0
    %1595 = vmatprep.subr.mxu0 0.0
    %1596 = vmatpush1.msra.mxu0 0.0
    %1597 = vmatprep.subr.mxu0 0.0
    %1598 = vmatpush1.msra.mxu0 0.0
    %1599 = vmatprep.subr.mxu0 0.0
    %1600 = vmatpush1.msra.mxu0 0.0
    %1601 = vmatprep.subr.mxu0 0.0
    %1602 = vmatpush1.msra.mxu0 %v1566
    %1603 = vmatprep.subr.mxu0 0.0
    %1604 = vmatpush2.msra.mxu0 0.0
    %1605 = vmatprep.subr.mxu0 0.0
    %1606 = vmatpush2.msra.mxu0 0.0
    %1607 = vmatprep.subr.mxu0 0.0
    %1608 = vmatpush2.msra.mxu0 0.0
    %1609 = vmatprep.subr.mxu0 0.0
    %1610 = vmatpush2.msra.mxu0 0.0
    %1611 = vmatprep.subr.mxu0 0.0
    %1612 = vmatpush2.msra.mxu0 0.0
    %1613 = vmatprep.subr.mxu0 0.0
    %1614 = vmatpush2.msra.mxu0 0.0
    %1615 = vmatprep.subr.mxu0 0.0
    %1616 = vmatpush2.msra.mxu0 0.0
    %1617 = vmatprep.subr.mxu0 0.0
    %1618 = vmatpush2.msra.mxu0 0.0
    %1619 = vmatprep.subr.mxu0 0.0
    %1620 = vmatpush2.msra.mxu0 0.0
    %1621 = vmatprep.subr.mxu0 0.0
    %1622 = vmatpush2.msra.mxu0 0.0
    %1623 = vmatprep.subr.mxu0 0.0
    %1624 = vmatpush2.msra.mxu0 0.0
    %1625 = vmatprep.subr.mxu0 0.0
    %1626 = vmatpush2.msra.mxu0 0.0
    %1627 = vmatprep.subr.mxu0 0.0
    %1628 = vmatpush2.msra.mxu0 0.0
    %1629 = vmatprep.subr.mxu0 0.0
    %1630 = vmatpush2.msra.mxu0 0.0
    %1631 = vmatprep.subr.mxu0 0.0
    %1632 = vmatpush2.msra.mxu0 0.0
    %1633 = vmatprep.subr.mxu0 0.0
    %1634 = vmatpush2.msra.mxu0 0.0
    %1635 = vmatprep.mubr.f32.mxu0 0.0
    %1636 = vmatmul.mubr.f32.gmra.mxu0 %v1569
    %v1637 = vpop.f32.mrf.mxu0
    %v1638 = vadd.f32 0.0, %v1637
    %v1639 = vpop.f32.mrf.mxu0
    %1640 = vdwg.mxu0
    %v1642 = vsel %vm493, %v1562, 0
    %v1645 = vsel %vm493, %v1638, 0
    %1647 = vmatprep.subr.mxu0 0.0
    %1648 = vmatpush1.msra.mxu0 0.0
    %1649 = vmatprep.subr.mxu0 0.0
    %1650 = vmatpush1.msra.mxu0 0.0
    %1651 = vmatprep.subr.mxu0 0.0
    %1652 = vmatpush1.msra.mxu0 0.0
    %1653 = vmatprep.subr.mxu0 0.0
    %1654 = vmatpush1.msra.mxu0 0.0
    %1655 = vmatprep.subr.mxu0 0.0
    %1656 = vmatpush1.msra.mxu0 0.0
    %1657 = vmatprep.subr.mxu0 0.0
    %1658 = vmatpush1.msra.mxu0 0.0
    %1659 = vmatprep.subr.mxu0 0.0
    %1660 = vmatpush1.msra.mxu0 0.0
    %1661 = vmatprep.subr.mxu0 0.0
    %1662 = vmatpush1.msra.mxu0 0.0
    %1663 = vmatprep.subr.mxu0 0.0
    %1664 = vmatpush1.msra.mxu0 0.0
    %1665 = vmatprep.subr.mxu0 0.0
    %1666 = vmatpush1.msra.mxu0 0.0
    %1667 = vmatprep.subr.mxu0 0.0
    %1668 = vmatpush1.msra.mxu0 0.0
    %1669 = vmatprep.subr.mxu0 0.0
    %1670 = vmatpush1.msra.mxu0 0.0
    %1671 = vmatprep.subr.mxu0 0.0
    %1672 = vmatpush1.msra.mxu0 0.0
    %1673 = vmatprep.subr.mxu0 0.0
    %1674 = vmatpush1.msra.mxu0 0.0
    %1675 = vmatprep.subr.mxu0 0.0
    %1676 = vmatpush1.msra.mxu0 0.0
    %1677 = vmatprep.subr.mxu0 0.0
    %1678 = vmatpush1.msra.mxu0 %v374
    %1679 = vmatprep.subr.mxu0 0.0
    %1680 = vmatpush2.msra.mxu0 0.0
    %1681 = vmatprep.subr.mxu0 0.0
    %1682 = vmatpush2.msra.mxu0 0.0
    %1683 = vmatprep.subr.mxu0 0.0
    %1684 = vmatpush2.msra.mxu0 0.0
    %1685 = vmatprep.subr.mxu0 0.0
    %1686 = vmatpush2.msra.mxu0 0.0
    %1687 = vmatprep.subr.mxu0 0.0
    %1688 = vmatpush2.msra.mxu0 0.0
    %1689 = vmatprep.subr.mxu0 0.0
    %1690 = vmatpush2.msra.mxu0 0.0
    %1691 = vmatprep.subr.mxu0 0.0
    %1692 = vmatpush2.msra.mxu0 0.0
    %1693 = vmatprep.subr.mxu0 0.0
    %1694 = vmatpush2.msra.mxu0 0.0
    %1695 = vmatprep.subr.mxu0 0.0
    %1696 = vmatpush2.msra.mxu0 0.0
    %1697 = vmatprep.subr.mxu0 0.0
    %1698 = vmatpush2.msra.mxu0 0.0
    %1699 = vmatprep.subr.mxu0 0.0
    %1700 = vmatpush2.msra.mxu0 0.0
    %1701 = vmatprep.subr.mxu0 0.0
    %1702 = vmatpush2.msra.mxu0 0.0
    %1703 = vmatprep.subr.mxu0 0.0
    %1704 = vmatpush2.msra.mxu0 0.0
    %1705 = vmatprep.subr.mxu0 0.0
    %1706 = vmatpush2.msra.mxu0 0.0
    %1707 = vmatprep.subr.mxu0 0.0
    %1708 = vmatpush2.msra.mxu0 0.0
    %1709 = vmatprep.subr.mxu0 0.0
    %1710 = vmatpush2.msra.mxu0 0.0
    %1711 = vmatprep.mubr.f32.mxu0 0.0
    %1712 = vmatmul.mubr.f32.gmra.mxu0 %v1642
    %v1713 = vpop.f32.mrf.mxu0
    %v1714 = vadd.f32 0.0, %v1713
    %v1715 = vpop.f32.mrf.mxu0
    %1716 = vmatprep.mubr.f32.mxu0 0.0
    %1717 = vmatmul.mubr.f32.gmra.mxu0 %v1645
    %v1718 = vpop.f32.mrf.mxu0
    %v1719 = vadd.f32 0.0, %v1718
    %v1720 = vpop.f32.mrf.mxu0
    %1721 = vdwg.mxu0
    %v1722 = vadd.f32 %v1303, %v1714
    %v1723 = vadd.f32 %v1308, %v1719
    %1724 = vrot.lane.b32.xlu0 %v470, 104
    %v1725 = vpop.permute.xlu0 %1724
    %1726 = vrot.lane.b32.xlu0 %v470, 72
    %v1727 = vpop.permute.xlu0 %1726
    %v1728 = vsel %vm493, %v1725, 0
    %v1730 = vsel %vm493, %v1727, 0
    %1732 = vmatprep.subr.mxu0 0.0
    %1733 = vmatpush1.xpose.msra.mxu0 0.0
    %1734 = vmatprep.subr.mxu0 0.0
    %1735 = vmatpush1.xpose.msra.mxu0 0.0
    %1736 = vmatprep.subr.mxu0 0.0
    %1737 = vmatpush1.xpose.msra.mxu0 0.0
    %1738 = vmatprep.subr.mxu0 0.0
    %1739 = vmatpush1.xpose.msra.mxu0 0.0
    %1740 = vmatprep.subr.mxu0 0.0
    %1741 = vmatpush1.xpose.msra.mxu0 0.0
    %1742 = vmatprep.subr.mxu0 0.0
    %1743 = vmatpush1.xpose.msra.mxu0 0.0
    %1744 = vmatprep.subr.mxu0 0.0
    %1745 = vmatpush1.xpose.msra.mxu0 0.0
    %1746 = vmatprep.subr.mxu0 0.0
    %1747 = vmatpush1.xpose.msra.mxu0 0.0
    %1748 = vmatprep.subr.mxu0 0.0
    %1749 = vmatpush1.xpose.msra.mxu0 0.0
    %1750 = vmatprep.subr.mxu0 0.0
    %1751 = vmatpush1.xpose.msra.mxu0 0.0
    %1752 = vmatprep.subr.mxu0 0.0
    %1753 = vmatpush1.xpose.msra.mxu0 0.0
    %1754 = vmatprep.subr.mxu0 0.0
    %1755 = vmatpush1.xpose.msra.mxu0 0.0
    %1756 = vmatprep.subr.mxu0 0.0
    %1757 = vmatpush1.xpose.msra.mxu0 0.0
    %1758 = vmatprep.subr.mxu0 0.0
    %1759 = vmatpush1.xpose.msra.mxu0 0.0
    %1760 = vmatprep.subr.mxu0 0.0
    %1761 = vmatpush1.xpose.msra.mxu0 0.0
    %1762 = vmatprep.subr.mxu0 0.0
    %1763 = vmatpush1.xpose.msra.mxu0 %v1730
    %1764 = vmatprep.subr.mxu0 0.0
    %1765 = vmatpush2.xpose.msra.mxu0 0.0
    %1766 = vmatprep.subr.mxu0 0.0
    %1767 = vmatpush2.xpose.msra.mxu0 0.0
    %1768 = vmatprep.subr.mxu0 0.0
    %1769 = vmatpush2.xpose.msra.mxu0 0.0
    %1770 = vmatprep.subr.mxu0 0.0
    %1771 = vmatpush2.xpose.msra.mxu0 0.0
    %1772 = vmatprep.subr.mxu0 0.0
    %1773 = vmatpush2.xpose.msra.mxu0 0.0
    %1774 = vmatprep.subr.mxu0 0.0
    %1775 = vmatpush2.xpose.msra.mxu0 0.0
    %1776 = vmatprep.subr.mxu0 0.0
    %1777 = vmatpush2.xpose.msra.mxu0 0.0
    %1778 = vmatprep.subr.mxu0 0.0
    %1779 = vmatpush2.xpose.msra.mxu0 0.0
    %1780 = vmatprep.subr.mxu0 0.0
    %1781 = vmatpush2.xpose.msra.mxu0 0.0
    %1782 = vmatprep.subr.mxu0 0.0
    %1783 = vmatpush2.xpose.msra.mxu0 0.0
    %1784 = vmatprep.subr.mxu0 0.0
    %1785 = vmatpush2.xpose.msra.mxu0 0.0
    %1786 = vmatprep.subr.mxu0 0.0
    %1787 = vmatpush2.xpose.msra.mxu0 0.0
    %1788 = vmatprep.subr.mxu0 0.0
    %1789 = vmatpush2.xpose.msra.mxu0 0.0
    %1790 = vmatprep.subr.mxu0 0.0
    %1791 = vmatpush2.xpose.msra.mxu0 0.0
    %1792 = vmatprep.subr.mxu0 0.0
    %1793 = vmatpush2.xpose.msra.mxu0 0.0
    %1794 = vmatprep.subr.mxu0 0.0
    %1795 = vmatpush2.xpose.msra.mxu0 0.0
    %1796 = vmatprep.mubr.f32.mxu0 0.0
    %1797 = vmatmul.mubr.f32.gmra.mxu0 %v1728
    %v1798 = vpop.f32.mrf.mxu0
    %v1799 = vadd.f32 %v483, %v1798
    %v1800 = vpop.f32.mrf.mxu0
    %1801 = vdwg.mxu0
    %1802 = vrot.lane.b32.xlu0 %v475, 104
    %v1803 = vpop.permute.xlu0 %1802
    %1804 = vrot.lane.b32.xlu0 %v475, 72
    %v1805 = vpop.permute.xlu0 %1804
    %v1806 = vsel %vm493, %v1803, 0
    %v1808 = vsel %vm493, %v1805, 0
    %1810 = vmatprep.subr.mxu0 0.0
    %1811 = vmatpush1.xpose.msra.mxu0 0.0
    %1812 = vmatprep.subr.mxu0 0.0
    %1813 = vmatpush1.xpose.msra.mxu0 0.0
    %1814 = vmatprep.subr.mxu0 0.0
    %1815 = vmatpush1.xpose.msra.mxu0 0.0
    %1816 = vmatprep.subr.mxu0 0.0
    %1817 = vmatpush1.xpose.msra.mxu0 0.0
    %1818 = vmatprep.subr.mxu0 0.0
    %1819 = vmatpush1.xpose.msra.mxu0 0.0
    %1820 = vmatprep.subr.mxu0 0.0
    %1821 = vmatpush1.xpose.msra.mxu0 0.0
    %1822 = vmatprep.subr.mxu0 0.0
    %1823 = vmatpush1.xpose.msra.mxu0 0.0
    %1824 = vmatprep.subr.mxu0 0.0
    %1825 = vmatpush1.xpose.msra.mxu0 0.0
    %1826 = vmatprep.subr.mxu0 0.0
    %1827 = vmatpush1.xpose.msra.mxu0 0.0
    %1828 = vmatprep.subr.mxu0 0.0
    %1829 = vmatpush1.xpose.msra.mxu0 0.0
    %1830 = vmatprep.subr.mxu0 0.0
    %1831 = vmatpush1.xpose.msra.mxu0 0.0
    %1832 = vmatprep.subr.mxu0 0.0
    %1833 = vmatpush1.xpose.msra.mxu0 0.0
    %1834 = vmatprep.subr.mxu0 0.0
    %1835 = vmatpush1.xpose.msra.mxu0 0.0
    %1836 = vmatprep.subr.mxu0 0.0
    %1837 = vmatpush1.xpose.msra.mxu0 0.0
    %1838 = vmatprep.subr.mxu0 0.0
    %1839 = vmatpush1.xpose.msra.mxu0 0.0
    %1840 = vmatprep.subr.mxu0 0.0
    %1841 = vmatpush1.xpose.msra.mxu0 %v1808
    %1842 = vmatprep.subr.mxu0 0.0
    %1843 = vmatpush2.xpose.msra.mxu0 0.0
    %1844 = vmatprep.subr.mxu0 0.0
    %1845 = vmatpush2.xpose.msra.mxu0 0.0
    %1846 = vmatprep.subr.mxu0 0.0
    %1847 = vmatpush2.xpose.msra.mxu0 0.0
    %1848 = vmatprep.subr.mxu0 0.0
    %1849 = vmatpush2.xpose.msra.mxu0 0.0
    %1850 = vmatprep.subr.mxu0 0.0
    %1851 = vmatpush2.xpose.msra.mxu0 0.0
    %1852 = vmatprep.subr.mxu0 0.0
    %1853 = vmatpush2.xpose.msra.mxu0 0.0
    %1854 = vmatprep.subr.mxu0 0.0
    %1855 = vmatpush2.xpose.msra.mxu0 0.0
    %1856 = vmatprep.subr.mxu0 0.0
    %1857 = vmatpush2.xpose.msra.mxu0 0.0
    %1858 = vmatprep.subr.mxu0 0.0
    %1859 = vmatpush2.xpose.msra.mxu0 0.0
    %1860 = vmatprep.subr.mxu0 0.0
    %1861 = vmatpush2.xpose.msra.mxu0 0.0
    %1862 = vmatprep.subr.mxu0 0.0
    %1863 = vmatpush2.xpose.msra.mxu0 0.0
    %1864 = vmatprep.subr.mxu0 0.0
    %1865 = vmatpush2.xpose.msra.mxu0 0.0
    %1866 = vmatprep.subr.mxu0 0.0
    %1867 = vmatpush2.xpose.msra.mxu0 0.0
    %1868 = vmatprep.subr.mxu0 0.0
    %1869 = vmatpush2.xpose.msra.mxu0 0.0
    %1870 = vmatprep.subr.mxu0 0.0
    %1871 = vmatpush2.xpose.msra.mxu0 0.0
    %1872 = vmatprep.subr.mxu0 0.0
    %1873 = vmatpush2.xpose.msra.mxu0 0.0
    %1874 = vmatprep.mubr.f32.mxu0 0.0
    %1875 = vmatmul.mubr.f32.gmra.mxu0 %v1806
    %v1876 = vpop.f32.mrf.mxu0
    %v1877 = vadd.f32 %v487, %v1876
    %v1878 = vpop.f32.mrf.mxu0
    %1879 = vdwg.mxu0
    %v1880 = vsel %vm493, %v1799, -inf
    %1881 = vmax.xlane.f32.xlu0 %v1880
    %v1882 = vpop.xlane.xlu0 %1881
    %v1883 = vsel %vm493, %v1877, -inf
    %1884 = vmax.xlane.f32.xlu0 %v1883
    %v1885 = vpop.xlane.xlu0 %1884
    %v1886 = vsub.f32 %v1799, %v1882
    %v1887 = vsub.f32 %v1877, %v1885
    %v1888 = vmul.f32 %v1886, 1.442695
    %v1889 = vpow.pop %v1888
    %v1890 = vmul.f32 %v1887, 1.442695
    %v1891 = vpow.pop %v1890
    %v1892 = vsel %vm493, %v1889, 0.0
    %1893 = vadd.xlane.f32.xlu0 %v1892
    %v1894 = vpop.xlane.xlu0 %1893
    %v1895 = vsel %vm493, %v1891, 0.0
    %1896 = vadd.xlane.f32.xlu0 %v1895
    %v1897 = vpop.xlane.xlu0 %1896
    %v1898 = vrcp.pop %v1894
    %v1899 = vrcp.pop %v1897
    %v1900 = vmul.f32 %v1889, %v1898
    %v1901 = vmul.f32 %v1891, %v1899
    %1902 = vrot.lane.b32.xlu0 %v470, 40
    %v1903 = vpop.permute.xlu0 %1902
    %v1906 = vsel %vm493, %v1900, 0
    %1908 = vmatprep.subr.mxu0 0.0
    %1909 = vmatpush1.msra.mxu0 0.0
    %1910 = vmatprep.subr.mxu0 0.0
    %1911 = vmatpush1.msra.mxu0 0.0
    %1912 = vmatprep.subr.mxu0 0.0
    %1913 = vmatpush1.msra.mxu0 0.0
    %1914 = vmatprep.subr.mxu0 0.0
    %1915 = vmatpush1.msra.mxu0 0.0
    %1916 = vmatprep.subr.mxu0 0.0
    %1917 = vmatpush1.msra.mxu0 0.0
    %1918 = vmatprep.subr.mxu0 0.0
    %1919 = vmatpush1.msra.mxu0 0.0
    %1920 = vmatprep.subr.mxu0 0.0
    %1921 = vmatpush1.msra.mxu0 0.0
    %1922 = vmatprep.subr.mxu0 0.0
    %1923 = vmatpush1.msra.mxu0 0.0
    %1924 = vmatprep.subr.mxu0 0.0
    %1925 = vmatpush1.msra.mxu0 0.0
    %1926 = vmatprep.subr.mxu0 0.0
    %1927 = vmatpush1.msra.mxu0 0.0
    %1928 = vmatprep.subr.mxu0 0.0
    %1929 = vmatpush1.msra.mxu0 0.0
    %1930 = vmatprep.subr.mxu0 0.0
    %1931 = vmatpush1.msra.mxu0 0.0
    %1932 = vmatprep.subr.mxu0 0.0
    %1933 = vmatpush1.msra.mxu0 0.0
    %1934 = vmatprep.subr.mxu0 0.0
    %1935 = vmatpush1.msra.mxu0 0.0
    %1936 = vmatprep.subr.mxu0 0.0
    %1937 = vmatpush1.msra.mxu0 0.0
    %1938 = vmatprep.subr.mxu0 0.0
    %1939 = vmatpush1.msra.mxu0 %v1903
    %1940 = vmatprep.subr.mxu0 0.0
    %1941 = vmatpush2.msra.mxu0 0.0
    %1942 = vmatprep.subr.mxu0 0.0
    %1943 = vmatpush2.msra.mxu0 0.0
    %1944 = vmatprep.subr.mxu0 0.0
    %1945 = vmatpush2.msra.mxu0 0.0
    %1946 = vmatprep.subr.mxu0 0.0
    %1947 = vmatpush2.msra.mxu0 0.0
    %1948 = vmatprep.subr.mxu0 0.0
    %1949 = vmatpush2.msra.mxu0 0.0
    %1950 = vmatprep.subr.mxu0 0.0
    %1951 = vmatpush2.msra.mxu0 0.0
    %1952 = vmatprep.subr.mxu0 0.0
    %1953 = vmatpush2.msra.mxu0 0.0
    %1954 = vmatprep.subr.mxu0 0.0
    %1955 = vmatpush2.msra.mxu0 0.0
    %1956 = vmatprep.subr.mxu0 0.0
    %1957 = vmatpush2.msra.mxu0 0.0
    %1958 = vmatprep.subr.mxu0 0.0
    %1959 = vmatpush2.msra.mxu0 0.0
    %1960 = vmatprep.subr.mxu0 0.0
    %1961 = vmatpush2.msra.mxu0 0.0
    %1962 = vmatprep.subr.mxu0 0.0
    %1963 = vmatpush2.msra.mxu0 0.0
    %1964 = vmatprep.subr.mxu0 0.0
    %1965 = vmatpush2.msra.mxu0 0.0
    %1966 = vmatprep.subr.mxu0 0.0
    %1967 = vmatpush2.msra.mxu0 0.0
    %1968 = vmatprep.subr.mxu0 0.0
    %1969 = vmatpush2.msra.mxu0 0.0
    %1970 = vmatprep.subr.mxu0 0.0
    %1971 = vmatpush2.msra.mxu0 0.0
    %1972 = vmatprep.mubr.f32.mxu0 0.0
    %1973 = vmatmul.mubr.f32.gmra.mxu0 %v1906
    %v1974 = vpop.f32.mrf.mxu0
    %v1975 = vadd.f32 0.0, %v1974
    %v1976 = vpop.f32.mrf.mxu0
    %1977 = vdwg.mxu0
    %1978 = vrot.lane.b32.xlu0 %v475, 40
    %v1979 = vpop.permute.xlu0 %1978
    %v1982 = vsel %vm493, %v1901, 0
    %1984 = vmatprep.subr.mxu0 0.0
    %1985 = vmatpush1.msra.mxu0 0.0
    %1986 = vmatprep.subr.mxu0 0.0
    %1987 = vmatpush1.msra.mxu0 0.0
    %1988 = vmatprep.subr.mxu0 0.0
    %1989 = vmatpush1.msra.mxu0 0.0
    %1990 = vmatprep.subr.mxu0 0.0
    %1991 = vmatpush1.msra.mxu0 0.0
    %1992 = vmatprep.subr.mxu0 0.0
    %1993 = vmatpush1.msra.mxu0 0.0
    %1994 = vmatprep.subr.mxu0 0.0
    %1995 = vmatpush1.msra.mxu0 0.0
    %1996 = vmatprep.subr.mxu0 0.0
    %1997 = vmatpush1.msra.mxu0 0.0
    %1998 = vmatprep.subr.mxu0 0.0
    %1999 = vmatpush1.msra.mxu0 0.0
    %2000 = vmatprep.subr.mxu0 0.0
    %2001 = vmatpush1.msra.mxu0 0.0
    %2002 = vmatprep.subr.mxu0 0.0
    %2003 = vmatpush1.msra.mxu0 0.0
    %2004 = vmatprep.subr.mxu0 0.0
    %2005 = vmatpush1.msra.mxu0 0.0
    %2006 = vmatprep.subr.mxu0 0.0
    %2007 = vmatpush1.msra.mxu0 0.0
    %2008 = vmatprep.subr.mxu0 0.0
    %2009 = vmatpush1.msra.mxu0 0.0
    %2010 = vmatprep.subr.mxu0 0.0
    %2011 = vmatpush1.msra.mxu0 0.0
    %2012 = vmatprep.subr.mxu0 0.0
    %2013 = vmatpush1.msra.mxu0 0.0
    %2014 = vmatprep.subr.mxu0 0.0
    %2015 = vmatpush1.msra.mxu0 %v1979
    %2016 = vmatprep.subr.mxu0 0.0
    %2017 = vmatpush2.msra.mxu0 0.0
    %2018 = vmatprep.subr.mxu0 0.0
    %2019 = vmatpush2.msra.mxu0 0.0
    %2020 = vmatprep.subr.mxu0 0.0
    %2021 = vmatpush2.msra.mxu0 0.0
    %2022 = vmatprep.subr.mxu0 0.0
    %2023 = vmatpush2.msra.mxu0 0.0
    %2024 = vmatprep.subr.mxu0 0.0
    %2025 = vmatpush2.msra.mxu0 0.0
    %2026 = vmatprep.subr.mxu0 0.0
    %2027 = vmatpush2.msra.mxu0 0.0
    %2028 = vmatprep.subr.mxu0 0.0
    %2029 = vmatpush2.msra.mxu0 0.0
    %2030 = vmatprep.subr.mxu0 0.0
    %2031 = vmatpush2.msra.mxu0 0.0
    %2032 = vmatprep.subr.mxu0 0.0
    %2033 = vmatpush2.msra.mxu0 0.0
    %2034 = vmatprep.subr.mxu0 0.0
    %2035 = vmatpush2.msra.mxu0 0.0
    %2036 = vmatprep.subr.mxu0 0.0
    %2037 = vmatpush2.msra.mxu0 0.0
    %2038 = vmatprep.subr.mxu0 0.0
    %2039 = vmatpush2.msra.mxu0 0.0
    %2040 = vmatprep.subr.mxu0 0.0
    %2041 = vmatpush2.msra.mxu0 0.0
    %2042 = vmatprep.subr.mxu0 0.0
    %2043 = vmatpush2.msra.mxu0 0.0
    %2044 = vmatprep.subr.mxu0 0.0
    %2045 = vmatpush2.msra.mxu0 0.0
    %2046 = vmatprep.subr.mxu0 0.0
    %2047 = vmatpush2.msra.mxu0 0.0
    %2048 = vmatprep.mubr.f32.mxu0 0.0
    %2049 = vmatmul.mubr.f32.gmra.mxu0 %v1982
    %v2050 = vpop.f32.mrf.mxu0
    %v2051 = vadd.f32 0.0, %v2050
    %v2052 = vpop.f32.mrf.mxu0
    %2053 = vdwg.mxu0
    %v2055 = vsel %vm493, %v1975, 0
    %v2058 = vsel %vm493, %v2051, 0
    %2060 = vmatprep.subr.mxu0 0.0
    %2061 = vmatpush1.msra.mxu0 0.0
    %2062 = vmatprep.subr.mxu0 0.0
    %2063 = vmatpush1.msra.mxu0 0.0
    %2064 = vmatprep.subr.mxu0 0.0
    %2065 = vmatpush1.msra.mxu0 0.0
    %2066 = vmatprep.subr.mxu0 0.0
    %2067 = vmatpush1.msra.mxu0 0.0
    %2068 = vmatprep.subr.mxu0 0.0
    %2069 = vmatpush1.msra.mxu0 0.0
    %2070 = vmatprep.subr.mxu0 0.0
    %2071 = vmatpush1.msra.mxu0 0.0
    %2072 = vmatprep.subr.mxu0 0.0
    %2073 = vmatpush1.msra.mxu0 0.0
    %2074 = vmatprep.subr.mxu0 0.0
    %2075 = vmatpush1.msra.mxu0 0.0
    %2076 = vmatprep.subr.mxu0 0.0
    %2077 = vmatpush1.msra.mxu0 0.0
    %2078 = vmatprep.subr.mxu0 0.0
    %2079 = vmatpush1.msra.mxu0 0.0
    %2080 = vmatprep.subr.mxu0 0.0
    %2081 = vmatpush1.msra.mxu0 0.0
    %2082 = vmatprep.subr.mxu0 0.0
    %2083 = vmatpush1.msra.mxu0 0.0
    %2084 = vmatprep.subr.mxu0 0.0
    %2085 = vmatpush1.msra.mxu0 0.0
    %2086 = vmatprep.subr.mxu0 0.0
    %2087 = vmatpush1.msra.mxu0 0.0
    %2088 = vmatprep.subr.mxu0 0.0
    %2089 = vmatpush1.msra.mxu0 0.0
    %2090 = vmatprep.subr.mxu0 0.0
    %2091 = vmatpush1.msra.mxu0 %v375
    %2092 = vmatprep.subr.mxu0 0.0
    %2093 = vmatpush2.msra.mxu0 0.0
    %2094 = vmatprep.subr.mxu0 0.0
    %2095 = vmatpush2.msra.mxu0 0.0
    %2096 = vmatprep.subr.mxu0 0.0
    %2097 = vmatpush2.msra.mxu0 0.0
    %2098 = vmatprep.subr.mxu0 0.0
    %2099 = vmatpush2.msra.mxu0 0.0
    %2100 = vmatprep.subr.mxu0 0.0
    %2101 = vmatpush2.msra.mxu0 0.0
    %2102 = vmatprep.subr.mxu0 0.0
    %2103 = vmatpush2.msra.mxu0 0.0
    %2104 = vmatprep.subr.mxu0 0.0
    %2105 = vmatpush2.msra.mxu0 0.0
    %2106 = vmatprep.subr.mxu0 0.0
    %2107 = vmatpush2.msra.mxu0 0.0
    %2108 = vmatprep.subr.mxu0 0.0
    %2109 = vmatpush2.msra.mxu0 0.0
    %2110 = vmatprep.subr.mxu0 0.0
    %2111 = vmatpush2.msra.mxu0 0.0
    %2112 = vmatprep.subr.mxu0 0.0
    %2113 = vmatpush2.msra.mxu0 0.0
    %2114 = vmatprep.subr.mxu0 0.0
    %2115 = vmatpush2.msra.mxu0 0.0
    %2116 = vmatprep.subr.mxu0 0.0
    %2117 = vmatpush2.msra.mxu0 0.0
    %2118 = vmatprep.subr.mxu0 0.0
    %2119 = vmatpush2.msra.mxu0 0.0
    %2120 = vmatprep.subr.mxu0 0.0
    %2121 = vmatpush2.msra.mxu0 0.0
    %2122 = vmatprep.subr.mxu0 0.0
    %2123 = vmatpush2.msra.mxu0 0.0
    %2124 = vmatprep.mubr.f32.mxu0 0.0
    %2125 = vmatmul.mubr.f32.gmra.mxu0 %v2055
    %v2126 = vpop.f32.mrf.mxu0
    %v2127 = vadd.f32 0.0, %v2126
    %v2128 = vpop.f32.mrf.mxu0
    %2129 = vmatprep.mubr.f32.mxu0 0.0
    %2130 = vmatmul.mubr.f32.gmra.mxu0 %v2058
    %v2131 = vpop.f32.mrf.mxu0
    %v2132 = vadd.f32 0.0, %v2131
    %v2133 = vpop.f32.mrf.mxu0
    %2134 = vdwg.mxu0
    %v2135 = vadd.f32 %v1722, %v2127
    %v2136 = vadd.f32 %v1723, %v2132
    %v2138 = vlaneseq
    %v2139 = vshrl.u32 %v2138, 7
    %v2140 = vsub.s32 0, %v2139
    %v2141 = vrot.slane %v376, %v2140
    %v2143 = vadd.f32 %v2135, %v2141
    %v2144 = vadd.f32 %v2136, %v2141
    %v2145 = vadd.f32 %v2143, %v359
    %v2146 = vadd.f32 %v2144, %v360
    %v2147 = vld [vmem:[%s13] sm:$0x1]
    %v2148 = vld [vmem:[%s14] sm:$0x1]
    %v2149 = vsel %vm317, %v2145, 0.0
    %2150 = vadd.xlane.f32.xlu0 %v2149
    %v2151 = vpop.xlane.xlu0 %2150
    %v2152 = vsel %vm317, %v2146, 0.0
    %2153 = vadd.xlane.f32.xlu0 %v2152
    %v2154 = vpop.xlane.xlu0 %2153
    %v2155 = vmul.f32 %v2151, %v324
    %v2156 = vmul.f32 %v2154, %v324
    %v2157 = vsub.f32 %v2145, %v2155
    %v2158 = vsub.f32 %v2146, %v2156
    %v2159 = vmul.f32 %v2157, %v2157
    %v2160 = vmul.f32 %v2158, %v2158
    %v2161 = vsel %vm317, %v2159, 0.0
    %2162 = vadd.xlane.f32.xlu0 %v2161
    %v2163 = vpop.xlane.xlu0 %2162
    %v2164 = vsel %vm317, %v2160, 0.0
    %2165 = vadd.xlane.f32.xlu0 %v2164
    %v2166 = vpop.xlane.xlu0 %2165
    %v2167 = vmul.f32 %v2163, %v324
    %v2168 = vmul.f32 %v2166, %v324
    %v2169 = vadd.f32 %v2167, 1e-12
    %v2170 = vadd.f32 %v2168, 1e-12
    %v2171 = vrsqrt.pop %v2169
    %v2172 = vrsqrt.pop %v2170
    %v2173 = vmul.f32 %v2157, %v2171
    %v2174 = vmul.f32 %v2158, %v2172
    %v2176 = vlaneseq
    %v2177 = vshrl.u32 %v2176, 7
    %v2178 = vsub.s32 0, %v2177
    %v2179 = vrot.slane %v2147, %v2178
    %v2181 = vmul.f32 %v2173, %v2179
    %v2182 = vmul.f32 %v2174, %v2179
    %v2184 = vlaneseq
    %v2185 = vshrl.u32 %v2184, 7
    %v2186 = vsub.s32 0, %v2185
    %v2187 = vrot.slane %v2148, %v2186
    %v2189 = vadd.f32 %v2181, %v2187
    %v2190 = vadd.f32 %v2182, %v2187
    %v2192 = vlaneseq
    %v2193 = vshrl.u32 %v2192, 7
    %v2194 = vsub.s32 0, %v2193
    %v2195 = vrot.slane %v381, %v2194
    %v2198 = vsel %vm317, %v2189, 0
    %v2201 = vsel %vm317, %v2190, 0
    %2203 = vmatprep.subr.mxu0 0.0
    %2204 = vmatpush1.msra.mxu0 0.0
    %2205 = vmatprep.subr.mxu0 0.0
    %2206 = vmatpush1.msra.mxu0 0.0
    %2207 = vmatprep.subr.mxu0 0.0
    %2208 = vmatpush1.msra.mxu0 0.0
    %2209 = vmatprep.subr.mxu0 0.0
    %2210 = vmatpush1.msra.mxu0 0.0
    %2211 = vmatprep.subr.mxu0 0.0
    %2212 = vmatpush1.msra.mxu0 0.0
    %2213 = vmatprep.subr.mxu0 0.0
    %2214 = vmatpush1.msra.mxu0 0.0
    %2215 = vmatprep.subr.mxu0 0.0
    %2216 = vmatpush1.msra.mxu0 0.0
    %2217 = vmatprep.subr.mxu0 0.0
    %2218 = vmatpush1.msra.mxu0 0.0
    %2219 = vmatprep.subr.mxu0 0.0
    %2220 = vmatpush1.msra.mxu0 0.0
    %2221 = vmatprep.subr.mxu0 0.0
    %2222 = vmatpush1.msra.mxu0 0.0
    %2223 = vmatprep.subr.mxu0 0.0
    %2224 = vmatpush1.msra.mxu0 0.0
    %2225 = vmatprep.subr.mxu0 0.0
    %2226 = vmatpush1.msra.mxu0 0.0
    %2227 = vmatprep.subr.mxu0 0.0
    %2228 = vmatpush1.msra.mxu0 %v380
    %2229 = vmatprep.subr.mxu0 0.0
    %2230 = vmatpush1.msra.mxu0 %v379
    %2231 = vmatprep.subr.mxu0 0.0
    %2232 = vmatpush1.msra.mxu0 %v378
    %2233 = vmatprep.subr.mxu0 0.0
    %2234 = vmatpush1.msra.mxu0 %v377
    %2235 = vmatprep.subr.mxu0 0.0
    %2236 = vmatpush2.msra.mxu0 0.0
    %2237 = vmatprep.subr.mxu0 0.0
    %2238 = vmatpush2.msra.mxu0 0.0
    %2239 = vmatprep.subr.mxu0 0.0
    %2240 = vmatpush2.msra.mxu0 0.0
    %2241 = vmatprep.subr.mxu0 0.0
    %2242 = vmatpush2.msra.mxu0 0.0
    %2243 = vmatprep.subr.mxu0 0.0
    %2244 = vmatpush2.msra.mxu0 0.0
    %2245 = vmatprep.subr.mxu0 0.0
    %2246 = vmatpush2.msra.mxu0 0.0
    %2247 = vmatprep.subr.mxu0 0.0
    %2248 = vmatpush2.msra.mxu0 0.0
    %2249 = vmatprep.subr.mxu0 0.0
    %2250 = vmatpush2.msra.mxu0 0.0
    %2251 = vmatprep.subr.mxu0 0.0
    %2252 = vmatpush2.msra.mxu0 0.0
    %2253 = vmatprep.subr.mxu0 0.0
    %2254 = vmatpush2.msra.mxu0 0.0
    %2255 = vmatprep.subr.mxu0 0.0
    %2256 = vmatpush2.msra.mxu0 0.0
    %2257 = vmatprep.subr.mxu0 0.0
    %2258 = vmatpush2.msra.mxu0 0.0
    %2259 = vmatprep.subr.mxu0 0.0
    %2260 = vmatpush2.msra.mxu0 0.0
    %2261 = vmatprep.subr.mxu0 0.0
    %2262 = vmatpush2.msra.mxu0 0.0
    %2263 = vmatprep.subr.mxu0 0.0
    %2264 = vmatpush2.msra.mxu0 0.0
    %2265 = vmatprep.subr.mxu0 0.0
    %2266 = vmatpush2.msra.mxu0 0.0
    %2267 = vmatprep.mubr.f32.mxu0 0.0
    %2268 = vmatmul.mubr.f32.gmra.mxu0 %v2198
    %v2269 = vpop.f32.mrf.mxu0
    %v2270 = vadd.f32 %v2195, %v2269
    %v2271 = vpop.f32.mrf.mxu0
    %2272 = vmatprep.mubr.f32.mxu0 0.0
    %2273 = vmatmul.mubr.f32.gmra.mxu0 %v2201
    %v2274 = vpop.f32.mrf.mxu0
    %v2275 = vadd.f32 %v2195, %v2274
    %v2276 = vpop.f32.mrf.mxu0
    %2277 = vdwg.mxu0
    %v2278 = vmul.f32 %v2270, 0.5
    %v2279 = vmul.f32 %v2275, 0.5
    %v2280 = vmul.f32 %v2270, 0.044715
    %v2281 = vmul.f32 %v2275, 0.044715
    %v2282 = vmul.f32 %v2280, %v2270
    %v2283 = vmul.f32 %v2281, %v2275
    %v2284 = vmul.f32 %v2282, %v2270
    %v2285 = vmul.f32 %v2283, %v2275
    %v2286 = vadd.f32 %v2270, %v2284
    %v2287 = vadd.f32 %v2275, %v2285
    %v2288 = vmul.f32 %v2286, 0.7978846
    %v2289 = vmul.f32 %v2287, 0.7978846
    %v2290 = vtanh.pop %v2288
    %v2291 = vtanh.pop %v2289
    %v2292 = vadd.f32 %v2290, 1.0
    %v2293 = vadd.f32 %v2291, 1.0
    %v2294 = vmul.f32 %v2278, %v2292
    %v2295 = vmul.f32 %v2279, %v2293
    %v2297 = vlaneseq
    %v2298 = vshrl.u32 %v2297, 7
    %v2299 = vsub.s32 0, %v2298
    %v2300 = vrot.slane %v390, %v2299
    %vm2302 = vcmask 523264
    %v2304 = vsel %vm2302, %v2294, 0
    %v2307 = vsel %vm2302, %v2295, 0
    %2309 = vmatprep.subr.mxu0 0.0
    %2310 = vmatpush1.msra.mxu0 0.0
    %2311 = vmatprep.subr.mxu0 0.0
    %2312 = vmatpush1.msra.mxu0 0.0
    %2313 = vmatprep.subr.mxu0 0.0
    %2314 = vmatpush1.msra.mxu0 0.0
    %2315 = vmatprep.subr.mxu0 0.0
    %2316 = vmatpush1.msra.mxu0 0.0
    %2317 = vmatprep.subr.mxu0 0.0
    %2318 = vmatpush1.msra.mxu0 0.0
    %2319 = vmatprep.subr.mxu0 0.0
    %2320 = vmatpush1.msra.mxu0 0.0
    %2321 = vmatprep.subr.mxu0 0.0
    %2322 = vmatpush1.msra.mxu0 0.0
    %2323 = vmatprep.subr.mxu0 0.0
    %2324 = vmatpush1.msra.mxu0 0.0
    %2325 = vmatprep.subr.mxu0 0.0
    %2326 = vmatpush1.msra.mxu0 %v389
    %2327 = vmatprep.subr.mxu0 0.0
    %2328 = vmatpush1.msra.mxu0 %v388
    %2329 = vmatprep.subr.mxu0 0.0
    %2330 = vmatpush1.msra.mxu0 %v387
    %2331 = vmatprep.subr.mxu0 0.0
    %2332 = vmatpush1.msra.mxu0 %v386
    %2333 = vmatprep.subr.mxu0 0.0
    %2334 = vmatpush1.msra.mxu0 %v385
    %2335 = vmatprep.subr.mxu0 0.0
    %2336 = vmatpush1.msra.mxu0 %v384
    %2337 = vmatprep.subr.mxu0 0.0
    %2338 = vmatpush1.msra.mxu0 %v383
    %2339 = vmatprep.subr.mxu0 0.0
    %2340 = vmatpush1.msra.mxu0 %v382
    %2341 = vmatprep.subr.mxu0 0.0
    %2342 = vmatpush2.msra.mxu0 0.0
    %2343 = vmatprep.subr.mxu0 0.0
    %2344 = vmatpush2.msra.mxu0 0.0
    %2345 = vmatprep.subr.mxu0 0.0
    %2346 = vmatpush2.msra.mxu0 0.0
    %2347 = vmatprep.subr.mxu0 0.0
    %2348 = vmatpush2.msra.mxu0 0.0
    %2349 = vmatprep.subr.mxu0 0.0
    %2350 = vmatpush2.msra.mxu0 0.0
    %2351 = vmatprep.subr.mxu0 0.0
    %2352 = vmatpush2.msra.mxu0 0.0
    %2353 = vmatprep.subr.mxu0 0.0
    %2354 = vmatpush2.msra.mxu0 0.0
    %2355 = vmatprep.subr.mxu0 0.0
    %2356 = vmatpush2.msra.mxu0 0.0
    %2357 = vmatprep.subr.mxu0 0.0
    %2358 = vmatpush2.msra.mxu0 0.0
    %2359 = vmatprep.subr.mxu0 0.0
    %2360 = vmatpush2.msra.mxu0 0.0
    %2361 = vmatprep.subr.mxu0 0.0
    %2362 = vmatpush2.msra.mxu0 0.0
    %2363 = vmatprep.subr.mxu0 0.0
    %2364 = vmatpush2.msra.mxu0 0.0
    %2365 = vmatprep.subr.mxu0 0.0
    %2366 = vmatpush2.msra.mxu0 0.0
    %2367 = vmatprep.subr.mxu0 0.0
    %2368 = vmatpush2.msra.mxu0 0.0
    %2369 = vmatprep.subr.mxu0 0.0
    %2370 = vmatpush2.msra.mxu0 0.0
    %2371 = vmatprep.subr.mxu0 0.0
    %2372 = vmatpush2.msra.mxu0 0.0
    %2373 = vmatprep.mubr.f32.mxu0 0.0
    %2374 = vmatmul.mubr.f32.gmra.mxu0 %v2304
    %v2375 = vpop.f32.mrf.mxu0
    %v2376 = vadd.f32 %v2300, %v2375
    %v2377 = vpop.f32.mrf.mxu0
    %2378 = vmatprep.mubr.f32.mxu0 0.0
    %2379 = vmatmul.mubr.f32.gmra.mxu0 %v2307
    %v2380 = vpop.f32.mrf.mxu0
    %v2381 = vadd.f32 %v2300, %v2380
    %v2382 = vpop.f32.mrf.mxu0
    %2383 = vdwg.mxu0
    %v2384 = vadd.f32 %v2376, %v2189
    %v2385 = vadd.f32 %v2381, %v2190
    %v2386 = vld [vmem:[%s19] sm:$0x1]
    %v2387 = vld [vmem:[%s20] sm:$0x1]
    %v2388 = vsel %vm317, %v2384, 0.0
    %2389 = vadd.xlane.f32.xlu0 %v2388
    %v2390 = vpop.xlane.xlu0 %2389
    %v2391 = vsel %vm317, %v2385, 0.0
    %2392 = vadd.xlane.f32.xlu0 %v2391
    %v2393 = vpop.xlane.xlu0 %2392
    %v2394 = vmul.f32 %v2390, %v324
    %v2395 = vmul.f32 %v2393, %v324
    %v2396 = vsub.f32 %v2384, %v2394
    %v2397 = vsub.f32 %v2385, %v2395
    %v2398 = vmul.f32 %v2396, %v2396
    %v2399 = vmul.f32 %v2397, %v2397
    %v2400 = vsel %vm317, %v2398, 0.0
    %2401 = vadd.xlane.f32.xlu0 %v2400
    %v2402 = vpop.xlane.xlu0 %2401
    %v2403 = vsel %vm317, %v2399, 0.0
    %2404 = vadd.xlane.f32.xlu0 %v2403
    %v2405 = vpop.xlane.xlu0 %2404
    %v2406 = vmul.f32 %v2402, %v324
    %v2407 = vmul.f32 %v2405, %v324
    %v2408 = vadd.f32 %v2406, 1e-12
    %v2409 = vadd.f32 %v2407, 1e-12
    %v2410 = vrsqrt.pop %v2408
    %v2411 = vrsqrt.pop %v2409
    %v2412 = vmul.f32 %v2396, %v2410
    %v2413 = vmul.f32 %v2397, %v2411
    %v2415 = vlaneseq
    %v2416 = vshrl.u32 %v2415, 7
    %v2417 = vsub.s32 0, %v2416
    %v2418 = vrot.slane %v2386, %v2417
    %v2420 = vmul.f32 %v2412, %v2418
    %v2421 = vmul.f32 %v2413, %v2418
    %v2423 = vlaneseq
    %v2424 = vshrl.u32 %v2423, 7
    %v2425 = vsub.s32 0, %v2424
    %v2426 = vrot.slane %v2387, %v2425
    %v2428 = vadd.f32 %v2420, %v2426
    %v2429 = vadd.f32 %v2421, %v2426
    %s2430 = scalar_lea.vmem %s9, 32
    %v2431 = vld [vmem:[%s2430] sm:$0xff]
    %v2432 = vld [vmem:[%s2430 + $0x8] sm:$0xff]
    %v2433 = vld [vmem:[%s2430 + $0x10] sm:$0xff]
    %v2434 = vld [vmem:[%s2430 + $0x18] sm:$0xff]
    %s2435 = scalar_lea.vmem %s10, 1
    %v2436 = vld [vmem:[%s2435] sm:$0x1]
    %s2437 = scalar_lea.vmem %s11, 32
    %v2438 = vld [vmem:[%s2437] sm:$0xff]
    %v2439 = vld [vmem:[%s2437 + $0x8] sm:$0xff]
    %v2440 = vld [vmem:[%s2437 + $0x10] sm:$0xff]
    %v2441 = vld [vmem:[%s2437 + $0x18] sm:$0xff]
    %s2442 = scalar_lea.vmem %s12, 1
    %v2443 = vld [vmem:[%s2442] sm:$0x1]
    %s2444 = scalar_lea.vmem %s15, 32
    %v2445 = vld [vmem:[%s2444] sm:$0xff]
    %v2446 = vld [vmem:[%s2444 + $0x8] sm:$0xff]
    %v2447 = vld [vmem:[%s2444 + $0x10] sm:$0xff]
    %v2448 = vld [vmem:[%s2444 + $0x18] sm:$0xff]
    %s2449 = scalar_lea.vmem %s16, 1
    %v2450 = vld [vmem:[%s2449] sm:$0x1]
    %s2451 = scalar_lea.vmem %s17, 64
    %v2452 = vld [vmem:[%s2451] sm:$0xff]
    %v2453 = vld [vmem:[%s2451 + $0x8] sm:$0xff]
    %v2454 = vld [vmem:[%s2451 + $0x10] sm:$0xff]
    %v2455 = vld [vmem:[%s2451 + $0x18] sm:$0xff]
    %v2456 = vld [vmem:[%s2451 + $0x20] sm:$0xff]
    %v2457 = vld [vmem:[%s2451 + $0x28] sm:$0xff]
    %v2458 = vld [vmem:[%s2451 + $0x30] sm:$0xff]
    %v2459 = vld [vmem:[%s2451 + $0x38] sm:$0xff]
    %s2460 = scalar_lea.vmem %s18, 1
    %v2461 = vld [vmem:[%s2460] sm:$0x1]
    %v2463 = vlaneseq
    %v2464 = vshrl.u32 %v2463, 7
    %v2465 = vsub.s32 0, %v2464
    %v2466 = vrot.slane %v2436, %v2465
    %v2469 = vsel %vm317, %v2428, 0
    %v2472 = vsel %vm317, %v2429, 0
    %2474 = vmatprep.subr.mxu0 0.0
    %2475 = vmatpush1.msra.mxu0 0.0
    %2476 = vmatprep.subr.mxu0 0.0
    %2477 = vmatpush1.msra.mxu0 0.0
    %2478 = vmatprep.subr.mxu0 0.0
    %2479 = vmatpush1.msra.mxu0 0.0
    %2480 = vmatprep.subr.mxu0 0.0
    %2481 = vmatpush1.msra.mxu0 0.0
    %2482 = vmatprep.subr.mxu0 0.0
    %2483 = vmatpush1.msra.mxu0 0.0
    %2484 = vmatprep.subr.mxu0 0.0
    %2485 = vmatpush1.msra.mxu0 0.0
    %2486 = vmatprep.subr.mxu0 0.0
    %2487 = vmatpush1.msra.mxu0 0.0
    %2488 = vmatprep.subr.mxu0 0.0
    %2489 = vmatpush1.msra.mxu0 0.0
    %2490 = vmatprep.subr.mxu0 0.0
    %2491 = vmatpush1.msra.mxu0 0.0
    %2492 = vmatprep.subr.mxu0 0.0
    %2493 = vmatpush1.msra.mxu0 0.0
    %2494 = vmatprep.subr.mxu0 0.0
    %2495 = vmatpush1.msra.mxu0 0.0
    %2496 = vmatprep.subr.mxu0 0.0
    %2497 = vmatpush1.msra.mxu0 0.0
    %2498 = vmatprep.subr.mxu0 0.0
    %2499 = vmatpush1.msra.mxu0 %v2434
    %2500 = vmatprep.subr.mxu0 0.0
    %2501 = vmatpush1.msra.mxu0 %v2433
    %2502 = vmatprep.subr.mxu0 0.0
    %2503 = vmatpush1.msra.mxu0 %v2432
    %2504 = vmatprep.subr.mxu0 0.0
    %2505 = vmatpush1.msra.mxu0 %v2431
    %2506 = vmatprep.subr.mxu0 0.0
    %2507 = vmatpush2.msra.mxu0 0.0
    %2508 = vmatprep.subr.mxu0 0.0
    %2509 = vmatpush2.msra.mxu0 0.0
    %2510 = vmatprep.subr.mxu0 0.0
    %2511 = vmatpush2.msra.mxu0 0.0
    %2512 = vmatprep.subr.mxu0 0.0
    %2513 = vmatpush2.msra.mxu0 0.0
    %2514 = vmatprep.subr.mxu0 0.0
    %2515 = vmatpush2.msra.mxu0 0.0
    %2516 = vmatprep.subr.mxu0 0.0
    %2517 = vmatpush2.msra.mxu0 0.0
    %2518 = vmatprep.subr.mxu0 0.0
    %2519 = vmatpush2.msra.mxu0 0.0
    %2520 = vmatprep.subr.mxu0 0.0
    %2521 = vmatpush2.msra.mxu0 0.0
    %2522 = vmatprep.subr.mxu0 0.0
    %2523 = vmatpush2.msra.mxu0 0.0
    %2524 = vmatprep.subr.mxu0 0.0
    %2525 = vmatpush2.msra.mxu0 0.0
    %2526 = vmatprep.subr.mxu0 0.0
    %2527 = vmatpush2.msra.mxu0 0.0
    %2528 = vmatprep.subr.mxu0 0.0
    %2529 = vmatpush2.msra.mxu0 0.0
    %2530 = vmatprep.subr.mxu0 0.0
    %2531 = vmatpush2.msra.mxu0 0.0
    %2532 = vmatprep.subr.mxu0 0.0
    %2533 = vmatpush2.msra.mxu0 0.0
    %2534 = vmatprep.subr.mxu0 0.0
    %2535 = vmatpush2.msra.mxu0 0.0
    %2536 = vmatprep.subr.mxu0 0.0
    %2537 = vmatpush2.msra.mxu0 0.0
    %2538 = vmatprep.mubr.f32.mxu0 0.0
    %2539 = vmatmul.mubr.f32.gmra.mxu0 %v2469
    %v2540 = vpop.f32.mrf.mxu0
    %v2541 = vadd.f32 %v2466, %v2540
    %v2542 = vpop.f32.mrf.mxu0
    %2543 = vmatprep.mubr.f32.mxu0 0.0
    %2544 = vmatmul.mubr.f32.gmra.mxu0 %v2472
    %v2545 = vpop.f32.mrf.mxu0
    %v2546 = vadd.f32 %v2466, %v2545
    %v2547 = vpop.f32.mrf.mxu0
    %2548 = vdwg.mxu0
    %2550 = vrot.lane.b32.xlu0 %v2541, 96
    %v2551 = vpop.permute.xlu0 %2550
    %v2552 = vsel %vm493, %v2541, 0
    %v2554 = vsel %vm493, %v2551, 0
    %2556 = vmatprep.subr.mxu0 0.0
    %2557 = vmatpush1.xpose.msra.mxu0 0.0
    %2558 = vmatprep.subr.mxu0 0.0
    %2559 = vmatpush1.xpose.msra.mxu0 0.0
    %2560 = vmatprep.subr.mxu0 0.0
    %2561 = vmatpush1.xpose.msra.mxu0 0.0
    %2562 = vmatprep.subr.mxu0 0.0
    %2563 = vmatpush1.xpose.msra.mxu0 0.0
    %2564 = vmatprep.subr.mxu0 0.0
    %2565 = vmatpush1.xpose.msra.mxu0 0.0
    %2566 = vmatprep.subr.mxu0 0.0
    %2567 = vmatpush1.xpose.msra.mxu0 0.0
    %2568 = vmatprep.subr.mxu0 0.0
    %2569 = vmatpush1.xpose.msra.mxu0 0.0
    %2570 = vmatprep.subr.mxu0 0.0
    %2571 = vmatpush1.xpose.msra.mxu0 0.0
    %2572 = vmatprep.subr.mxu0 0.0
    %2573 = vmatpush1.xpose.msra.mxu0 0.0
    %2574 = vmatprep.subr.mxu0 0.0
    %2575 = vmatpush1.xpose.msra.mxu0 0.0
    %2576 = vmatprep.subr.mxu0 0.0
    %2577 = vmatpush1.xpose.msra.mxu0 0.0
    %2578 = vmatprep.subr.mxu0 0.0
    %2579 = vmatpush1.xpose.msra.mxu0 0.0
    %2580 = vmatprep.subr.mxu0 0.0
    %2581 = vmatpush1.xpose.msra.mxu0 0.0
    %2582 = vmatprep.subr.mxu0 0.0
    %2583 = vmatpush1.xpose.msra.mxu0 0.0
    %2584 = vmatprep.subr.mxu0 0.0
    %2585 = vmatpush1.xpose.msra.mxu0 0.0
    %2586 = vmatprep.subr.mxu0 0.0
    %2587 = vmatpush1.xpose.msra.mxu0 %v2554
    %2588 = vmatprep.subr.mxu0 0.0
    %2589 = vmatpush2.xpose.msra.mxu0 0.0
    %2590 = vmatprep.subr.mxu0 0.0
    %2591 = vmatpush2.xpose.msra.mxu0 0.0
    %2592 = vmatprep.subr.mxu0 0.0
    %2593 = vmatpush2.xpose.msra.mxu0 0.0
    %2594 = vmatprep.subr.mxu0 0.0
    %2595 = vmatpush2.xpose.msra.mxu0 0.0
    %2596 = vmatprep.subr.mxu0 0.0
    %2597 = vmatpush2.xpose.msra.mxu0 0.0
    %2598 = vmatprep.subr.mxu0 0.0
    %2599 = vmatpush2.xpose.msra.mxu0 0.0
    %2600 = vmatprep.subr.mxu0 0.0
    %2601 = vmatpush2.xpose.msra.mxu0 0.0
    %2602 = vmatprep.subr.mxu0 0.0
    %2603 = vmatpush2.xpose.msra.mxu0 0.0
    %2604 = vmatprep.subr.mxu0 0.0
    %2605 = vmatpush2.xpose.msra.mxu0 0.0
    %2606 = vmatprep.subr.mxu0 0.0
    %2607 = vmatpush2.xpose.msra.mxu0 0.0
    %2608 = vmatprep.subr.mxu0 0.0
    %2609 = vmatpush2.xpose.msra.mxu0 0.0
    %2610 = vmatprep.subr.mxu0 0.0
    %2611 = vmatpush2.xpose.msra.mxu0 0.0
    %2612 = vmatprep.subr.mxu0 0.0
    %2613 = vmatpush2.xpose.msra.mxu0 0.0
    %2614 = vmatprep.subr.mxu0 0.0
    %2615 = vmatpush2.xpose.msra.mxu0 0.0
    %2616 = vmatprep.subr.mxu0 0.0
    %2617 = vmatpush2.xpose.msra.mxu0 0.0
    %2618 = vmatprep.subr.mxu0 0.0
    %2619 = vmatpush2.xpose.msra.mxu0 0.0
    %2620 = vmatprep.mubr.f32.mxu0 0.0
    %2621 = vmatmul.mubr.f32.gmra.mxu0 %v2552
    %v2622 = vpop.f32.mrf.mxu0
    %v2623 = vadd.f32 %v483, %v2622
    %v2624 = vpop.f32.mrf.mxu0
    %2625 = vdwg.mxu0
    %2627 = vrot.lane.b32.xlu0 %v2546, 96
    %v2628 = vpop.permute.xlu0 %2627
    %v2629 = vsel %vm493, %v2546, 0
    %v2631 = vsel %vm493, %v2628, 0
    %2633 = vmatprep.subr.mxu0 0.0
    %2634 = vmatpush1.xpose.msra.mxu0 0.0
    %2635 = vmatprep.subr.mxu0 0.0
    %2636 = vmatpush1.xpose.msra.mxu0 0.0
    %2637 = vmatprep.subr.mxu0 0.0
    %2638 = vmatpush1.xpose.msra.mxu0 0.0
    %2639 = vmatprep.subr.mxu0 0.0
    %2640 = vmatpush1.xpose.msra.mxu0 0.0
    %2641 = vmatprep.subr.mxu0 0.0
    %2642 = vmatpush1.xpose.msra.mxu0 0.0
    %2643 = vmatprep.subr.mxu0 0.0
    %2644 = vmatpush1.xpose.msra.mxu0 0.0
    %2645 = vmatprep.subr.mxu0 0.0
    %2646 = vmatpush1.xpose.msra.mxu0 0.0
    %2647 = vmatprep.subr.mxu0 0.0
    %2648 = vmatpush1.xpose.msra.mxu0 0.0
    %2649 = vmatprep.subr.mxu0 0.0
    %2650 = vmatpush1.xpose.msra.mxu0 0.0
    %2651 = vmatprep.subr.mxu0 0.0
    %2652 = vmatpush1.xpose.msra.mxu0 0.0
    %2653 = vmatprep.subr.mxu0 0.0
    %2654 = vmatpush1.xpose.msra.mxu0 0.0
    %2655 = vmatprep.subr.mxu0 0.0
    %2656 = vmatpush1.xpose.msra.mxu0 0.0
    %2657 = vmatprep.subr.mxu0 0.0
    %2658 = vmatpush1.xpose.msra.mxu0 0.0
    %2659 = vmatprep.subr.mxu0 0.0
    %2660 = vmatpush1.xpose.msra.mxu0 0.0
    %2661 = vmatprep.subr.mxu0 0.0
    %2662 = vmatpush1.xpose.msra.mxu0 0.0
    %2663 = vmatprep.subr.mxu0 0.0
    %2664 = vmatpush1.xpose.msra.mxu0 %v2631
    %2665 = vmatprep.subr.mxu0 0.0
    %2666 = vmatpush2.xpose.msra.mxu0 0.0
    %2667 = vmatprep.subr.mxu0 0.0
    %2668 = vmatpush2.xpose.msra.mxu0 0.0
    %2669 = vmatprep.subr.mxu0 0.0
    %2670 = vmatpush2.xpose.msra.mxu0 0.0
    %2671 = vmatprep.subr.mxu0 0.0
    %2672 = vmatpush2.xpose.msra.mxu0 0.0
    %2673 = vmatprep.subr.mxu0 0.0
    %2674 = vmatpush2.xpose.msra.mxu0 0.0
    %2675 = vmatprep.subr.mxu0 0.0
    %2676 = vmatpush2.xpose.msra.mxu0 0.0
    %2677 = vmatprep.subr.mxu0 0.0
    %2678 = vmatpush2.xpose.msra.mxu0 0.0
    %2679 = vmatprep.subr.mxu0 0.0
    %2680 = vmatpush2.xpose.msra.mxu0 0.0
    %2681 = vmatprep.subr.mxu0 0.0
    %2682 = vmatpush2.xpose.msra.mxu0 0.0
    %2683 = vmatprep.subr.mxu0 0.0
    %2684 = vmatpush2.xpose.msra.mxu0 0.0
    %2685 = vmatprep.subr.mxu0 0.0
    %2686 = vmatpush2.xpose.msra.mxu0 0.0
    %2687 = vmatprep.subr.mxu0 0.0
    %2688 = vmatpush2.xpose.msra.mxu0 0.0
    %2689 = vmatprep.subr.mxu0 0.0
    %2690 = vmatpush2.xpose.msra.mxu0 0.0
    %2691 = vmatprep.subr.mxu0 0.0
    %2692 = vmatpush2.xpose.msra.mxu0 0.0
    %2693 = vmatprep.subr.mxu0 0.0
    %2694 = vmatpush2.xpose.msra.mxu0 0.0
    %2695 = vmatprep.subr.mxu0 0.0
    %2696 = vmatpush2.xpose.msra.mxu0 0.0
    %2697 = vmatprep.mubr.f32.mxu0 0.0
    %2698 = vmatmul.mubr.f32.gmra.mxu0 %v2629
    %v2699 = vpop.f32.mrf.mxu0
    %v2700 = vadd.f32 %v487, %v2699
    %v2701 = vpop.f32.mrf.mxu0
    %2702 = vdwg.mxu0
    %v2703 = vsel %vm493, %v2623, -inf
    %2704 = vmax.xlane.f32.xlu0 %v2703
    %v2705 = vpop.xlane.xlu0 %2704
    %v2706 = vsel %vm493, %v2700, -inf
    %2707 = vmax.xlane.f32.xlu0 %v2706
    %v2708 = vpop.xlane.xlu0 %2707
    %v2709 = vsub.f32 %v2623, %v2705
    %v2710 = vsub.f32 %v2700, %v2708
    %v2711 = vmul.f32 %v2709, 1.442695
    %v2712 = vpow.pop %v2711
    %v2713 = vmul.f32 %v2710, 1.442695
    %v2714 = vpow.pop %v2713
    %v2715 = vsel %vm493, %v2712, 0.0
    %2716 = vadd.xlane.f32.xlu0 %v2715
    %v2717 = vpop.xlane.xlu0 %2716
    %v2718 = vsel %vm493, %v2714, 0.0
    %2719 = vadd.xlane.f32.xlu0 %v2718
    %v2720 = vpop.xlane.xlu0 %2719
    %v2721 = vrcp.pop %v2717
    %v2722 = vrcp.pop %v2720
    %v2723 = vmul.f32 %v2712, %v2721
    %v2724 = vmul.f32 %v2714, %v2722
    %2725 = vrot.lane.b32.xlu0 %v2541, 64
    %v2726 = vpop.permute.xlu0 %2725
    %v2729 = vsel %vm493, %v2723, 0
    %2731 = vmatprep.subr.mxu0 0.0
    %2732 = vmatpush1.msra.mxu0 0.0
    %2733 = vmatprep.subr.mxu0 0.0
    %2734 = vmatpush1.msra.mxu0 0.0
    %2735 = vmatprep.subr.mxu0 0.0
    %2736 = vmatpush1.msra.mxu0 0.0
    %2737 = vmatprep.subr.mxu0 0.0
    %2738 = vmatpush1.msra.mxu0 0.0
    %2739 = vmatprep.subr.mxu0 0.0
    %2740 = vmatpush1.msra.mxu0 0.0
    %2741 = vmatprep.subr.mxu0 0.0
    %2742 = vmatpush1.msra.mxu0 0.0
    %2743 = vmatprep.subr.mxu0 0.0
    %2744 = vmatpush1.msra.mxu0 0.0
    %2745 = vmatprep.subr.mxu0 0.0
    %2746 = vmatpush1.msra.mxu0 0.0
    %2747 = vmatprep.subr.mxu0 0.0
    %2748 = vmatpush1.msra.mxu0 0.0
    %2749 = vmatprep.subr.mxu0 0.0
    %2750 = vmatpush1.msra.mxu0 0.0
    %2751 = vmatprep.subr.mxu0 0.0
    %2752 = vmatpush1.msra.mxu0 0.0
    %2753 = vmatprep.subr.mxu0 0.0
    %2754 = vmatpush1.msra.mxu0 0.0
    %2755 = vmatprep.subr.mxu0 0.0
    %2756 = vmatpush1.msra.mxu0 0.0
    %2757 = vmatprep.subr.mxu0 0.0
    %2758 = vmatpush1.msra.mxu0 0.0
    %2759 = vmatprep.subr.mxu0 0.0
    %2760 = vmatpush1.msra.mxu0 0.0
    %2761 = vmatprep.subr.mxu0 0.0
    %2762 = vmatpush1.msra.mxu0 %v2726
    %2763 = vmatprep.subr.mxu0 0.0
    %2764 = vmatpush2.msra.mxu0 0.0
    %2765 = vmatprep.subr.mxu0 0.0
    %2766 = vmatpush2.msra.mxu0 0.0
    %2767 = vmatprep.subr.mxu0 0.0
    %2768 = vmatpush2.msra.mxu0 0.0
    %2769 = vmatprep.subr.mxu0 0.0
    %2770 = vmatpush2.msra.mxu0 0.0
    %2771 = vmatprep.subr.mxu0 0.0
    %2772 = vmatpush2.msra.mxu0 0.0
    %2773 = vmatprep.subr.mxu0 0.0
    %2774 = vmatpush2.msra.mxu0 0.0
    %2775 = vmatprep.subr.mxu0 0.0
    %2776 = vmatpush2.msra.mxu0 0.0
    %2777 = vmatprep.subr.mxu0 0.0
    %2778 = vmatpush2.msra.mxu0 0.0
    %2779 = vmatprep.subr.mxu0 0.0
    %2780 = vmatpush2.msra.mxu0 0.0
    %2781 = vmatprep.subr.mxu0 0.0
    %2782 = vmatpush2.msra.mxu0 0.0
    %2783 = vmatprep.subr.mxu0 0.0
    %2784 = vmatpush2.msra.mxu0 0.0
    %2785 = vmatprep.subr.mxu0 0.0
    %2786 = vmatpush2.msra.mxu0 0.0
    %2787 = vmatprep.subr.mxu0 0.0
    %2788 = vmatpush2.msra.mxu0 0.0
    %2789 = vmatprep.subr.mxu0 0.0
    %2790 = vmatpush2.msra.mxu0 0.0
    %2791 = vmatprep.subr.mxu0 0.0
    %2792 = vmatpush2.msra.mxu0 0.0
    %2793 = vmatprep.subr.mxu0 0.0
    %2794 = vmatpush2.msra.mxu0 0.0
    %2795 = vmatprep.mubr.f32.mxu0 0.0
    %2796 = vmatmul.mubr.f32.gmra.mxu0 %v2729
    %v2797 = vpop.f32.mrf.mxu0
    %v2798 = vadd.f32 0.0, %v2797
    %v2799 = vpop.f32.mrf.mxu0
    %2800 = vdwg.mxu0
    %2801 = vrot.lane.b32.xlu0 %v2546, 64
    %v2802 = vpop.permute.xlu0 %2801
    %v2805 = vsel %vm493, %v2724, 0
    %2807 = vmatprep.subr.mxu0 0.0
    %2808 = vmatpush1.msra.mxu0 0.0
    %2809 = vmatprep.subr.mxu0 0.0
    %2810 = vmatpush1.msra.mxu0 0.0
    %2811 = vmatprep.subr.mxu0 0.0
    %2812 = vmatpush1.msra.mxu0 0.0
    %2813 = vmatprep.subr.mxu0 0.0
    %2814 = vmatpush1.msra.mxu0 0.0
    %2815 = vmatprep.subr.mxu0 0.0
    %2816 = vmatpush1.msra.mxu0 0.0
    %2817 = vmatprep.subr.mxu0 0.0
    %2818 = vmatpush1.msra.mxu0 0.0
    %2819 = vmatprep.subr.mxu0 0.0
    %2820 = vmatpush1.msra.mxu0 0.0
    %2821 = vmatprep.subr.mxu0 0.0
    %2822 = vmatpush1.msra.mxu0 0.0
    %2823 = vmatprep.subr.mxu0 0.0
    %2824 = vmatpush1.msra.mxu0 0.0
    %2825 = vmatprep.subr.mxu0 0.0
    %2826 = vmatpush1.msra.mxu0 0.0
    %2827 = vmatprep.subr.mxu0 0.0
    %2828 = vmatpush1.msra.mxu0 0.0
    %2829 = vmatprep.subr.mxu0 0.0
    %2830 = vmatpush1.msra.mxu0 0.0
    %2831 = vmatprep.subr.mxu0 0.0
    %2832 = vmatpush1.msra.mxu0 0.0
    %2833 = vmatprep.subr.mxu0 0.0
    %2834 = vmatpush1.msra.mxu0 0.0
    %2835 = vmatprep.subr.mxu0 0.0
    %2836 = vmatpush1.msra.mxu0 0.0
    %2837 = vmatprep.subr.mxu0 0.0
    %2838 = vmatpush1.msra.mxu0 %v2802
    %2839 = vmatprep.subr.mxu0 0.0
    %2840 = vmatpush2.msra.mxu0 0.0
    %2841 = vmatprep.subr.mxu0 0.0
    %2842 = vmatpush2.msra.mxu0 0.0
    %2843 = vmatprep.subr.mxu0 0.0
    %2844 = vmatpush2.msra.mxu0 0.0
    %2845 = vmatprep.subr.mxu0 0.0
    %2846 = vmatpush2.msra.mxu0 0.0
    %2847 = vmatprep.subr.mxu0 0.0
    %2848 = vmatpush2.msra.mxu0 0.0
    %2849 = vmatprep.subr.mxu0 0.0
    %2850 = vmatpush2.msra.mxu0 0.0
    %2851 = vmatprep.subr.mxu0 0.0
    %2852 = vmatpush2.msra.mxu0 0.0
    %2853 = vmatprep.subr.mxu0 0.0
    %2854 = vmatpush2.msra.mxu0 0.0
    %2855 = vmatprep.subr.mxu0 0.0
    %2856 = vmatpush2.msra.mxu0 0.0
    %2857 = vmatprep.subr.mxu0 0.0
    %2858 = vmatpush2.msra.mxu0 0.0
    %2859 = vmatprep.subr.mxu0 0.0
    %2860 = vmatpush2.msra.mxu0 0.0
    %2861 = vmatprep.subr.mxu0 0.0
    %2862 = vmatpush2.msra.mxu0 0.0
    %2863 = vmatprep.subr.mxu0 0.0
    %2864 = vmatpush2.msra.mxu0 0.0
    %2865 = vmatprep.subr.mxu0 0.0
    %2866 = vmatpush2.msra.mxu0 0.0
    %2867 = vmatprep.subr.mxu0 0.0
    %2868 = vmatpush2.msra.mxu0 0.0
    %2869 = vmatprep.subr.mxu0 0.0
    %2870 = vmatpush2.msra.mxu0 0.0
    %2871 = vmatprep.mubr.f32.mxu0 0.0
    %2872 = vmatmul.mubr.f32.gmra.mxu0 %v2805
    %v2873 = vpop.f32.mrf.mxu0
    %v2874 = vadd.f32 0.0, %v2873
    %v2875 = vpop.f32.mrf.mxu0
    %2876 = vdwg.mxu0
    %2877 = vrot.lane.b32.xlu0 %v2541, 120
    %v2878 = vpop.permute.xlu0 %2877
    %2879 = vrot.lane.b32.xlu0 %v2541, 88
    %v2880 = vpop.permute.xlu0 %2879
    %v2881 = vsel %vm493, %v2878, 0
    %v2883 = vsel %vm493, %v2880, 0
    %2885 = vmatprep.subr.mxu0 0.0
    %2886 = vmatpush1.xpose.msra.mxu0 0.0
    %2887 = vmatprep.subr.mxu0 0.0
    %2888 = vmatpush1.xpose.msra.mxu0 0.0
    %2889 = vmatprep.subr.mxu0 0.0
    %2890 = vmatpush1.xpose.msra.mxu0 0.0
    %2891 = vmatprep.subr.mxu0 0.0
    %2892 = vmatpush1.xpose.msra.mxu0 0.0
    %2893 = vmatprep.subr.mxu0 0.0
    %2894 = vmatpush1.xpose.msra.mxu0 0.0
    %2895 = vmatprep.subr.mxu0 0.0
    %2896 = vmatpush1.xpose.msra.mxu0 0.0
    %2897 = vmatprep.subr.mxu0 0.0
    %2898 = vmatpush1.xpose.msra.mxu0 0.0
    %2899 = vmatprep.subr.mxu0 0.0
    %2900 = vmatpush1.xpose.msra.mxu0 0.0
    %2901 = vmatprep.subr.mxu0 0.0
    %2902 = vmatpush1.xpose.msra.mxu0 0.0
    %2903 = vmatprep.subr.mxu0 0.0
    %2904 = vmatpush1.xpose.msra.mxu0 0.0
    %2905 = vmatprep.subr.mxu0 0.0
    %2906 = vmatpush1.xpose.msra.mxu0 0.0
    %2907 = vmatprep.subr.mxu0 0.0
    %2908 = vmatpush1.xpose.msra.mxu0 0.0
    %2909 = vmatprep.subr.mxu0 0.0
    %2910 = vmatpush1.xpose.msra.mxu0 0.0
    %2911 = vmatprep.subr.mxu0 0.0
    %2912 = vmatpush1.xpose.msra.mxu0 0.0
    %2913 = vmatprep.subr.mxu0 0.0
    %2914 = vmatpush1.xpose.msra.mxu0 0.0
    %2915 = vmatprep.subr.mxu0 0.0
    %2916 = vmatpush1.xpose.msra.mxu0 %v2883
    %2917 = vmatprep.subr.mxu0 0.0
    %2918 = vmatpush2.xpose.msra.mxu0 0.0
    %2919 = vmatprep.subr.mxu0 0.0
    %2920 = vmatpush2.xpose.msra.mxu0 0.0
    %2921 = vmatprep.subr.mxu0 0.0
    %2922 = vmatpush2.xpose.msra.mxu0 0.0
    %2923 = vmatprep.subr.mxu0 0.0
    %2924 = vmatpush2.xpose.msra.mxu0 0.0
    %2925 = vmatprep.subr.mxu0 0.0
    %2926 = vmatpush2.xpose.msra.mxu0 0.0
    %2927 = vmatprep.subr.mxu0 0.0
    %2928 = vmatpush2.xpose.msra.mxu0 0.0
    %2929 = vmatprep.subr.mxu0 0.0
    %2930 = vmatpush2.xpose.msra.mxu0 0.0
    %2931 = vmatprep.subr.mxu0 0.0
    %2932 = vmatpush2.xpose.msra.mxu0 0.0
    %2933 = vmatprep.subr.mxu0 0.0
    %2934 = vmatpush2.xpose.msra.mxu0 0.0
    %2935 = vmatprep.subr.mxu0 0.0
    %2936 = vmatpush2.xpose.msra.mxu0 0.0
    %2937 = vmatprep.subr.mxu0 0.0
    %2938 = vmatpush2.xpose.msra.mxu0 0.0
    %2939 = vmatprep.subr.mxu0 0.0
    %2940 = vmatpush2.xpose.msra.mxu0 0.0
    %2941 = vmatprep.subr.mxu0 0.0
    %2942 = vmatpush2.xpose.msra.mxu0 0.0
    %2943 = vmatprep.subr.mxu0 0.0
    %2944 = vmatpush2.xpose.msra.mxu0 0.0
    %2945 = vmatprep.subr.mxu0 0.0
    %2946 = vmatpush2.xpose.msra.mxu0 0.0
    %2947 = vmatprep.subr.mxu0 0.0
    %2948 = vmatpush2.xpose.msra.mxu0 0.0
    %2949 = vmatprep.mubr.f32.mxu0 0.0
    %2950 = vmatmul.mubr.f32.gmra.mxu0 %v2881
    %v2951 = vpop.f32.mrf.mxu0
    %v2952 = vadd.f32 %v483, %v2951
    %v2953 = vpop.f32.mrf.mxu0
    %2954 = vdwg.mxu0
    %2955 = vrot.lane.b32.xlu0 %v2546, 120
    %v2956 = vpop.permute.xlu0 %2955
    %2957 = vrot.lane.b32.xlu0 %v2546, 88
    %v2958 = vpop.permute.xlu0 %2957
    %v2959 = vsel %vm493, %v2956, 0
    %v2961 = vsel %vm493, %v2958, 0
    %2963 = vmatprep.subr.mxu0 0.0
    %2964 = vmatpush1.xpose.msra.mxu0 0.0
    %2965 = vmatprep.subr.mxu0 0.0
    %2966 = vmatpush1.xpose.msra.mxu0 0.0
    %2967 = vmatprep.subr.mxu0 0.0
    %2968 = vmatpush1.xpose.msra.mxu0 0.0
    %2969 = vmatprep.subr.mxu0 0.0
    %2970 = vmatpush1.xpose.msra.mxu0 0.0
    %2971 = vmatprep.subr.mxu0 0.0
    %2972 = vmatpush1.xpose.msra.mxu0 0.0
    %2973 = vmatprep.subr.mxu0 0.0
    %2974 = vmatpush1.xpose.msra.mxu0 0.0
    %2975 = vmatprep.subr.mxu0 0.0
    %2976 = vmatpush1.xpose.msra.mxu0 0.0
    %2977 = vmatprep.subr.mxu0 0.0
    %2978 = vmatpush1.xpose.msra.mxu0 0.0
    %2979 = vmatprep.subr.mxu0 0.0
    %2980 = vmatpush1.xpose.msra.mxu0 0.0
    %2981 = vmatprep.subr.mxu0 0.0
    %2982 = vmatpush1.xpose.msra.mxu0 0.0
    %2983 = vmatprep.subr.mxu0 0.0
    %2984 = vmatpush1.xpose.msra.mxu0 0.0
    %2985 = vmatprep.subr.mxu0 0.0
    %2986 = vmatpush1.xpose.msra.mxu0 0.0
    %2987 = vmatprep.subr.mxu0 0.0
    %2988 = vmatpush1.xpose.msra.mxu0 0.0
    %2989 = vmatprep.subr.mxu0 0.0
    %2990 = vmatpush1.xpose.msra.mxu0 0.0
    %2991 = vmatprep.subr.mxu0 0.0
    %2992 = vmatpush1.xpose.msra.mxu0 0.0
    %2993 = vmatprep.subr.mxu0 0.0
    %2994 = vmatpush1.xpose.msra.mxu0 %v2961
    %2995 = vmatprep.subr.mxu0 0.0
    %2996 = vmatpush2.xpose.msra.mxu0 0.0
    %2997 = vmatprep.subr.mxu0 0.0
    %2998 = vmatpush2.xpose.msra.mxu0 0.0
    %2999 = vmatprep.subr.mxu0 0.0
    %3000 = vmatpush2.xpose.msra.mxu0 0.0
    %3001 = vmatprep.subr.mxu0 0.0
    %3002 = vmatpush2.xpose.msra.mxu0 0.0
    %3003 = vmatprep.subr.mxu0 0.0
    %3004 = vmatpush2.xpose.msra.mxu0 0.0
    %3005 = vmatprep.subr.mxu0 0.0
    %3006 = vmatpush2.xpose.msra.mxu0 0.0
    %3007 = vmatprep.subr.mxu0 0.0
    %3008 = vmatpush2.xpose.msra.mxu0 0.0
    %3009 = vmatprep.subr.mxu0 0.0
    %3010 = vmatpush2.xpose.msra.mxu0 0.0
    %3011 = vmatprep.subr.mxu0 0.0
    %3012 = vmatpush2.xpose.msra.mxu0 0.0
    %3013 = vmatprep.subr.mxu0 0.0
    %3014 = vmatpush2.xpose.msra.mxu0 0.0
    %3015 = vmatprep.subr.mxu0 0.0
    %3016 = vmatpush2.xpose.msra.mxu0 0.0
    %3017 = vmatprep.subr.mxu0 0.0
    %3018 = vmatpush2.xpose.msra.mxu0 0.0
    %3019 = vmatprep.subr.mxu0 0.0
    %3020 = vmatpush2.xpose.msra.mxu0 0.0
    %3021 = vmatprep.subr.mxu0 0.0
    %3022 = vmatpush2.xpose.msra.mxu0 0.0
    %3023 = vmatprep.subr.mxu0 0.0
    %3024 = vmatpush2.xpose.msra.mxu0 0.0
    %3025 = vmatprep.subr.mxu0 0.0
    %3026 = vmatpush2.xpose.msra.mxu0 0.0
    %3027 = vmatprep.mubr.f32.mxu0 0.0
    %3028 = vmatmul.mubr.f32.gmra.mxu0 %v2959
    %v3029 = vpop.f32.mrf.mxu0
    %v3030 = vadd.f32 %v487, %v3029
    %v3031 = vpop.f32.mrf.mxu0
    %3032 = vdwg.mxu0
    %v3033 = vsel %vm493, %v2952, -inf
    %3034 = vmax.xlane.f32.xlu0 %v3033
    %v3035 = vpop.xlane.xlu0 %3034
    %v3036 = vsel %vm493, %v3030, -inf
    %3037 = vmax.xlane.f32.xlu0 %v3036
    %v3038 = vpop.xlane.xlu0 %3037
    %v3039 = vsub.f32 %v2952, %v3035
    %v3040 = vsub.f32 %v3030, %v3038
    %v3041 = vmul.f32 %v3039, 1.442695
    %v3042 = vpow.pop %v3041
    %v3043 = vmul.f32 %v3040, 1.442695
    %v3044 = vpow.pop %v3043
    %v3045 = vsel %vm493, %v3042, 0.0
    %3046 = vadd.xlane.f32.xlu0 %v3045
    %v3047 = vpop.xlane.xlu0 %3046
    %v3048 = vsel %vm493, %v3044, 0.0
    %3049 = vadd.xlane.f32.xlu0 %v3048
    %v3050 = vpop.xlane.xlu0 %3049
    %v3051 = vrcp.pop %v3047
    %v3052 = vrcp.pop %v3050
    %v3053 = vmul.f32 %v3042, %v3051
    %v3054 = vmul.f32 %v3044, %v3052
    %3055 = vrot.lane.b32.xlu0 %v2541, 56
    %v3056 = vpop.permute.xlu0 %3055
    %v3059 = vsel %vm493, %v3053, 0
    %3061 = vmatprep.subr.mxu0 0.0
    %3062 = vmatpush1.msra.mxu0 0.0
    %3063 = vmatprep.subr.mxu0 0.0
    %3064 = vmatpush1.msra.mxu0 0.0
    %3065 = vmatprep.subr.mxu0 0.0
    %3066 = vmatpush1.msra.mxu0 0.0
    %3067 = vmatprep.subr.mxu0 0.0
    %3068 = vmatpush1.msra.mxu0 0.0
    %3069 = vmatprep.subr.mxu0 0.0
    %3070 = vmatpush1.msra.mxu0 0.0
    %3071 = vmatprep.subr.mxu0 0.0
    %3072 = vmatpush1.msra.mxu0 0.0
    %3073 = vmatprep.subr.mxu0 0.0
    %3074 = vmatpush1.msra.mxu0 0.0
    %3075 = vmatprep.subr.mxu0 0.0
    %3076 = vmatpush1.msra.mxu0 0.0
    %3077 = vmatprep.subr.mxu0 0.0
    %3078 = vmatpush1.msra.mxu0 0.0
    %3079 = vmatprep.subr.mxu0 0.0
    %3080 = vmatpush1.msra.mxu0 0.0
    %3081 = vmatprep.subr.mxu0 0.0
    %3082 = vmatpush1.msra.mxu0 0.0
    %3083 = vmatprep.subr.mxu0 0.0
    %3084 = vmatpush1.msra.mxu0 0.0
    %3085 = vmatprep.subr.mxu0 0.0
    %3086 = vmatpush1.msra.mxu0 0.0
    %3087 = vmatprep.subr.mxu0 0.0
    %3088 = vmatpush1.msra.mxu0 0.0
    %3089 = vmatprep.subr.mxu0 0.0
    %3090 = vmatpush1.msra.mxu0 0.0
    %3091 = vmatprep.subr.mxu0 0.0
    %3092 = vmatpush1.msra.mxu0 %v3056
    %3093 = vmatprep.subr.mxu0 0.0
    %3094 = vmatpush2.msra.mxu0 0.0
    %3095 = vmatprep.subr.mxu0 0.0
    %3096 = vmatpush2.msra.mxu0 0.0
    %3097 = vmatprep.subr.mxu0 0.0
    %3098 = vmatpush2.msra.mxu0 0.0
    %3099 = vmatprep.subr.mxu0 0.0
    %3100 = vmatpush2.msra.mxu0 0.0
    %3101 = vmatprep.subr.mxu0 0.0
    %3102 = vmatpush2.msra.mxu0 0.0
    %3103 = vmatprep.subr.mxu0 0.0
    %3104 = vmatpush2.msra.mxu0 0.0
    %3105 = vmatprep.subr.mxu0 0.0
    %3106 = vmatpush2.msra.mxu0 0.0
    %3107 = vmatprep.subr.mxu0 0.0
    %3108 = vmatpush2.msra.mxu0 0.0
    %3109 = vmatprep.subr.mxu0 0.0
    %3110 = vmatpush2.msra.mxu0 0.0
    %3111 = vmatprep.subr.mxu0 0.0
    %3112 = vmatpush2.msra.mxu0 0.0
    %3113 = vmatprep.subr.mxu0 0.0
    %3114 = vmatpush2.msra.mxu0 0.0
    %3115 = vmatprep.subr.mxu0 0.0
    %3116 = vmatpush2.msra.mxu0 0.0
    %3117 = vmatprep.subr.mxu0 0.0
    %3118 = vmatpush2.msra.mxu0 0.0
    %3119 = vmatprep.subr.mxu0 0.0
    %3120 = vmatpush2.msra.mxu0 0.0
    %3121 = vmatprep.subr.mxu0 0.0
    %3122 = vmatpush2.msra.mxu0 0.0
    %3123 = vmatprep.subr.mxu0 0.0
    %3124 = vmatpush2.msra.mxu0 0.0
    %3125 = vmatprep.mubr.f32.mxu0 0.0
    %3126 = vmatmul.mubr.f32.gmra.mxu0 %v3059
    %v3127 = vpop.f32.mrf.mxu0
    %v3128 = vadd.f32 0.0, %v3127
    %v3129 = vpop.f32.mrf.mxu0
    %3130 = vdwg.mxu0
    %3131 = vrot.lane.b32.xlu0 %v2546, 56
    %v3132 = vpop.permute.xlu0 %3131
    %v3135 = vsel %vm493, %v3054, 0
    %3137 = vmatprep.subr.mxu0 0.0
    %3138 = vmatpush1.msra.mxu0 0.0
    %3139 = vmatprep.subr.mxu0 0.0
    %3140 = vmatpush1.msra.mxu0 0.0
    %3141 = vmatprep.subr.mxu0 0.0
    %3142 = vmatpush1.msra.mxu0 0.0
    %3143 = vmatprep.subr.mxu0 0.0
    %3144 = vmatpush1.msra.mxu0 0.0
    %3145 = vmatprep.subr.mxu0 0.0
    %3146 = vmatpush1.msra.mxu0 0.0
    %3147 = vmatprep.subr.mxu0 0.0
    %3148 = vmatpush1.msra.mxu0 0.0
    %3149 = vmatprep.subr.mxu0 0.0
    %3150 = vmatpush1.msra.mxu0 0.0
    %3151 = vmatprep.subr.mxu0 0.0
    %3152 = vmatpush1.msra.mxu0 0.0
    %3153 = vmatprep.subr.mxu0 0.0
    %3154 = vmatpush1.msra.mxu0 0.0
    %3155 = vmatprep.subr.mxu0 0.0
    %3156 = vmatpush1.msra.mxu0 0.0
    %3157 = vmatprep.subr.mxu0 0.0
    %3158 = vmatpush1.msra.mxu0 0.0
    %3159 = vmatprep.subr.mxu0 0.0
    %3160 = vmatpush1.msra.mxu0 0.0
    %3161 = vmatprep.subr.mxu0 0.0
    %3162 = vmatpush1.msra.mxu0 0.0
    %3163 = vmatprep.subr.mxu0 0.0
    %3164 = vmatpush1.msra.mxu0 0.0
    %3165 = vmatprep.subr.mxu0 0.0
    %3166 = vmatpush1.msra.mxu0 0.0
    %3167 = vmatprep.subr.mxu0 0.0
    %3168 = vmatpush1.msra.mxu0 %v3132
    %3169 = vmatprep.subr.mxu0 0.0
    %3170 = vmatpush2.msra.mxu0 0.0
    %3171 = vmatprep.subr.mxu0 0.0
    %3172 = vmatpush2.msra.mxu0 0.0
    %3173 = vmatprep.subr.mxu0 0.0
    %3174 = vmatpush2.msra.mxu0 0.0
    %3175 = vmatprep.subr.mxu0 0.0
    %3176 = vmatpush2.msra.mxu0 0.0
    %3177 = vmatprep.subr.mxu0 0.0
    %3178 = vmatpush2.msra.mxu0 0.0
    %3179 = vmatprep.subr.mxu0 0.0
    %3180 = vmatpush2.msra.mxu0 0.0
    %3181 = vmatprep.subr.mxu0 0.0
    %3182 = vmatpush2.msra.mxu0 0.0
    %3183 = vmatprep.subr.mxu0 0.0
    %3184 = vmatpush2.msra.mxu0 0.0
    %3185 = vmatprep.subr.mxu0 0.0
    %3186 = vmatpush2.msra.mxu0 0.0
    %3187 = vmatprep.subr.mxu0 0.0
    %3188 = vmatpush2.msra.mxu0 0.0
    %3189 = vmatprep.subr.mxu0 0.0
    %3190 = vmatpush2.msra.mxu0 0.0
    %3191 = vmatprep.subr.mxu0 0.0
    %3192 = vmatpush2.msra.mxu0 0.0
    %3193 = vmatprep.subr.mxu0 0.0
    %3194 = vmatpush2.msra.mxu0 0.0
    %3195 = vmatprep.subr.mxu0 0.0
    %3196 = vmatpush2.msra.mxu0 0.0
    %3197 = vmatprep.subr.mxu0 0.0
    %3198 = vmatpush2.msra.mxu0 0.0
    %3199 = vmatprep.subr.mxu0 0.0
    %3200 = vmatpush2.msra.mxu0 0.0
    %3201 = vmatprep.mubr.f32.mxu0 0.0
    %3202 = vmatmul.mubr.f32.gmra.mxu0 %v3135
    %v3203 = vpop.f32.mrf.mxu0
    %v3204 = vadd.f32 0.0, %v3203
    %v3205 = vpop.f32.mrf.mxu0
    %3206 = vdwg.mxu0
    %v3208 = vsel %vm493, %v3128, 0
    %v3211 = vsel %vm493, %v3204, 0
    %3213 = vmatprep.subr.mxu0 0.0
    %3214 = vmatpush1.msra.mxu0 0.0
    %3215 = vmatprep.subr.mxu0 0.0
    %3216 = vmatpush1.msra.mxu0 0.0
    %3217 = vmatprep.subr.mxu0 0.0
    %3218 = vmatpush1.msra.mxu0 0.0
    %3219 = vmatprep.subr.mxu0 0.0
    %3220 = vmatpush1.msra.mxu0 0.0
    %3221 = vmatprep.subr.mxu0 0.0
    %3222 = vmatpush1.msra.mxu0 0.0
    %3223 = vmatprep.subr.mxu0 0.0
    %3224 = vmatpush1.msra.mxu0 0.0
    %3225 = vmatprep.subr.mxu0 0.0
    %3226 = vmatpush1.msra.mxu0 0.0
    %3227 = vmatprep.subr.mxu0 0.0
    %3228 = vmatpush1.msra.mxu0 0.0
    %3229 = vmatprep.subr.mxu0 0.0
    %3230 = vmatpush1.msra.mxu0 0.0
    %3231 = vmatprep.subr.mxu0 0.0
    %3232 = vmatpush1.msra.mxu0 0.0
    %3233 = vmatprep.subr.mxu0 0.0
    %3234 = vmatpush1.msra.mxu0 0.0
    %3235 = vmatprep.subr.mxu0 0.0
    %3236 = vmatpush1.msra.mxu0 0.0
    %3237 = vmatprep.subr.mxu0 0.0
    %3238 = vmatpush1.msra.mxu0 0.0
    %3239 = vmatprep.subr.mxu0 0.0
    %3240 = vmatpush1.msra.mxu0 0.0
    %3241 = vmatprep.subr.mxu0 0.0
    %3242 = vmatpush1.msra.mxu0 0.0
    %3243 = vmatprep.subr.mxu0 0.0
    %3244 = vmatpush1.msra.mxu0 %v2439
    %3245 = vmatprep.subr.mxu0 0.0
    %3246 = vmatpush2.msra.mxu0 0.0
    %3247 = vmatprep.subr.mxu0 0.0
    %3248 = vmatpush2.msra.mxu0 0.0
    %3249 = vmatprep.subr.mxu0 0.0
    %3250 = vmatpush2.msra.mxu0 0.0
    %3251 = vmatprep.subr.mxu0 0.0
    %3252 = vmatpush2.msra.mxu0 0.0
    %3253 = vmatprep.subr.mxu0 0.0
    %3254 = vmatpush2.msra.mxu0 0.0
    %3255 = vmatprep.subr.mxu0 0.0
    %3256 = vmatpush2.msra.mxu0 0.0
    %3257 = vmatprep.subr.mxu0 0.0
    %3258 = vmatpush2.msra.mxu0 0.0
    %3259 = vmatprep.subr.mxu0 0.0
    %3260 = vmatpush2.msra.mxu0 0.0
    %3261 = vmatprep.subr.mxu0 0.0
    %3262 = vmatpush2.msra.mxu0 0.0
    %3263 = vmatprep.subr.mxu0 0.0
    %3264 = vmatpush2.msra.mxu0 0.0
    %3265 = vmatprep.subr.mxu0 0.0
    %3266 = vmatpush2.msra.mxu0 0.0
    %3267 = vmatprep.subr.mxu0 0.0
    %3268 = vmatpush2.msra.mxu0 0.0
    %3269 = vmatprep.subr.mxu0 0.0
    %3270 = vmatpush2.msra.mxu0 0.0
    %3271 = vmatprep.subr.mxu0 0.0
    %3272 = vmatpush2.msra.mxu0 0.0
    %3273 = vmatprep.subr.mxu0 0.0
    %3274 = vmatpush2.msra.mxu0 0.0
    %3275 = vmatprep.subr.mxu0 0.0
    %3276 = vmatpush2.msra.mxu0 0.0
    %3277 = vmatprep.mubr.f32.mxu0 0.0
    %3278 = vmatmul.mubr.f32.gmra.mxu0 %v3208
    %v3279 = vpop.f32.mrf.mxu0
    %v3280 = vadd.f32 0.0, %v3279
    %v3281 = vpop.f32.mrf.mxu0
    %3282 = vmatprep.mubr.f32.mxu0 0.0
    %3283 = vmatmul.mubr.f32.gmra.mxu0 %v3211
    %v3284 = vpop.f32.mrf.mxu0
    %v3285 = vadd.f32 0.0, %v3284
    %v3286 = vpop.f32.mrf.mxu0
    %3287 = vdwg.mxu0
    %v3289 = vsel %vm493, %v2798, 0
    %v3292 = vsel %vm493, %v2874, 0
    %3294 = vmatprep.subr.mxu0 0.0
    %3295 = vmatpush1.msra.mxu0 0.0
    %3296 = vmatprep.subr.mxu0 0.0
    %3297 = vmatpush1.msra.mxu0 0.0
    %3298 = vmatprep.subr.mxu0 0.0
    %3299 = vmatpush1.msra.mxu0 0.0
    %3300 = vmatprep.subr.mxu0 0.0
    %3301 = vmatpush1.msra.mxu0 0.0
    %3302 = vmatprep.subr.mxu0 0.0
    %3303 = vmatpush1.msra.mxu0 0.0
    %3304 = vmatprep.subr.mxu0 0.0
    %3305 = vmatpush1.msra.mxu0 0.0
    %3306 = vmatprep.subr.mxu0 0.0
    %3307 = vmatpush1.msra.mxu0 0.0
    %3308 = vmatprep.subr.mxu0 0.0
    %3309 = vmatpush1.msra.mxu0 0.0
    %3310 = vmatprep.subr.mxu0 0.0
    %3311 = vmatpush1.msra.mxu0 0.0
    %3312 = vmatprep.subr.mxu0 0.0
    %3313 = vmatpush1.msra.mxu0 0.0
    %3314 = vmatprep.subr.mxu0 0.0
    %3315 = vmatpush1.msra.mxu0 0.0
    %3316 = vmatprep.subr.mxu0 0.0
    %3317 = vmatpush1.msra.mxu0 0.0
    %3318 = vmatprep.subr.mxu0 0.0
    %3319 = vmatpush1.msra.mxu0 0.0
    %3320 = vmatprep.subr.mxu0 0.0
    %3321 = vmatpush1.msra.mxu0 0.0
    %3322 = vmatprep.subr.mxu0 0.0
    %3323 = vmatpush1.msra.mxu0 0.0
    %3324 = vmatprep.subr.mxu0 0.0
    %3325 = vmatpush1.msra.mxu0 %v2438
    %3326 = vmatprep.subr.mxu0 0.0
    %3327 = vmatpush2.msra.mxu0 0.0
    %3328 = vmatprep.subr.mxu0 0.0
    %3329 = vmatpush2.msra.mxu0 0.0
    %3330 = vmatprep.subr.mxu0 0.0
    %3331 = vmatpush2.msra.mxu0 0.0
    %3332 = vmatprep.subr.mxu0 0.0
    %3333 = vmatpush2.msra.mxu0 0.0
    %3334 = vmatprep.subr.mxu0 0.0
    %3335 = vmatpush2.msra.mxu0 0.0
    %3336 = vmatprep.subr.mxu0 0.0
    %3337 = vmatpush2.msra.mxu0 0.0
    %3338 = vmatprep.subr.mxu0 0.0
    %3339 = vmatpush2.msra.mxu0 0.0
    %3340 = vmatprep.subr.mxu0 0.0
    %3341 = vmatpush2.msra.mxu0 0.0
    %3342 = vmatprep.subr.mxu0 0.0
    %3343 = vmatpush2.msra.mxu0 0.0
    %3344 = vmatprep.subr.mxu0 0.0
    %3345 = vmatpush2.msra.mxu0 0.0
    %3346 = vmatprep.subr.mxu0 0.0
    %3347 = vmatpush2.msra.mxu0 0.0
    %3348 = vmatprep.subr.mxu0 0.0
    %3349 = vmatpush2.msra.mxu0 0.0
    %3350 = vmatprep.subr.mxu0 0.0
    %3351 = vmatpush2.msra.mxu0 0.0
    %3352 = vmatprep.subr.mxu0 0.0
    %3353 = vmatpush2.msra.mxu0 0.0
    %3354 = vmatprep.subr.mxu0 0.0
    %3355 = vmatpush2.msra.mxu0 0.0
    %3356 = vmatprep.subr.mxu0 0.0
    %3357 = vmatpush2.msra.mxu0 0.0
    %3358 = vmatprep.mubr.f32.mxu0 0.0
    %3359 = vmatmul.mubr.f32.gmra.mxu0 %v3289
    %v3360 = vpop.f32.mrf.mxu0
    %v3361 = vadd.f32 %v3280, %v3360
    %v3362 = vpop.f32.mrf.mxu0
    %3363 = vmatprep.mubr.f32.mxu0 0.0
    %3364 = vmatmul.mubr.f32.gmra.mxu0 %v3292
    %v3365 = vpop.f32.mrf.mxu0
    %v3366 = vadd.f32 %v3285, %v3365
    %v3367 = vpop.f32.mrf.mxu0
    %3368 = vdwg.mxu0
    %3369 = vrot.lane.b32.xlu0 %v2541, 112
    %v3370 = vpop.permute.xlu0 %3369
    %3371 = vrot.lane.b32.xlu0 %v2541, 80
    %v3372 = vpop.permute.xlu0 %3371
    %v3373 = vsel %vm493, %v3370, 0
    %v3375 = vsel %vm493, %v3372, 0
    %3377 = vmatprep.subr.mxu0 0.0
    %3378 = vmatpush1.xpose.msra.mxu0 0.0
    %3379 = vmatprep.subr.mxu0 0.0
    %3380 = vmatpush1.xpose.msra.mxu0 0.0
    %3381 = vmatprep.subr.mxu0 0.0
    %3382 = vmatpush1.xpose.msra.mxu0 0.0
    %3383 = vmatprep.subr.mxu0 0.0
    %3384 = vmatpush1.xpose.msra.mxu0 0.0
    %3385 = vmatprep.subr.mxu0 0.0
    %3386 = vmatpush1.xpose.msra.mxu0 0.0
    %3387 = vmatprep.subr.mxu0 0.0
    %3388 = vmatpush1.xpose.msra.mxu0 0.0
    %3389 = vmatprep.subr.mxu0 0.0
    %3390 = vmatpush1.xpose.msra.mxu0 0.0
    %3391 = vmatprep.subr.mxu0 0.0
    %3392 = vmatpush1.xpose.msra.mxu0 0.0
    %3393 = vmatprep.subr.mxu0 0.0
    %3394 = vmatpush1.xpose.msra.mxu0 0.0
    %3395 = vmatprep.subr.mxu0 0.0
    %3396 = vmatpush1.xpose.msra.mxu0 0.0
    %3397 = vmatprep.subr.mxu0 0.0
    %3398 = vmatpush1.xpose.msra.mxu0 0.0
    %3399 = vmatprep.subr.mxu0 0.0
    %3400 = vmatpush1.xpose.msra.mxu0 0.0
    %3401 = vmatprep.subr.mxu0 0.0
    %3402 = vmatpush1.xpose.msra.mxu0 0.0
    %3403 = vmatprep.subr.mxu0 0.0
    %3404 = vmatpush1.xpose.msra.mxu0 0.0
    %3405 = vmatprep.subr.mxu0 0.0
    %3406 = vmatpush1.xpose.msra.mxu0 0.0
    %3407 = vmatprep.subr.mxu0 0.0
    %3408 = vmatpush1.xpose.msra.mxu0 %v3375
    %3409 = vmatprep.subr.mxu0 0.0
    %3410 = vmatpush2.xpose.msra.mxu0 0.0
    %3411 = vmatprep.subr.mxu0 0.0
    %3412 = vmatpush2.xpose.msra.mxu0 0.0
    %3413 = vmatprep.subr.mxu0 0.0
    %3414 = vmatpush2.xpose.msra.mxu0 0.0
    %3415 = vmatprep.subr.mxu0 0.0
    %3416 = vmatpush2.xpose.msra.mxu0 0.0
    %3417 = vmatprep.subr.mxu0 0.0
    %3418 = vmatpush2.xpose.msra.mxu0 0.0
    %3419 = vmatprep.subr.mxu0 0.0
    %3420 = vmatpush2.xpose.msra.mxu0 0.0
    %3421 = vmatprep.subr.mxu0 0.0
    %3422 = vmatpush2.xpose.msra.mxu0 0.0
    %3423 = vmatprep.subr.mxu0 0.0
    %3424 = vmatpush2.xpose.msra.mxu0 0.0
    %3425 = vmatprep.subr.mxu0 0.0
    %3426 = vmatpush2.xpose.msra.mxu0 0.0
    %3427 = vmatprep.subr.mxu0 0.0
    %3428 = vmatpush2.xpose.msra.mxu0 0.0
    %3429 = vmatprep.subr.mxu0 0.0
    %3430 = vmatpush2.xpose.msra.mxu0 0.0
    %3431 = vmatprep.subr.mxu0 0.0
    %3432 = vmatpush2.xpose.msra.mxu0 0.0
    %3433 = vmatprep.subr.mxu0 0.0
    %3434 = vmatpush2.xpose.msra.mxu0 0.0
    %3435 = vmatprep.subr.mxu0 0.0
    %3436 = vmatpush2.xpose.msra.mxu0 0.0
    %3437 = vmatprep.subr.mxu0 0.0
    %3438 = vmatpush2.xpose.msra.mxu0 0.0
    %3439 = vmatprep.subr.mxu0 0.0
    %3440 = vmatpush2.xpose.msra.mxu0 0.0
    %3441 = vmatprep.mubr.f32.mxu0 0.0
    %3442 = vmatmul.mubr.f32.gmra.mxu0 %v3373
    %v3443 = vpop.f32.mrf.mxu0
    %v3444 = vadd.f32 %v483, %v3443
    %v3445 = vpop.f32.mrf.mxu0
    %3446 = vdwg.mxu0
    %3447 = vrot.lane.b32.xlu0 %v2546, 112
    %v3448 = vpop.permute.xlu0 %3447
    %3449 = vrot.lane.b32.xlu0 %v2546, 80
    %v3450 = vpop.permute.xlu0 %3449
    %v3451 = vsel %vm493, %v3448, 0
    %v3453 = vsel %vm493, %v3450, 0
    %3455 = vmatprep.subr.mxu0 0.0
    %3456 = vmatpush1.xpose.msra.mxu0 0.0
    %3457 = vmatprep.subr.mxu0 0.0
    %3458 = vmatpush1.xpose.msra.mxu0 0.0
    %3459 = vmatprep.subr.mxu0 0.0
    %3460 = vmatpush1.xpose.msra.mxu0 0.0
    %3461 = vmatprep.subr.mxu0 0.0
    %3462 = vmatpush1.xpose.msra.mxu0 0.0
    %3463 = vmatprep.subr.mxu0 0.0
    %3464 = vmatpush1.xpose.msra.mxu0 0.0
    %3465 = vmatprep.subr.mxu0 0.0
    %3466 = vmatpush1.xpose.msra.mxu0 0.0
    %3467 = vmatprep.subr.mxu0 0.0
    %3468 = vmatpush1.xpose.msra.mxu0 0.0
    %3469 = vmatprep.subr.mxu0 0.0
    %3470 = vmatpush1.xpose.msra.mxu0 0.0
    %3471 = vmatprep.subr.mxu0 0.0
    %3472 = vmatpush1.xpose.msra.mxu0 0.0
    %3473 = vmatprep.subr.mxu0 0.0
    %3474 = vmatpush1.xpose.msra.mxu0 0.0
    %3475 = vmatprep.subr.mxu0 0.0
    %3476 = vmatpush1.xpose.msra.mxu0 0.0
    %3477 = vmatprep.subr.mxu0 0.0
    %3478 = vmatpush1.xpose.msra.mxu0 0.0
    %3479 = vmatprep.subr.mxu0 0.0
    %3480 = vmatpush1.xpose.msra.mxu0 0.0
    %3481 = vmatprep.subr.mxu0 0.0
    %3482 = vmatpush1.xpose.msra.mxu0 0.0
    %3483 = vmatprep.subr.mxu0 0.0
    %3484 = vmatpush1.xpose.msra.mxu0 0.0
    %3485 = vmatprep.subr.mxu0 0.0
    %3486 = vmatpush1.xpose.msra.mxu0 %v3453
    %3487 = vmatprep.subr.mxu0 0.0
    %3488 = vmatpush2.xpose.msra.mxu0 0.0
    %3489 = vmatprep.subr.mxu0 0.0
    %3490 = vmatpush2.xpose.msra.mxu0 0.0
    %3491 = vmatprep.subr.mxu0 0.0
    %3492 = vmatpush2.xpose.msra.mxu0 0.0
    %3493 = vmatprep.subr.mxu0 0.0
    %3494 = vmatpush2.xpose.msra.mxu0 0.0
    %3495 = vmatprep.subr.mxu0 0.0
    %3496 = vmatpush2.xpose.msra.mxu0 0.0
    %3497 = vmatprep.subr.mxu0 0.0
    %3498 = vmatpush2.xpose.msra.mxu0 0.0
    %3499 = vmatprep.subr.mxu0 0.0
    %3500 = vmatpush2.xpose.msra.mxu0 0.0
    %3501 = vmatprep.subr.mxu0 0.0
    %3502 = vmatpush2.xpose.msra.mxu0 0.0
    %3503 = vmatprep.subr.mxu0 0.0
    %3504 = vmatpush2.xpose.msra.mxu0 0.0
    %3505 = vmatprep.subr.mxu0 0.0
    %3506 = vmatpush2.xpose.msra.mxu0 0.0
    %3507 = vmatprep.subr.mxu0 0.0
    %3508 = vmatpush2.xpose.msra.mxu0 0.0
    %3509 = vmatprep.subr.mxu0 0.0
    %3510 = vmatpush2.xpose.msra.mxu0 0.0
    %3511 = vmatprep.subr.mxu0 0.0
    %3512 = vmatpush2.xpose.msra.mxu0 0.0
    %3513 = vmatprep.subr.mxu0 0.0
    %3514 = vmatpush2.xpose.msra.mxu0 0.0
    %3515 = vmatprep.subr.mxu0 0.0
    %3516 = vmatpush2.xpose.msra.mxu0 0.0
    %3517 = vmatprep.subr.mxu0 0.0
    %3518 = vmatpush2.xpose.msra.mxu0 0.0
    %3519 = vmatprep.mubr.f32.mxu0 0.0
    %3520 = vmatmul.mubr.f32.gmra.mxu0 %v3451
    %v3521 = vpop.f32.mrf.mxu0
    %v3522 = vadd.f32 %v487, %v3521
    %v3523 = vpop.f32.mrf.mxu0
    %3524 = vdwg.mxu0
    %v3525 = vsel %vm493, %v3444, -inf
    %3526 = vmax.xlane.f32.xlu0 %v3525
    %v3527 = vpop.xlane.xlu0 %3526
    %v3528 = vsel %vm493, %v3522, -inf
    %3529 = vmax.xlane.f32.xlu0 %v3528
    %v3530 = vpop.xlane.xlu0 %3529
    %v3531 = vsub.f32 %v3444, %v3527
    %v3532 = vsub.f32 %v3522, %v3530
    %v3533 = vmul.f32 %v3531, 1.442695
    %v3534 = vpow.pop %v3533
    %v3535 = vmul.f32 %v3532, 1.442695
    %v3536 = vpow.pop %v3535
    %v3537 = vsel %vm493, %v3534, 0.0
    %3538 = vadd.xlane.f32.xlu0 %v3537
    %v3539 = vpop.xlane.xlu0 %3538
    %v3540 = vsel %vm493, %v3536, 0.0
    %3541 = vadd.xlane.f32.xlu0 %v3540
    %v3542 = vpop.xlane.xlu0 %3541
    %v3543 = vrcp.pop %v3539
    %v3544 = vrcp.pop %v3542
    %v3545 = vmul.f32 %v3534, %v3543
    %v3546 = vmul.f32 %v3536, %v3544
    %3547 = vrot.lane.b32.xlu0 %v2541, 48
    %v3548 = vpop.permute.xlu0 %3547
    %v3551 = vsel %vm493, %v3545, 0
    %3553 = vmatprep.subr.mxu0 0.0
    %3554 = vmatpush1.msra.mxu0 0.0
    %3555 = vmatprep.subr.mxu0 0.0
    %3556 = vmatpush1.msra.mxu0 0.0
    %3557 = vmatprep.subr.mxu0 0.0
    %3558 = vmatpush1.msra.mxu0 0.0
    %3559 = vmatprep.subr.mxu0 0.0
    %3560 = vmatpush1.msra.mxu0 0.0
    %3561 = vmatprep.subr.mxu0 0.0
    %3562 = vmatpush1.msra.mxu0 0.0
    %3563 = vmatprep.subr.mxu0 0.0
    %3564 = vmatpush1.msra.mxu0 0.0
    %3565 = vmatprep.subr.mxu0 0.0
    %3566 = vmatpush1.msra.mxu0 0.0
    %3567 = vmatprep.subr.mxu0 0.0
    %3568 = vmatpush1.msra.mxu0 0.0
    %3569 = vmatprep.subr.mxu0 0.0
    %3570 = vmatpush1.msra.mxu0 0.0
    %3571 = vmatprep.subr.mxu0 0.0
    %3572 = vmatpush1.msra.mxu0 0.0
    %3573 = vmatprep.subr.mxu0 0.0
    %3574 = vmatpush1.msra.mxu0 0.0
    %3575 = vmatprep.subr.mxu0 0.0
    %3576 = vmatpush1.msra.mxu0 0.0
    %3577 = vmatprep.subr.mxu0 0.0
    %3578 = vmatpush1.msra.mxu0 0.0
    %3579 = vmatprep.subr.mxu0 0.0
    %3580 = vmatpush1.msra.mxu0 0.0
    %3581 = vmatprep.subr.mxu0 0.0
    %3582 = vmatpush1.msra.mxu0 0.0
    %3583 = vmatprep.subr.mxu0 0.0
    %3584 = vmatpush1.msra.mxu0 %v3548
    %3585 = vmatprep.subr.mxu0 0.0
    %3586 = vmatpush2.msra.mxu0 0.0
    %3587 = vmatprep.subr.mxu0 0.0
    %3588 = vmatpush2.msra.mxu0 0.0
    %3589 = vmatprep.subr.mxu0 0.0
    %3590 = vmatpush2.msra.mxu0 0.0
    %3591 = vmatprep.subr.mxu0 0.0
    %3592 = vmatpush2.msra.mxu0 0.0
    %3593 = vmatprep.subr.mxu0 0.0
    %3594 = vmatpush2.msra.mxu0 0.0
    %3595 = vmatprep.subr.mxu0 0.0
    %3596 = vmatpush2.msra.mxu0 0.0
    %3597 = vmatprep.subr.mxu0 0.0
    %3598 = vmatpush2.msra.mxu0 0.0
    %3599 = vmatprep.subr.mxu0 0.0
    %3600 = vmatpush2.msra.mxu0 0.0
    %3601 = vmatprep.subr.mxu0 0.0
    %3602 = vmatpush2.msra.mxu0 0.0
    %3603 = vmatprep.subr.mxu0 0.0
    %3604 = vmatpush2.msra.mxu0 0.0
    %3605 = vmatprep.subr.mxu0 0.0
    %3606 = vmatpush2.msra.mxu0 0.0
    %3607 = vmatprep.subr.mxu0 0.0
    %3608 = vmatpush2.msra.mxu0 0.0
    %3609 = vmatprep.subr.mxu0 0.0
    %3610 = vmatpush2.msra.mxu0 0.0
    %3611 = vmatprep.subr.mxu0 0.0
    %3612 = vmatpush2.msra.mxu0 0.0
    %3613 = vmatprep.subr.mxu0 0.0
    %3614 = vmatpush2.msra.mxu0 0.0
    %3615 = vmatprep.subr.mxu0 0.0
    %3616 = vmatpush2.msra.mxu0 0.0
    %3617 = vmatprep.mubr.f32.mxu0 0.0
    %3618 = vmatmul.mubr.f32.gmra.mxu0 %v3551
    %v3619 = vpop.f32.mrf.mxu0
    %v3620 = vadd.f32 0.0, %v3619
    %v3621 = vpop.f32.mrf.mxu0
    %3622 = vdwg.mxu0
    %3623 = vrot.lane.b32.xlu0 %v2546, 48
    %v3624 = vpop.permute.xlu0 %3623
    %v3627 = vsel %vm493, %v3546, 0
    %3629 = vmatprep.subr.mxu0 0.0
    %3630 = vmatpush1.msra.mxu0 0.0
    %3631 = vmatprep.subr.mxu0 0.0
    %3632 = vmatpush1.msra.mxu0 0.0
    %3633 = vmatprep.subr.mxu0 0.0
    %3634 = vmatpush1.msra.mxu0 0.0
    %3635 = vmatprep.subr.mxu0 0.0
    %3636 = vmatpush1.msra.mxu0 0.0
    %3637 = vmatprep.subr.mxu0 0.0
    %3638 = vmatpush1.msra.mxu0 0.0
    %3639 = vmatprep.subr.mxu0 0.0
    %3640 = vmatpush1.msra.mxu0 0.0
    %3641 = vmatprep.subr.mxu0 0.0
    %3642 = vmatpush1.msra.mxu0 0.0
    %3643 = vmatprep.subr.mxu0 0.0
    %3644 = vmatpush1.msra.mxu0 0.0
    %3645 = vmatprep.subr.mxu0 0.0
    %3646 = vmatpush1.msra.mxu0 0.0
    %3647 = vmatprep.subr.mxu0 0.0
    %3648 = vmatpush1.msra.mxu0 0.0
    %3649 = vmatprep.subr.mxu0 0.0
    %3650 = vmatpush1.msra.mxu0 0.0
    %3651 = vmatprep.subr.mxu0 0.0
    %3652 = vmatpush1.msra.mxu0 0.0
    %3653 = vmatprep.subr.mxu0 0.0
    %3654 = vmatpush1.msra.mxu0 0.0
    %3655 = vmatprep.subr.mxu0 0.0
    %3656 = vmatpush1.msra.mxu0 0.0
    %3657 = vmatprep.subr.mxu0 0.0
    %3658 = vmatpush1.msra.mxu0 0.0
    %3659 = vmatprep.subr.mxu0 0.0
    %3660 = vmatpush1.msra.mxu0 %v3624
    %3661 = vmatprep.subr.mxu0 0.0
    %3662 = vmatpush2.msra.mxu0 0.0
    %3663 = vmatprep.subr.mxu0 0.0
    %3664 = vmatpush2.msra.mxu0 0.0
    %3665 = vmatprep.subr.mxu0 0.0
    %3666 = vmatpush2.msra.mxu0 0.0
    %3667 = vmatprep.subr.mxu0 0.0
    %3668 = vmatpush2.msra.mxu0 0.0
    %3669 = vmatprep.subr.mxu0 0.0
    %3670 = vmatpush2.msra.mxu0 0.0
    %3671 = vmatprep.subr.mxu0 0.0
    %3672 = vmatpush2.msra.mxu0 0.0
    %3673 = vmatprep.subr.mxu0 0.0
    %3674 = vmatpush2.msra.mxu0 0.0
    %3675 = vmatprep.subr.mxu0 0.0
    %3676 = vmatpush2.msra.mxu0 0.0
    %3677 = vmatprep.subr.mxu0 0.0
    %3678 = vmatpush2.msra.mxu0 0.0
    %3679 = vmatprep.subr.mxu0 0.0
    %3680 = vmatpush2.msra.mxu0 0.0
    %3681 = vmatprep.subr.mxu0 0.0
    %3682 = vmatpush2.msra.mxu0 0.0
    %3683 = vmatprep.subr.mxu0 0.0
    %3684 = vmatpush2.msra.mxu0 0.0
    %3685 = vmatprep.subr.mxu0 0.0
    %3686 = vmatpush2.msra.mxu0 0.0
    %3687 = vmatprep.subr.mxu0 0.0
    %3688 = vmatpush2.msra.mxu0 0.0
    %3689 = vmatprep.subr.mxu0 0.0
    %3690 = vmatpush2.msra.mxu0 0.0
    %3691 = vmatprep.subr.mxu0 0.0
    %3692 = vmatpush2.msra.mxu0 0.0
    %3693 = vmatprep.mubr.f32.mxu0 0.0
    %3694 = vmatmul.mubr.f32.gmra.mxu0 %v3627
    %v3695 = vpop.f32.mrf.mxu0
    %v3696 = vadd.f32 0.0, %v3695
    %v3697 = vpop.f32.mrf.mxu0
    %3698 = vdwg.mxu0
    %v3700 = vsel %vm493, %v3620, 0
    %v3703 = vsel %vm493, %v3696, 0
    %3705 = vmatprep.subr.mxu0 0.0
    %3706 = vmatpush1.msra.mxu0 0.0
    %3707 = vmatprep.subr.mxu0 0.0
    %3708 = vmatpush1.msra.mxu0 0.0
    %3709 = vmatprep.subr.mxu0 0.0
    %3710 = vmatpush1.msra.mxu0 0.0
    %3711 = vmatprep.subr.mxu0 0.0
    %3712 = vmatpush1.msra.mxu0 0.0
    %3713 = vmatprep.subr.mxu0 0.0
    %3714 = vmatpush1.msra.mxu0 0.0
    %3715 = vmatprep.subr.mxu0 0.0
    %3716 = vmatpush1.msra.mxu0 0.0
    %3717 = vmatprep.subr.mxu0 0.0
    %3718 = vmatpush1.msra.mxu0 0.0
    %3719 = vmatprep.subr.mxu0 0.0
    %3720 = vmatpush1.msra.mxu0 0.0
    %3721 = vmatprep.subr.mxu0 0.0
    %3722 = vmatpush1.msra.mxu0 0.0
    %3723 = vmatprep.subr.mxu0 0.0
    %3724 = vmatpush1.msra.mxu0 0.0
    %3725 = vmatprep.subr.mxu0 0.0
    %3726 = vmatpush1.msra.mxu0 0.0
    %3727 = vmatprep.subr.mxu0 0.0
    %3728 = vmatpush1.msra.mxu0 0.0
    %3729 = vmatprep.subr.mxu0 0.0
    %3730 = vmatpush1.msra.mxu0 0.0
    %3731 = vmatprep.subr.mxu0 0.0
    %3732 = vmatpush1.msra.mxu0 0.0
    %3733 = vmatprep.subr.mxu0 0.0
    %3734 = vmatpush1.msra.mxu0 0.0
    %3735 = vmatprep.subr.mxu0 0.0
    %3736 = vmatpush1.msra.mxu0 %v2440
    %3737 = vmatprep.subr.mxu0 0.0
    %3738 = vmatpush2.msra.mxu0 0.0
    %3739 = vmatprep.subr.mxu0 0.0
    %3740 = vmatpush2.msra.mxu0 0.0
    %3741 = vmatprep.subr.mxu0 0.0
    %3742 = vmatpush2.msra.mxu0 0.0
    %3743 = vmatprep.subr.mxu0 0.0
    %3744 = vmatpush2.msra.mxu0 0.0
    %3745 = vmatprep.subr.mxu0 0.0
    %3746 = vmatpush2.msra.mxu0 0.0
    %3747 = vmatprep.subr.mxu0 0.0
    %3748 = vmatpush2.msra.mxu0 0.0
    %3749 = vmatprep.subr.mxu0 0.0
    %3750 = vmatpush2.msra.mxu0 0.0
    %3751 = vmatprep.subr.mxu0 0.0
    %3752 = vmatpush2.msra.mxu0 0.0
    %3753 = vmatprep.subr.mxu0 0.0
    %3754 = vmatpush2.msra.mxu0 0.0
    %3755 = vmatprep.subr.mxu0 0.0
    %3756 = vmatpush2.msra.mxu0 0.0
    %3757 = vmatprep.subr.mxu0 0.0
    %3758 = vmatpush2.msra.mxu0 0.0
    %3759 = vmatprep.subr.mxu0 0.0
    %3760 = vmatpush2.msra.mxu0 0.0
    %3761 = vmatprep.subr.mxu0 0.0
    %3762 = vmatpush2.msra.mxu0 0.0
    %3763 = vmatprep.subr.mxu0 0.0
    %3764 = vmatpush2.msra.mxu0 0.0
    %3765 = vmatprep.subr.mxu0 0.0
    %3766 = vmatpush2.msra.mxu0 0.0
    %3767 = vmatprep.subr.mxu0 0.0
    %3768 = vmatpush2.msra.mxu0 0.0
    %3769 = vmatprep.mubr.f32.mxu0 0.0
    %3770 = vmatmul.mubr.f32.gmra.mxu0 %v3700
    %v3771 = vpop.f32.mrf.mxu0
    %v3772 = vadd.f32 0.0, %v3771
    %v3773 = vpop.f32.mrf.mxu0
    %3774 = vmatprep.mubr.f32.mxu0 0.0
    %3775 = vmatmul.mubr.f32.gmra.mxu0 %v3703
    %v3776 = vpop.f32.mrf.mxu0
    %v3777 = vadd.f32 0.0, %v3776
    %v3778 = vpop.f32.mrf.mxu0
    %3779 = vdwg.mxu0
    %v3780 = vadd.f32 %v3361, %v3772
    %v3781 = vadd.f32 %v3366, %v3777
    %3782 = vrot.lane.b32.xlu0 %v2541, 104
    %v3783 = vpop.permute.xlu0 %3782
    %3784 = vrot.lane.b32.xlu0 %v2541, 72
    %v3785 = vpop.permute.xlu0 %3784
    %v3786 = vsel %vm493, %v3783, 0
    %v3788 = vsel %vm493, %v3785, 0
    %3790 = vmatprep.subr.mxu0 0.0
    %3791 = vmatpush1.xpose.msra.mxu0 0.0
    %3792 = vmatprep.subr.mxu0 0.0
    %3793 = vmatpush1.xpose.msra.mxu0 0.0
    %3794 = vmatprep.subr.mxu0 0.0
    %3795 = vmatpush1.xpose.msra.mxu0 0.0
    %3796 = vmatprep.subr.mxu0 0.0
    %3797 = vmatpush1.xpose.msra.mxu0 0.0
    %3798 = vmatprep.subr.mxu0 0.0
    %3799 = vmatpush1.xpose.msra.mxu0 0.0
    %3800 = vmatprep.subr.mxu0 0.0
    %3801 = vmatpush1.xpose.msra.mxu0 0.0
    %3802 = vmatprep.subr.mxu0 0.0
    %3803 = vmatpush1.xpose.msra.mxu0 0.0
    %3804 = vmatprep.subr.mxu0 0.0
    %3805 = vmatpush1.xpose.msra.mxu0 0.0
    %3806 = vmatprep.subr.mxu0 0.0
    %3807 = vmatpush1.xpose.msra.mxu0 0.0
    %3808 = vmatprep.subr.mxu0 0.0
    %3809 = vmatpush1.xpose.msra.mxu0 0.0
    %3810 = vmatprep.subr.mxu0 0.0
    %3811 = vmatpush1.xpose.msra.mxu0 0.0
    %3812 = vmatprep.subr.mxu0 0.0
    %3813 = vmatpush1.xpose.msra.mxu0 0.0
    %3814 = vmatprep.subr.mxu0 0.0
    %3815 = vmatpush1.xpose.msra.mxu0 0.0
    %3816 = vmatprep.subr.mxu0 0.0
    %3817 = vmatpush1.xpose.msra.mxu0 0.0
    %3818 = vmatprep.subr.mxu0 0.0
    %3819 = vmatpush1.xpose.msra.mxu0 0.0
    %3820 = vmatprep.subr.mxu0 0.0
    %3821 = vmatpush1.xpose.msra.mxu0 %v3788
    %3822 = vmatprep.subr.mxu0 0.0
    %3823 = vmatpush2.xpose.msra.mxu0 0.0
    %3824 = vmatprep.subr.mxu0 0.0
    %3825 = vmatpush2.xpose.msra.mxu0 0.0
    %3826 = vmatprep.subr.mxu0 0.0
    %3827 = vmatpush2.xpose.msra.mxu0 0.0
    %3828 = vmatprep.subr.mxu0 0.0
    %3829 = vmatpush2.xpose.msra.mxu0 0.0
    %3830 = vmatprep.subr.mxu0 0.0
    %3831 = vmatpush2.xpose.msra.mxu0 0.0
    %3832 = vmatprep.subr.mxu0 0.0
    %3833 = vmatpush2.xpose.msra.mxu0 0.0
    %3834 = vmatprep.subr.mxu0 0.0
    %3835 = vmatpush2.xpose.msra.mxu0 0.0
    %3836 = vmatprep.subr.mxu0 0.0
    %3837 = vmatpush2.xpose.msra.mxu0 0.0
    %3838 = vmatprep.subr.mxu0 0.0
    %3839 = vmatpush2.xpose.msra.mxu0 0.0
    %3840 = vmatprep.subr.mxu0 0.0
    %3841 = vmatpush2.xpose.msra.mxu0 0.0
    %3842 = vmatprep.subr.mxu0 0.0
    %3843 = vmatpush2.xpose.msra.mxu0 0.0
    %3844 = vmatprep.subr.mxu0 0.0
    %3845 = vmatpush2.xpose.msra.mxu0 0.0
    %3846 = vmatprep.subr.mxu0 0.0
    %3847 = vmatpush2.xpose.msra.mxu0 0.0
    %3848 = vmatprep.subr.mxu0 0.0
    %3849 = vmatpush2.xpose.msra.mxu0 0.0
    %3850 = vmatprep.subr.mxu0 0.0
    %3851 = vmatpush2.xpose.msra.mxu0 0.0
    %3852 = vmatprep.subr.mxu0 0.0
    %3853 = vmatpush2.xpose.msra.mxu0 0.0
    %3854 = vmatprep.mubr.f32.mxu0 0.0
    %3855 = vmatmul.mubr.f32.gmra.mxu0 %v3786
    %v3856 = vpop.f32.mrf.mxu0
    %v3857 = vadd.f32 %v483, %v3856
    %v3858 = vpop.f32.mrf.mxu0
    %3859 = vdwg.mxu0
    %3860 = vrot.lane.b32.xlu0 %v2546, 104
    %v3861 = vpop.permute.xlu0 %3860
    %3862 = vrot.lane.b32.xlu0 %v2546, 72
    %v3863 = vpop.permute.xlu0 %3862
    %v3864 = vsel %vm493, %v3861, 0
    %v3866 = vsel %vm493, %v3863, 0
    %3868 = vmatprep.subr.mxu0 0.0
    %3869 = vmatpush1.xpose.msra.mxu0 0.0
    %3870 = vmatprep.subr.mxu0 0.0
    %3871 = vmatpush1.xpose.msra.mxu0 0.0
    %3872 = vmatprep.subr.mxu0 0.0
    %3873 = vmatpush1.xpose.msra.mxu0 0.0
    %3874 = vmatprep.subr.mxu0 0.0
    %3875 = vmatpush1.xpose.msra.mxu0 0.0
    %3876 = vmatprep.subr.mxu0 0.0
    %3877 = vmatpush1.xpose.msra.mxu0 0.0
    %3878 = vmatprep.subr.mxu0 0.0
    %3879 = vmatpush1.xpose.msra.mxu0 0.0
    %3880 = vmatprep.subr.mxu0 0.0
    %3881 = vmatpush1.xpose.msra.mxu0 0.0
    %3882 = vmatprep.subr.mxu0 0.0
    %3883 = vmatpush1.xpose.msra.mxu0 0.0
    %3884 = vmatprep.subr.mxu0 0.0
    %3885 = vmatpush1.xpose.msra.mxu0 0.0
    %3886 = vmatprep.subr.mxu0 0.0
    %3887 = vmatpush1.xpose.msra.mxu0 0.0
    %3888 = vmatprep.subr.mxu0 0.0
    %3889 = vmatpush1.xpose.msra.mxu0 0.0
    %3890 = vmatprep.subr.mxu0 0.0
    %3891 = vmatpush1.xpose.msra.mxu0 0.0
    %3892 = vmatprep.subr.mxu0 0.0
    %3893 = vmatpush1.xpose.msra.mxu0 0.0
    %3894 = vmatprep.subr.mxu0 0.0
    %3895 = vmatpush1.xpose.msra.mxu0 0.0
    %3896 = vmatprep.subr.mxu0 0.0
    %3897 = vmatpush1.xpose.msra.mxu0 0.0
    %3898 = vmatprep.subr.mxu0 0.0
    %3899 = vmatpush1.xpose.msra.mxu0 %v3866
    %3900 = vmatprep.subr.mxu0 0.0
    %3901 = vmatpush2.xpose.msra.mxu0 0.0
    %3902 = vmatprep.subr.mxu0 0.0
    %3903 = vmatpush2.xpose.msra.mxu0 0.0
    %3904 = vmatprep.subr.mxu0 0.0
    %3905 = vmatpush2.xpose.msra.mxu0 0.0
    %3906 = vmatprep.subr.mxu0 0.0
    %3907 = vmatpush2.xpose.msra.mxu0 0.0
    %3908 = vmatprep.subr.mxu0 0.0
    %3909 = vmatpush2.xpose.msra.mxu0 0.0
    %3910 = vmatprep.subr.mxu0 0.0
    %3911 = vmatpush2.xpose.msra.mxu0 0.0
    %3912 = vmatprep.subr.mxu0 0.0
    %3913 = vmatpush2.xpose.msra.mxu0 0.0
    %3914 = vmatprep.subr.mxu0 0.0
    %3915 = vmatpush2.xpose.msra.mxu0 0.0
    %3916 = vmatprep.subr.mxu0 0.0
    %3917 = vmatpush2.xpose.msra.mxu0 0.0
    %3918 = vmatprep.subr.mxu0 0.0
    %3919 = vmatpush2.xpose.msra.mxu0 0.0
    %3920 = vmatprep.subr.mxu0 0.0
    %3921 = vmatpush2.xpose.msra.mxu0 0.0
    %3922 = vmatprep.subr.mxu0 0.0
    %3923 = vmatpush2.xpose.msra.mxu0 0.0
    %3924 = vmatprep.subr.mxu0 0.0
    %3925 = vmatpush2.xpose.msra.mxu0 0.0
    %3926 = vmatprep.subr.mxu0 0.0
    %3927 = vmatpush2.xpose.msra.mxu0 0.0
    %3928 = vmatprep.subr.mxu0 0.0
    %3929 = vmatpush2.xpose.msra.mxu0 0.0
    %3930 = vmatprep.subr.mxu0 0.0
    %3931 = vmatpush2.xpose.msra.mxu0 0.0
    %3932 = vmatprep.mubr.f32.mxu0 0.0
    %3933 = vmatmul.mubr.f32.gmra.mxu0 %v3864
    %v3934 = vpop.f32.mrf.mxu0
    %v3935 = vadd.f32 %v487, %v3934
    %v3936 = vpop.f32.mrf.mxu0
    %3937 = vdwg.mxu0
    %v3938 = vsel %vm493, %v3857, -inf
    %3939 = vmax.xlane.f32.xlu0 %v3938
    %v3940 = vpop.xlane.xlu0 %3939
    %v3941 = vsel %vm493, %v3935, -inf
    %3942 = vmax.xlane.f32.xlu0 %v3941
    %v3943 = vpop.xlane.xlu0 %3942
    %v3944 = vsub.f32 %v3857, %v3940
    %v3945 = vsub.f32 %v3935, %v3943
    %v3946 = vmul.f32 %v3944, 1.442695
    %v3947 = vpow.pop %v3946
    %v3948 = vmul.f32 %v3945, 1.442695
    %v3949 = vpow.pop %v3948
    %v3950 = vsel %vm493, %v3947, 0.0
    %3951 = vadd.xlane.f32.xlu0 %v3950
    %v3952 = vpop.xlane.xlu0 %3951
    %v3953 = vsel %vm493, %v3949, 0.0
    %3954 = vadd.xlane.f32.xlu0 %v3953
    %v3955 = vpop.xlane.xlu0 %3954
    %v3956 = vrcp.pop %v3952
    %v3957 = vrcp.pop %v3955
    %v3958 = vmul.f32 %v3947, %v3956
    %v3959 = vmul.f32 %v3949, %v3957
    %3960 = vrot.lane.b32.xlu0 %v2541, 40
    %v3961 = vpop.permute.xlu0 %3960
    %v3964 = vsel %vm493, %v3958, 0
    %3966 = vmatprep.subr.mxu0 0.0
    %3967 = vmatpush1.msra.mxu0 0.0
    %3968 = vmatprep.subr.mxu0 0.0
    %3969 = vmatpush1.msra.mxu0 0.0
    %3970 = vmatprep.subr.mxu0 0.0
    %3971 = vmatpush1.msra.mxu0 0.0
    %3972 = vmatprep.subr.mxu0 0.0
    %3973 = vmatpush1.msra.mxu0 0.0
    %3974 = vmatprep.subr.mxu0 0.0
    %3975 = vmatpush1.msra.mxu0 0.0
    %3976 = vmatprep.subr.mxu0 0.0
    %3977 = vmatpush1.msra.mxu0 0.0
    %3978 = vmatprep.subr.mxu0 0.0
    %3979 = vmatpush1.msra.mxu0 0.0
    %3980 = vmatprep.subr.mxu0 0.0
    %3981 = vmatpush1.msra.mxu0 0.0
    %3982 = vmatprep.subr.mxu0 0.0
    %3983 = vmatpush1.msra.mxu0 0.0
    %3984 = vmatprep.subr.mxu0 0.0
    %3985 = vmatpush1.msra.mxu0 0.0
    %3986 = vmatprep.subr.mxu0 0.0
    %3987 = vmatpush1.msra.mxu0 0.0
    %3988 = vmatprep.subr.mxu0 0.0
    %3989 = vmatpush1.msra.mxu0 0.0
    %3990 = vmatprep.subr.mxu0 0.0
    %3991 = vmatpush1.msra.mxu0 0.0
    %3992 = vmatprep.subr.mxu0 0.0
    %3993 = vmatpush1.msra.mxu0 0.0
    %3994 = vmatprep.subr.mxu0 0.0
    %3995 = vmatpush1.msra.mxu0 0.0
    %3996 = vmatprep.subr.mxu0 0.0
    %3997 = vmatpush1.msra.mxu0 %v3961
    %3998 = vmatprep.subr.mxu0 0.0
    %3999 = vmatpush2.msra.mxu0 0.0
    %4000 = vmatprep.subr.mxu0 0.0
    %4001 = vmatpush2.msra.mxu0 0.0
    %4002 = vmatprep.subr.mxu0 0.0
    %4003 = vmatpush2.msra.mxu0 0.0
    %4004 = vmatprep.subr.mxu0 0.0
    %4005 = vmatpush2.msra.mxu0 0.0
    %4006 = vmatprep.subr.mxu0 0.0
    %4007 = vmatpush2.msra.mxu0 0.0
    %4008 = vmatprep.subr.mxu0 0.0
    %4009 = vmatpush2.msra.mxu0 0.0
    %4010 = vmatprep.subr.mxu0 0.0
    %4011 = vmatpush2.msra.mxu0 0.0
    %4012 = vmatprep.subr.mxu0 0.0
    %4013 = vmatpush2.msra.mxu0 0.0
    %4014 = vmatprep.subr.mxu0 0.0
    %4015 = vmatpush2.msra.mxu0 0.0
    %4016 = vmatprep.subr.mxu0 0.0
    %4017 = vmatpush2.msra.mxu0 0.0
    %4018 = vmatprep.subr.mxu0 0.0
    %4019 = vmatpush2.msra.mxu0 0.0
    %4020 = vmatprep.subr.mxu0 0.0
    %4021 = vmatpush2.msra.mxu0 0.0
    %4022 = vmatprep.subr.mxu0 0.0
    %4023 = vmatpush2.msra.mxu0 0.0
    %4024 = vmatprep.subr.mxu0 0.0
    %4025 = vmatpush2.msra.mxu0 0.0
    %4026 = vmatprep.subr.mxu0 0.0
    %4027 = vmatpush2.msra.mxu0 0.0
    %4028 = vmatprep.subr.mxu0 0.0
    %4029 = vmatpush2.msra.mxu0 0.0
    %4030 = vmatprep.mubr.f32.mxu0 0.0
    %4031 = vmatmul.mubr.f32.gmra.mxu0 %v3964
    %v4032 = vpop.f32.mrf.mxu0
    %v4033 = vadd.f32 0.0, %v4032
    %v4034 = vpop.f32.mrf.mxu0
    %4035 = vdwg.mxu0
    %4036 = vrot.lane.b32.xlu0 %v2546, 40
    %v4037 = vpop.permute.xlu0 %4036
    %v4040 = vsel %vm493, %v3959, 0
    %4042 = vmatprep.subr.mxu0 0.0
    %4043 = vmatpush1.msra.mxu0 0.0
    %4044 = vmatprep.subr.mxu0 0.0
    %4045 = vmatpush1.msra.mxu0 0.0
    %4046 = vmatprep.subr.mxu0 0.0
    %4047 = vmatpush1.msra.mxu0 0.0
    %4048 = vmatprep.subr.mxu0 0.0
    %4049 = vmatpush1.msra.mxu0 0.0
    %4050 = vmatprep.subr.mxu0 0.0
    %4051 = vmatpush1.msra.mxu0 0.0
    %4052 = vmatprep.subr.mxu0 0.0
    %4053 = vmatpush1.msra.mxu0 0.0
    %4054 = vmatprep.subr.mxu0 0.0
    %4055 = vmatpush1.msra.mxu0 0.0
    %4056 = vmatprep.subr.mxu0 0.0
    %4057 = vmatpush1.msra.mxu0 0.0
    %4058 = vmatprep.subr.mxu0 0.0
    %4059 = vmatpush1.msra.mxu0 0.0
    %4060 = vmatprep.subr.mxu0 0.0
    %4061 = vmatpush1.msra.mxu0 0.0
    %4062 = vmatprep.subr.mxu0 0.0
    %4063 = vmatpush1.msra.mxu0 0.0
    %4064 = vmatprep.subr.mxu0 0.0
    %4065 = vmatpush1.msra.mxu0 0.0
    %4066 = vmatprep.subr.mxu0 0.0
    %4067 = vmatpush1.msra.mxu0 0.0
    %4068 = vmatprep.subr.mxu0 0.0
    %4069 = vmatpush1.msra.mxu0 0.0
    %4070 = vmatprep.subr.mxu0 0.0
    %4071 = vmatpush1.msra.mxu0 0.0
    %4072 = vmatprep.subr.mxu0 0.0
    %4073 = vmatpush1.msra.mxu0 %v4037
    %4074 = vmatprep.subr.mxu0 0.0
    %4075 = vmatpush2.msra.mxu0 0.0
    %4076 = vmatprep.subr.mxu0 0.0
    %4077 = vmatpush2.msra.mxu0 0.0
    %4078 = vmatprep.subr.mxu0 0.0
    %4079 = vmatpush2.msra.mxu0 0.0
    %4080 = vmatprep.subr.mxu0 0.0
    %4081 = vmatpush2.msra.mxu0 0.0
    %4082 = vmatprep.subr.mxu0 0.0
    %4083 = vmatpush2.msra.mxu0 0.0
    %4084 = vmatprep.subr.mxu0 0.0
    %4085 = vmatpush2.msra.mxu0 0.0
    %4086 = vmatprep.subr.mxu0 0.0
    %4087 = vmatpush2.msra.mxu0 0.0
    %4088 = vmatprep.subr.mxu0 0.0
    %4089 = vmatpush2.msra.mxu0 0.0
    %4090 = vmatprep.subr.mxu0 0.0
    %4091 = vmatpush2.msra.mxu0 0.0
    %4092 = vmatprep.subr.mxu0 0.0
    %4093 = vmatpush2.msra.mxu0 0.0
    %4094 = vmatprep.subr.mxu0 0.0
    %4095 = vmatpush2.msra.mxu0 0.0
    %4096 = vmatprep.subr.mxu0 0.0
    %4097 = vmatpush2.msra.mxu0 0.0
    %4098 = vmatprep.subr.mxu0 0.0
    %4099 = vmatpush2.msra.mxu0 0.0
    %4100 = vmatprep.subr.mxu0 0.0
    %4101 = vmatpush2.msra.mxu0 0.0
    %4102 = vmatprep.subr.mxu0 0.0
    %4103 = vmatpush2.msra.mxu0 0.0
    %4104 = vmatprep.subr.mxu0 0.0
    %4105 = vmatpush2.msra.mxu0 0.0
    %4106 = vmatprep.mubr.f32.mxu0 0.0
    %4107 = vmatmul.mubr.f32.gmra.mxu0 %v4040
    %v4108 = vpop.f32.mrf.mxu0
    %v4109 = vadd.f32 0.0, %v4108
    %v4110 = vpop.f32.mrf.mxu0
    %4111 = vdwg.mxu0
    %v4113 = vsel %vm493, %v4033, 0
    %v4116 = vsel %vm493, %v4109, 0
    %4118 = vmatprep.subr.mxu0 0.0
    %4119 = vmatpush1.msra.mxu0 0.0
    %4120 = vmatprep.subr.mxu0 0.0
    %4121 = vmatpush1.msra.mxu0 0.0
    %4122 = vmatprep.subr.mxu0 0.0
    %4123 = vmatpush1.msra.mxu0 0.0
    %4124 = vmatprep.subr.mxu0 0.0
    %4125 = vmatpush1.msra.mxu0 0.0
    %4126 = vmatprep.subr.mxu0 0.0
    %4127 = vmatpush1.msra.mxu0 0.0
    %4128 = vmatprep.subr.mxu0 0.0
    %4129 = vmatpush1.msra.mxu0 0.0
    %4130 = vmatprep.subr.mxu0 0.0
    %4131 = vmatpush1.msra.mxu0 0.0
    %4132 = vmatprep.subr.mxu0 0.0
    %4133 = vmatpush1.msra.mxu0 0.0
    %4134 = vmatprep.subr.mxu0 0.0
    %4135 = vmatpush1.msra.mxu0 0.0
    %4136 = vmatprep.subr.mxu0 0.0
    %4137 = vmatpush1.msra.mxu0 0.0
    %4138 = vmatprep.subr.mxu0 0.0
    %4139 = vmatpush1.msra.mxu0 0.0
    %4140 = vmatprep.subr.mxu0 0.0
    %4141 = vmatpush1.msra.mxu0 0.0
    %4142 = vmatprep.subr.mxu0 0.0
    %4143 = vmatpush1.msra.mxu0 0.0
    %4144 = vmatprep.subr.mxu0 0.0
    %4145 = vmatpush1.msra.mxu0 0.0
    %4146 = vmatprep.subr.mxu0 0.0
    %4147 = vmatpush1.msra.mxu0 0.0
    %4148 = vmatprep.subr.mxu0 0.0
    %4149 = vmatpush1.msra.mxu0 %v2441
    %4150 = vmatprep.subr.mxu0 0.0
    %4151 = vmatpush2.msra.mxu0 0.0
    %4152 = vmatprep.subr.mxu0 0.0
    %4153 = vmatpush2.msra.mxu0 0.0
    %4154 = vmatprep.subr.mxu0 0.0
    %4155 = vmatpush2.msra.mxu0 0.0
    %4156 = vmatprep.subr.mxu0 0.0
    %4157 = vmatpush2.msra.mxu0 0.0
    %4158 = vmatprep.subr.mxu0 0.0
    %4159 = vmatpush2.msra.mxu0 0.0
    %4160 = vmatprep.subr.mxu0 0.0
    %4161 = vmatpush2.msra.mxu0 0.0
    %4162 = vmatprep.subr.mxu0 0.0
    %4163 = vmatpush2.msra.mxu0 0.0
    %4164 = vmatprep.subr.mxu0 0.0
    %4165 = vmatpush2.msra.mxu0 0.0
    %4166 = vmatprep.subr.mxu0 0.0
    %4167 = vmatpush2.msra.mxu0 0.0
    %4168 = vmatprep.subr.mxu0 0.0
    %4169 = vmatpush2.msra.mxu0 0.0
    %4170 = vmatprep.subr.mxu0 0.0
    %4171 = vmatpush2.msra.mxu0 0.0
    %4172 = vmatprep.subr.mxu0 0.0
    %4173 = vmatpush2.msra.mxu0 0.0
    %4174 = vmatprep.subr.mxu0 0.0
    %4175 = vmatpush2.msra.mxu0 0.0
    %4176 = vmatprep.subr.mxu0 0.0
    %4177 = vmatpush2.msra.mxu0 0.0
    %4178 = vmatprep.subr.mxu0 0.0
    %4179 = vmatpush2.msra.mxu0 0.0
    %4180 = vmatprep.subr.mxu0 0.0
    %4181 = vmatpush2.msra.mxu0 0.0
    %4182 = vmatprep.mubr.f32.mxu0 0.0
    %4183 = vmatmul.mubr.f32.gmra.mxu0 %v4113
    %v4184 = vpop.f32.mrf.mxu0
    %v4185 = vadd.f32 0.0, %v4184
    %v4186 = vpop.f32.mrf.mxu0
    %4187 = vmatprep.mubr.f32.mxu0 0.0
    %4188 = vmatmul.mubr.f32.gmra.mxu0 %v4116
    %v4189 = vpop.f32.mrf.mxu0
    %v4190 = vadd.f32 0.0, %v4189
    %v4191 = vpop.f32.mrf.mxu0
    %4192 = vdwg.mxu0
    %v4193 = vadd.f32 %v3780, %v4185
    %v4194 = vadd.f32 %v3781, %v4190
    %v4196 = vlaneseq
    %v4197 = vshrl.u32 %v4196, 7
    %v4198 = vsub.s32 0, %v4197
    %v4199 = vrot.slane %v2443, %v4198
    %v4201 = vadd.f32 %v4193, %v4199
    %v4202 = vadd.f32 %v4194, %v4199
    %v4203 = vadd.f32 %v4201, %v2428
    %v4204 = vadd.f32 %v4202, %v2429
    %s4205 = scalar_lea.vmem %s13, 1
    %v4206 = vld [vmem:[%s4205] sm:$0x1]
    %s4207 = scalar_lea.vmem %s14, 1
    %v4208 = vld [vmem:[%s4207] sm:$0x1]
    %v4209 = vsel %vm317, %v4203, 0.0
    %4210 = vadd.xlane.f32.xlu0 %v4209
    %v4211 = vpop.xlane.xlu0 %4210
    %v4212 = vsel %vm317, %v4204, 0.0
    %4213 = vadd.xlane.f32.xlu0 %v4212
    %v4214 = vpop.xlane.xlu0 %4213
    %v4215 = vmul.f32 %v4211, %v324
    %v4216 = vmul.f32 %v4214, %v324
    %v4217 = vsub.f32 %v4203, %v4215
    %v4218 = vsub.f32 %v4204, %v4216
    %v4219 = vmul.f32 %v4217, %v4217
    %v4220 = vmul.f32 %v4218, %v4218
    %v4221 = vsel %vm317, %v4219, 0.0
    %4222 = vadd.xlane.f32.xlu0 %v4221
    %v4223 = vpop.xlane.xlu0 %4222
    %v4224 = vsel %vm317, %v4220, 0.0
    %4225 = vadd.xlane.f32.xlu0 %v4224
    %v4226 = vpop.xlane.xlu0 %4225
    %v4227 = vmul.f32 %v4223, %v324
    %v4228 = vmul.f32 %v4226, %v324
    %v4229 = vadd.f32 %v4227, 1e-12
    %v4230 = vadd.f32 %v4228, 1e-12
    %v4231 = vrsqrt.pop %v4229
    %v4232 = vrsqrt.pop %v4230
    %v4233 = vmul.f32 %v4217, %v4231
    %v4234 = vmul.f32 %v4218, %v4232
    %v4236 = vlaneseq
    %v4237 = vshrl.u32 %v4236, 7
    %v4238 = vsub.s32 0, %v4237
    %v4239 = vrot.slane %v4206, %v4238
    %v4241 = vmul.f32 %v4233, %v4239
    %v4242 = vmul.f32 %v4234, %v4239
    %v4244 = vlaneseq
    %v4245 = vshrl.u32 %v4244, 7
    %v4246 = vsub.s32 0, %v4245
    %v4247 = vrot.slane %v4208, %v4246
    %v4249 = vadd.f32 %v4241, %v4247
    %v4250 = vadd.f32 %v4242, %v4247
    %v4252 = vlaneseq
    %v4253 = vshrl.u32 %v4252, 7
    %v4254 = vsub.s32 0, %v4253
    %v4255 = vrot.slane %v2450, %v4254
    %v4258 = vsel %vm317, %v4249, 0
    %v4261 = vsel %vm317, %v4250, 0
    %4263 = vmatprep.subr.mxu0 0.0
    %4264 = vmatpush1.msra.mxu0 0.0
    %4265 = vmatprep.subr.mxu0 0.0
    %4266 = vmatpush1.msra.mxu0 0.0
    %4267 = vmatprep.subr.mxu0 0.0
    %4268 = vmatpush1.msra.mxu0 0.0
    %4269 = vmatprep.subr.mxu0 0.0
    %4270 = vmatpush1.msra.mxu0 0.0
    %4271 = vmatprep.subr.mxu0 0.0
    %4272 = vmatpush1.msra.mxu0 0.0
    %4273 = vmatprep.subr.mxu0 0.0
    %4274 = vmatpush1.msra.mxu0 0.0
    %4275 = vmatprep.subr.mxu0 0.0
    %4276 = vmatpush1.msra.mxu0 0.0
    %4277 = vmatprep.subr.mxu0 0.0
    %4278 = vmatpush1.msra.mxu0 0.0
    %4279 = vmatprep.subr.mxu0 0.0
    %4280 = vmatpush1.msra.mxu0 0.0
    %4281 = vmatprep.subr.mxu0 0.0
    %4282 = vmatpush1.msra.mxu0 0.0
    %4283 = vmatprep.subr.mxu0 0.0
    %4284 = vmatpush1.msra.mxu0 0.0
    %4285 = vmatprep.subr.mxu0 0.0
    %4286 = vmatpush1.msra.mxu0 0.0
    %4287 = vmatprep.subr.mxu0 0.0
    %4288 = vmatpush1.msra.mxu0 %v2448
    %4289 = vmatprep.subr.mxu0 0.0
    %4290 = vmatpush1.msra.mxu0 %v2447
    %4291 = vmatprep.subr.mxu0 0.0
    %4292 = vmatpush1.msra.mxu0 %v2446
    %4293 = vmatprep.subr.mxu0 0.0
    %4294 = vmatpush1.msra.mxu0 %v2445
    %4295 = vmatprep.subr.mxu0 0.0
    %4296 = vmatpush2.msra.mxu0 0.0
    %4297 = vmatprep.subr.mxu0 0.0
    %4298 = vmatpush2.msra.mxu0 0.0
    %4299 = vmatprep.subr.mxu0 0.0
    %4300 = vmatpush2.msra.mxu0 0.0
    %4301 = vmatprep.subr.mxu0 0.0
    %4302 = vmatpush2.msra.mxu0 0.0
    %4303 = vmatprep.subr.mxu0 0.0
    %4304 = vmatpush2.msra.mxu0 0.0
    %4305 = vmatprep.subr.mxu0 0.0
    %4306 = vmatpush2.msra.mxu0 0.0
    %4307 = vmatprep.subr.mxu0 0.0
    %4308 = vmatpush2.msra.mxu0 0.0
    %4309 = vmatprep.subr.mxu0 0.0
    %4310 = vmatpush2.msra.mxu0 0.0
    %4311 = vmatprep.subr.mxu0 0.0
    %4312 = vmatpush2.msra.mxu0 0.0
    %4313 = vmatprep.subr.mxu0 0.0
    %4314 = vmatpush2.msra.mxu0 0.0
    %4315 = vmatprep.subr.mxu0 0.0
    %4316 = vmatpush2.msra.mxu0 0.0
    %4317 = vmatprep.subr.mxu0 0.0
    %4318 = vmatpush2.msra.mxu0 0.0
    %4319 = vmatprep.subr.mxu0 0.0
    %4320 = vmatpush2.msra.mxu0 0.0
    %4321 = vmatprep.subr.mxu0 0.0
    %4322 = vmatpush2.msra.mxu0 0.0
    %4323 = vmatprep.subr.mxu0 0.0
    %4324 = vmatpush2.msra.mxu0 0.0
    %4325 = vmatprep.subr.mxu0 0.0
    %4326 = vmatpush2.msra.mxu0 0.0
    %4327 = vmatprep.mubr.f32.mxu0 0.0
    %4328 = vmatmul.mubr.f32.gmra.mxu0 %v4258
    %v4329 = vpop.f32.mrf.mxu0
    %v4330 = vadd.f32 %v4255, %v4329
    %v4331 = vpop.f32.mrf.mxu0
    %4332 = vmatprep.mubr.f32.mxu0 0.0
    %4333 = vmatmul.mubr.f32.gmra.mxu0 %v4261
    %v4334 = vpop.f32.mrf.mxu0
    %v4335 = vadd.f32 %v4255, %v4334
    %v4336 = vpop.f32.mrf.mxu0
    %4337 = vdwg.mxu0
    %v4338 = vmul.f32 %v4330, 0.5
    %v4339 = vmul.f32 %v4335, 0.5
    %v4340 = vmul.f32 %v4330, 0.044715
    %v4341 = vmul.f32 %v4335, 0.044715
    %v4342 = vmul.f32 %v4340, %v4330
    %v4343 = vmul.f32 %v4341, %v4335
    %v4344 = vmul.f32 %v4342, %v4330
    %v4345 = vmul.f32 %v4343, %v4335
    %v4346 = vadd.f32 %v4330, %v4344
    %v4347 = vadd.f32 %v4335, %v4345
    %v4348 = vmul.f32 %v4346, 0.7978846
    %v4349 = vmul.f32 %v4347, 0.7978846
    %v4350 = vtanh.pop %v4348
    %v4351 = vtanh.pop %v4349
    %v4352 = vadd.f32 %v4350, 1.0
    %v4353 = vadd.f32 %v4351, 1.0
    %v4354 = vmul.f32 %v4338, %v4352
    %v4355 = vmul.f32 %v4339, %v4353
    %v4357 = vlaneseq
    %v4358 = vshrl.u32 %v4357, 7
    %v4359 = vsub.s32 0, %v4358
    %v4360 = vrot.slane %v2461, %v4359
    %v4363 = vsel %vm2302, %v4354, 0
    %v4366 = vsel %vm2302, %v4355, 0
    %4368 = vmatprep.subr.mxu0 0.0
    %4369 = vmatpush1.msra.mxu0 0.0
    %4370 = vmatprep.subr.mxu0 0.0
    %4371 = vmatpush1.msra.mxu0 0.0
    %4372 = vmatprep.subr.mxu0 0.0
    %4373 = vmatpush1.msra.mxu0 0.0
    %4374 = vmatprep.subr.mxu0 0.0
    %4375 = vmatpush1.msra.mxu0 0.0
    %4376 = vmatprep.subr.mxu0 0.0
    %4377 = vmatpush1.msra.mxu0 0.0
    %4378 = vmatprep.subr.mxu0 0.0
    %4379 = vmatpush1.msra.mxu0 0.0
    %4380 = vmatprep.subr.mxu0 0.0
    %4381 = vmatpush1.msra.mxu0 0.0
    %4382 = vmatprep.subr.mxu0 0.0
    %4383 = vmatpush1.msra.mxu0 0.0
    %4384 = vmatprep.subr.mxu0 0.0
    %4385 = vmatpush1.msra.mxu0 %v2459
    %4386 = vmatprep.subr.mxu0 0.0
    %4387 = vmatpush1.msra.mxu0 %v2458
    %4388 = vmatprep.subr.mxu0 0.0
    %4389 = vmatpush1.msra.mxu0 %v2457
    %4390 = vmatprep.subr.mxu0 0.0
    %4391 = vmatpush1.msra.mxu0 %v2456
    %4392 = vmatprep.subr.mxu0 0.0
    %4393 = vmatpush1.msra.mxu0 %v2455
    %4394 = vmatprep.subr.mxu0 0.0
    %4395 = vmatpush1.msra.mxu0 %v2454
    %4396 = vmatprep.subr.mxu0 0.0
    %4397 = vmatpush1.msra.mxu0 %v2453
    %4398 = vmatprep.subr.mxu0 0.0
    %4399 = vmatpush1.msra.mxu0 %v2452
    %4400 = vmatprep.subr.mxu0 0.0
    %4401 = vmatpush2.msra.mxu0 0.0
    %4402 = vmatprep.subr.mxu0 0.0
    %4403 = vmatpush2.msra.mxu0 0.0
    %4404 = vmatprep.subr.mxu0 0.0
    %4405 = vmatpush2.msra.mxu0 0.0
    %4406 = vmatprep.subr.mxu0 0.0
    %4407 = vmatpush2.msra.mxu0 0.0
    %4408 = vmatprep.subr.mxu0 0.0
    %4409 = vmatpush2.msra.mxu0 0.0
    %4410 = vmatprep.subr.mxu0 0.0
    %4411 = vmatpush2.msra.mxu0 0.0
    %4412 = vmatprep.subr.mxu0 0.0
    %4413 = vmatpush2.msra.mxu0 0.0
    %4414 = vmatprep.subr.mxu0 0.0
    %4415 = vmatpush2.msra.mxu0 0.0
    %4416 = vmatprep.subr.mxu0 0.0
    %4417 = vmatpush2.msra.mxu0 0.0
    %4418 = vmatprep.subr.mxu0 0.0
    %4419 = vmatpush2.msra.mxu0 0.0
    %4420 = vmatprep.subr.mxu0 0.0
    %4421 = vmatpush2.msra.mxu0 0.0
    %4422 = vmatprep.subr.mxu0 0.0
    %4423 = vmatpush2.msra.mxu0 0.0
    %4424 = vmatprep.subr.mxu0 0.0
    %4425 = vmatpush2.msra.mxu0 0.0
    %4426 = vmatprep.subr.mxu0 0.0
    %4427 = vmatpush2.msra.mxu0 0.0
    %4428 = vmatprep.subr.mxu0 0.0
    %4429 = vmatpush2.msra.mxu0 0.0
    %4430 = vmatprep.subr.mxu0 0.0
    %4431 = vmatpush2.msra.mxu0 0.0
    %4432 = vmatprep.mubr.f32.mxu0 0.0
    %4433 = vmatmul.mubr.f32.gmra.mxu0 %v4363
    %v4434 = vpop.f32.mrf.mxu0
    %v4435 = vadd.f32 %v4360, %v4434
    %v4436 = vpop.f32.mrf.mxu0
    %4437 = vmatprep.mubr.f32.mxu0 0.0
    %4438 = vmatmul.mubr.f32.gmra.mxu0 %v4366
    %v4439 = vpop.f32.mrf.mxu0
    %v4440 = vadd.f32 %v4360, %v4439
    %v4441 = vpop.f32.mrf.mxu0
    %4442 = vdwg.mxu0
    %v4443 = vadd.f32 %v4435, %v4249
    %v4444 = vadd.f32 %v4440, %v4250
    %s4445 = scalar_lea.vmem %s19, 1
    %v4446 = vld [vmem:[%s4445] sm:$0x1]
    %s4447 = scalar_lea.vmem %s20, 1
    %v4448 = vld [vmem:[%s4447] sm:$0x1]
    %v4449 = vsel %vm317, %v4443, 0.0
    %4450 = vadd.xlane.f32.xlu0 %v4449
    %v4451 = vpop.xlane.xlu0 %4450
    %v4452 = vsel %vm317, %v4444, 0.0
    %4453 = vadd.xlane.f32.xlu0 %v4452
    %v4454 = vpop.xlane.xlu0 %4453
    %v4455 = vmul.f32 %v4451, %v324
    %v4456 = vmul.f32 %v4454, %v324
    %v4457 = vsub.f32 %v4443, %v4455
    %v4458 = vsub.f32 %v4444, %v4456
    %v4459 = vmul.f32 %v4457, %v4457
    %v4460 = vmul.f32 %v4458, %v4458
    %v4461 = vsel %vm317, %v4459, 0.0
    %4462 = vadd.xlane.f32.xlu0 %v4461
    %v4463 = vpop.xlane.xlu0 %4462
    %v4464 = vsel %vm317, %v4460, 0.0
    %4465 = vadd.xlane.f32.xlu0 %v4464
    %v4466 = vpop.xlane.xlu0 %4465
    %v4467 = vmul.f32 %v4463, %v324
    %v4468 = vmul.f32 %v4466, %v324
    %v4469 = vadd.f32 %v4467, 1e-12
    %v4470 = vadd.f32 %v4468, 1e-12
    %v4471 = vrsqrt.pop %v4469
    %v4472 = vrsqrt.pop %v4470
    %v4473 = vmul.f32 %v4457, %v4471
    %v4474 = vmul.f32 %v4458, %v4472
    %v4476 = vlaneseq
    %v4477 = vshrl.u32 %v4476, 7
    %v4478 = vsub.s32 0, %v4477
    %v4479 = vrot.slane %v4446, %v4478
    %v4481 = vmul.f32 %v4473, %v4479
    %v4482 = vmul.f32 %v4474, %v4479
    %v4484 = vlaneseq
    %v4485 = vshrl.u32 %v4484, 7
    %v4486 = vsub.s32 0, %v4485
    %v4487 = vrot.slane %v4448, %v4486
    %v4489 = vadd.f32 %v4481, %v4487
    %v4490 = vadd.f32 %v4482, %v4487
    %v4491 = vld [vmem:[%s21] sm:$0xff]
    %v4492 = vld [vmem:[%s21 + $0x8] sm:$0xff]
    %v4493 = vld [vmem:[%s21 + $0x10] sm:$0xff]
    %v4494 = vld [vmem:[%s21 + $0x18] sm:$0xff]
    %v4495 = vld [vmem:[%s22] sm:$0x1]
    %v4497 = vlaneseq
    %v4498 = vshrl.u32 %v4497, 7
    %v4499 = vsub.s32 0, %v4498
    %v4500 = vrot.slane %v4495, %v4499
    %v4504 = vrot.slane %v4490, 7
    %vm4505 = vcmask 1041409
    %v4506 = vsel %vm4505, %v4504, %v4489
    %v4507 = vsel %vm317, %v4506, 0
    %4509 = vmatprep.subr.mxu0 0.0
    %4510 = vmatpush1.msra.mxu0 0.0
    %4511 = vmatprep.subr.mxu0 0.0
    %4512 = vmatpush1.msra.mxu0 0.0
    %4513 = vmatprep.subr.mxu0 0.0
    %4514 = vmatpush1.msra.mxu0 0.0
    %4515 = vmatprep.subr.mxu0 0.0
    %4516 = vmatpush1.msra.mxu0 0.0
    %4517 = vmatprep.subr.mxu0 0.0
    %4518 = vmatpush1.msra.mxu0 0.0
    %4519 = vmatprep.subr.mxu0 0.0
    %4520 = vmatpush1.msra.mxu0 0.0
    %4521 = vmatprep.subr.mxu0 0.0
    %4522 = vmatpush1.msra.mxu0 0.0
    %4523 = vmatprep.subr.mxu0 0.0
    %4524 = vmatpush1.msra.mxu0 0.0
    %4525 = vmatprep.subr.mxu0 0.0
    %4526 = vmatpush1.msra.mxu0 0.0
    %4527 = vmatprep.subr.mxu0 0.0
    %4528 = vmatpush1.msra.mxu0 0.0
    %4529 = vmatprep.subr.mxu0 0.0
    %4530 = vmatpush1.msra.mxu0 0.0
    %4531 = vmatprep.subr.mxu0 0.0
    %4532 = vmatpush1.msra.mxu0 0.0
    %4533 = vmatprep.subr.mxu0 0.0
    %4534 = vmatpush1.msra.mxu0 %v4494
    %4535 = vmatprep.subr.mxu0 0.0
    %4536 = vmatpush1.msra.mxu0 %v4493
    %4537 = vmatprep.subr.mxu0 0.0
    %4538 = vmatpush1.msra.mxu0 %v4492
    %4539 = vmatprep.subr.mxu0 0.0
    %4540 = vmatpush1.msra.mxu0 %v4491
    %4541 = vmatprep.subr.mxu0 0.0
    %4542 = vmatpush2.msra.mxu0 0.0
    %4543 = vmatprep.subr.mxu0 0.0
    %4544 = vmatpush2.msra.mxu0 0.0
    %4545 = vmatprep.subr.mxu0 0.0
    %4546 = vmatpush2.msra.mxu0 0.0
    %4547 = vmatprep.subr.mxu0 0.0
    %4548 = vmatpush2.msra.mxu0 0.0
    %4549 = vmatprep.subr.mxu0 0.0
    %4550 = vmatpush2.msra.mxu0 0.0
    %4551 = vmatprep.subr.mxu0 0.0
    %4552 = vmatpush2.msra.mxu0 0.0
    %4553 = vmatprep.subr.mxu0 0.0
    %4554 = vmatpush2.msra.mxu0 0.0
    %4555 = vmatprep.subr.mxu0 0.0
    %4556 = vmatpush2.msra.mxu0 0.0
    %4557 = vmatprep.subr.mxu0 0.0
    %4558 = vmatpush2.msra.mxu0 0.0
    %4559 = vmatprep.subr.mxu0 0.0
    %4560 = vmatpush2.msra.mxu0 0.0
    %4561 = vmatprep.subr.mxu0 0.0
    %4562 = vmatpush2.msra.mxu0 0.0
    %4563 = vmatprep.subr.mxu0 0.0
    %4564 = vmatpush2.msra.mxu0 0.0
    %4565 = vmatprep.subr.mxu0 0.0
    %4566 = vmatpush2.msra.mxu0 0.0
    %4567 = vmatprep.subr.mxu0 0.0
    %4568 = vmatpush2.msra.mxu0 0.0
    %4569 = vmatprep.subr.mxu0 0.0
    %4570 = vmatpush2.msra.mxu0 0.0
    %4571 = vmatprep.subr.mxu0 0.0
    %4572 = vmatpush2.msra.mxu0 0.0
    %4573 = vmatprep.mubr.f32.mxu0 0.0
    %4574 = vmatmul.mubr.f32.gmra.mxu0 %v4507
    %v4575 = vpop.f32.mrf.mxu0
    %v4576 = vadd.f32 %v4500, %v4575
    %v4577 = vpop.f32.mrf.mxu0
    %4578 = vdwg.mxu0
    %v4579 = vtanh.pop %v4576
    %v4580 = vld [vmem:[%s23] sm:$0xff]
    %v4581 = vld [vmem:[%s23 + $0x8] sm:$0xff]
    %v4582 = vld [vmem:[%s23 + $0x10] sm:$0xff]
    %v4583 = vld [vmem:[%s23 + $0x18] sm:$0xff]
    %v4584 = vld [vmem:[%s24] sm:$0x1]
    %v4586 = vlaneseq
    %v4587 = vshrl.u32 %v4586, 7
    %v4588 = vsub.s32 0, %v4587
    %v4589 = vrot.slane %v4584, %v4588
    %v4592 = vsel %vm317, %v4579, 0
    %4594 = vmatprep.subr.mxu0 0.0
    %4595 = vmatpush1.msra.mxu0 0.0
    %4596 = vmatprep.subr.mxu0 0.0
    %4597 = vmatpush1.msra.mxu0 0.0
    %4598 = vmatprep.subr.mxu0 0.0
    %4599 = vmatpush1.msra.mxu0 0.0
    %4600 = vmatprep.subr.mxu0 0.0
    %4601 = vmatpush1.msra.mxu0 0.0
    %4602 = vmatprep.subr.mxu0 0.0
    %4603 = vmatpush1.msra.mxu0 0.0
    %4604 = vmatprep.subr.mxu0 0.0
    %4605 = vmatpush1.msra.mxu0 0.0
    %4606 = vmatprep.subr.mxu0 0.0
    %4607 = vmatpush1.msra.mxu0 0.0
    %4608 = vmatprep.subr.mxu0 0.0
    %4609 = vmatpush1.msra.mxu0 0.0
    %4610 = vmatprep.subr.mxu0 0.0
    %4611 = vmatpush1.msra.mxu0 0.0
    %4612 = vmatprep.subr.mxu0 0.0
    %4613 = vmatpush1.msra.mxu0 0.0
    %4614 = vmatprep.subr.mxu0 0.0
    %4615 = vmatpush1.msra.mxu0 0.0
    %4616 = vmatprep.subr.mxu0 0.0
    %4617 = vmatpush1.msra.mxu0 0.0
    %4618 = vmatprep.subr.mxu0 0.0
    %4619 = vmatpush1.msra.mxu0 %v4583
    %4620 = vmatprep.subr.mxu0 0.0
    %4621 = vmatpush1.msra.mxu0 %v4582
    %4622 = vmatprep.subr.mxu0 0.0
    %4623 = vmatpush1.msra.mxu0 %v4581
    %4624 = vmatprep.subr.mxu0 0.0
    %4625 = vmatpush1.msra.mxu0 %v4580
    %4626 = vmatprep.subr.mxu0 0.0
    %4627 = vmatpush2.msra.mxu0 0.0
    %4628 = vmatprep.subr.mxu0 0.0
    %4629 = vmatpush2.msra.mxu0 0.0
    %4630 = vmatprep.subr.mxu0 0.0
    %4631 = vmatpush2.msra.mxu0 0.0
    %4632 = vmatprep.subr.mxu0 0.0
    %4633 = vmatpush2.msra.mxu0 0.0
    %4634 = vmatprep.subr.mxu0 0.0
    %4635 = vmatpush2.msra.mxu0 0.0
    %4636 = vmatprep.subr.mxu0 0.0
    %4637 = vmatpush2.msra.mxu0 0.0
    %4638 = vmatprep.subr.mxu0 0.0
    %4639 = vmatpush2.msra.mxu0 0.0
    %4640 = vmatprep.subr.mxu0 0.0
    %4641 = vmatpush2.msra.mxu0 0.0
    %4642 = vmatprep.subr.mxu0 0.0
    %4643 = vmatpush2.msra.mxu0 0.0
    %4644 = vmatprep.subr.mxu0 0.0
    %4645 = vmatpush2.msra.mxu0 0.0
    %4646 = vmatprep.subr.mxu0 0.0
    %4647 = vmatpush2.msra.mxu0 0.0
    %4648 = vmatprep.subr.mxu0 0.0
    %4649 = vmatpush2.msra.mxu0 0.0
    %4650 = vmatprep.subr.mxu0 0.0
    %4651 = vmatpush2.msra.mxu0 0.0
    %4652 = vmatprep.subr.mxu0 0.0
    %4653 = vmatpush2.msra.mxu0 0.0
    %4654 = vmatprep.subr.mxu0 0.0
    %4655 = vmatpush2.msra.mxu0 0.0
    %4656 = vmatprep.subr.mxu0 0.0
    %4657 = vmatpush2.msra.mxu0 0.0
    %4658 = vmatprep.mubr.f32.mxu0 0.0
    %4659 = vmatmul.mubr.f32.gmra.mxu0 %v4592
    %v4660 = vpop.f32.mrf.mxu0
    %v4661 = vadd.f32 %v4589, %v4660
    %v4662 = vpop.f32.mrf.mxu0
    %4663 = vdwg.mxu0
    %4664 = vst [vmem:[#allocation2] sm:$0x3] %v4661
    // Predicated region
    $region102: #{bert_multilabel_forward.1} parent=1 // pred_check
      _
    $region103: #{bert_multilabel_forward.1} parent=1 // pred_check_branch
      %4666 = sbr.rel (0) target = $region105
    $region104: #{bert_multilabel_forward.1} parent=1 // pred_region
      %s4668 = ssub.s32 32, 32
      %4669 = vsyncadd [#allocation3], %s4668
      %s4671 = sshll.u32 [#allocation2], 4
      %s4672 = int_to_ptr.vmem [resolvable:$true] %s4671
      %4674 = dma.vmem_to_hbm [thread:$0]  %s4672, 32, %s25, [#allocation3]
    $region105: #{bert_multilabel_forward.1} parent=1 // pred_fallthru
      _
    // Predicated region
    $region106: #{bert_multilabel_forward.1} parent=1 // pred_check
      _
    $region107: #{bert_multilabel_forward.1} parent=1 // pred_check_branch
      %4676 = sbr.rel (0) target = $region109
    $region108: #{bert_multilabel_forward.1} parent=1 // pred_region
      %4677 = dma.done [#allocation3], 32
    $region109: #{bert_multilabel_forward.1} parent=1 // pred_fallthru
      _
    %4678 = vsyncpa [#allocation3], 1

</llo_original>
